<compile_context>
chip_gen: v7x
topology: tpu7x:2x2x1
jax: 0.10.0
libtpu: 0.0.40
codegen_flags: <defaults>
</compile_context>

<pallas_src>
import math
import numpy as np
import jax
import jax.numpy as jnp
from jax.experimental import pallas as pl
from jax.experimental.pallas import tpu as pltpu

J = 4
L = 8


def _round_up(x, m):
    return ((x + m - 1) // m) * m


# ----------------------------------------------------------------------------
# kymatio-style Morlet filter bank (deterministic, built once with numpy)
# ----------------------------------------------------------------------------
def _gabor_2d(M, N, sigma, theta, xi, slant=0.5, offset=0):
    gab = np.zeros((M, N), np.complex128)
    R = np.array([[np.cos(theta), -np.sin(theta)],
                  [np.sin(theta),  np.cos(theta)]])
    R_inv = np.array([[np.cos(theta),  np.sin(theta)],
                      [-np.sin(theta), np.cos(theta)]])
    D = np.array([[1.0, 0.0], [0.0, slant * slant]])
    curv = R @ D @ R_inv / (2.0 * sigma * sigma)
    for ex in (-2, -1, 0, 1, 2):
        for ey in (-2, -1, 0, 1, 2):
            xx, yy = np.mgrid[offset + ex * M:offset + M + ex * M,
                              offset + ey * N:offset + N + ey * N]
            arg = (-(curv[0, 0] * xx * xx + (curv[0, 1] + curv[1, 0]) * xx * yy
                     + curv[1, 1] * yy * yy)
                   + 1j * (xx * xi * np.cos(theta) + yy * xi * np.sin(theta)))
            gab = gab + np.exp(arg)
    gab = gab / (2.0 * np.pi * sigma * sigma / slant / slant)
    return gab


def _morlet_2d(M, N, sigma, theta, xi, slant=0.5):
    wv = _gabor_2d(M, N, sigma, theta, xi, slant)
    wv_mod = _gabor_2d(M, N, sigma, theta, 0.0, slant)
    K = np.sum(wv) / np.sum(wv_mod)
    return wv - K * wv_mod


def _periodize_filter_fft(x, res):
    M, N = x.shape
    mask = np.ones(x.shape, np.float64)
    start_x = int(M * 2 ** (-res - 1)); len_x = int(M * (1 - 2 ** (-res)))
    start_y = int(N * 2 ** (-res - 1)); len_y = int(N * (1 - 2 ** (-res)))
    mask[start_x:start_x + len_x, :] = 0
    mask[:, start_y:start_y + len_y] = 0
    x = x * mask
    k = 2 ** res
    return x.reshape(k, M // k, k, N // k).sum(axis=(0, 2))


def build_filter_bank(M, N):
    psi = []
    for j in range(J):
        f_hats = []
        for theta in range(L):
            sig = _morlet_2d(M, N, 0.8 * 2 ** j,
                             (int(L - L / 2 - 1) - theta) * np.pi / L,
                             3.0 / 4.0 * np.pi / 2 ** j, 4.0 / L)
            f_hats.append(np.real(np.fft.fft2(sig)))
        levels = []
        for res in range(j + 1):
            levels.append(jnp.asarray(
                np.stack([_periodize_filter_fft(f, res) for f in f_hats]),
                dtype=jnp.float32))
        psi.append(levels)
    phi_hat = np.real(np.fft.fft2(_gabor_2d(M, N, 0.8 * 2 ** (J - 1), 0.0, 0.0)))
    phi = [jnp.asarray(_periodize_filter_fft(phi_hat, res), dtype=jnp.float32)
           for res in range(J)]
    return phi, psi


# ----------------------------------------------------------------------------
# Pallas kernel 1: batched complex modulus (the scattering nonlinearity)
# ----------------------------------------------------------------------------
_LANES = 128
_MAX_BLOCK_ROWS = 512   # ~85% of HBM roofline for mem-bound elementwise tiles on v6e


def _modulus_kernel(re_ref, im_ref, o_ref):
    re = re_ref[...]
    im = im_ref[...]
    o_ref[...] = jnp.sqrt(re * re + im * im)


def pallas_modulus_many(arrays):
    """|u| for a *list* of complex arrays, computed with a SINGLE pallas_call.

    All bands are flattened, concatenated and zero-padded to a lane-dense
    (rows, 128) buffer with rows a multiple of the block size, then processed
    with a row-tiled grid (software-pipelined DMA; 'parallel' axis lets v7x
    shard across its two TensorCores, no-op on v5e/v6e).
    """
    shapes = [a.shape for a in arrays]
    sizes = [int(np.prod(s)) for s in shapes]
    total = int(sum(sizes))

    flat = jnp.concatenate([a.reshape(-1) for a in arrays])
    # TODO(synk): real/imag extraction still materializes two f32 streams; a
    # bitcast-interleaved single-stream variant would halve that input traffic.
    re = jnp.real(flat).astype(jnp.float32)
    im = jnp.imag(flat).astype(jnp.float32)

    rows = _round_up((total + _LANES - 1) // _LANES, 8)
    block_rows = min(_MAX_BLOCK_ROWS, rows)
    rows = _round_up(rows, block_rows)
    padded = rows * _LANES
    if padded != total:
        re = jnp.pad(re, (0, padded - total))
        im = jnp.pad(im, (0, padded - total))
    re2 = re.reshape(rows, _LANES)
    im2 = im.reshape(rows, _LANES)

    out = pl.pallas_call(
        _modulus_kernel,
        out_shape=jax.ShapeDtypeStruct((rows, _LANES), jnp.float32),
        grid=(rows // block_rows,),
        in_specs=[pl.BlockSpec((block_rows, _LANES), lambda i: (i, 0)),
                  pl.BlockSpec((block_rows, _LANES), lambda i: (i, 0))],
        out_specs=pl.BlockSpec((block_rows, _LANES), lambda i: (i, 0)),
        compiler_params=pltpu.CompilerParams(
            dimension_semantics=("parallel",)),
    )(re2, im2)

    flat_out = out.reshape(-1)
    outs, off = [], 0
    for s, n in zip(shapes, sizes):
        outs.append(flat_out[off:off + n].reshape(s))
        off += n
    return outs


# ----------------------------------------------------------------------------
# Pallas kernel 2: fused classifier head  (x @ pca) -> MLP(1024, 1024) -> logits
# ----------------------------------------------------------------------------
def _head_kernel(x_ref, pca_ref, w1_ref, b1_ref, w2_ref, b2_ref, w3_ref, b3_ref,
                 o_ref):
    f32, bf16 = jnp.float32, jnp.bfloat16
    h = jnp.dot(x_ref[...].astype(bf16), pca_ref[...], preferred_element_type=f32)
    h = jnp.dot(h.astype(bf16), w1_ref[...], preferred_element_type=f32) + b1_ref[...]
    h = jnp.maximum(h, 0.0)
    h = jnp.dot(h.astype(bf16), w2_ref[...], preferred_element_type=f32) + b2_ref[...]
    h = jnp.maximum(h, 0.0)
    o_ref[...] = jnp.dot(h.astype(bf16), w3_ref[...], preferred_element_type=f32) + b3_ref[...]


def pallas_classifier(feats, pca, w1, b1, w2, b2, w3, b3):
    B, F = feats.shape
    classes = w3.shape[1]
    hidden = w1.shape[1]
    pca_dim = pca.shape[1]

    F_pad = _round_up(F, 128)          # 128-aligned contraction dim (1251 -> 1280)
    C_pad = _round_up(classes, 128)    # lane-dense logits (unmasked vst)
    B_pad = _round_up(B, 8)            # sublane-aligned batch
    block_b = min(128, B_pad)          # batch tile; weights stay resident across tiles
    B_pad = _round_up(B_pad, block_b)

    feats_p = jnp.pad(feats, ((0, B_pad - B), (0, F_pad - F)))
    pca_p = jnp.pad(pca, ((0, F_pad - F), (0, 0))).astype(jnp.bfloat16)
    w1_b = w1.astype(jnp.bfloat16)
    w2_b = w2.astype(jnp.bfloat16)
    w3_p = jnp.pad(w3, ((0, 0), (0, C_pad - classes))).astype(jnp.bfloat16)
    b3_p = jnp.pad(b3, ((0, 0), (0, C_pad - classes)))

    const = lambda i: (0, 0)           # resident weights: same block every grid step
    out = pl.pallas_call(
        _head_kernel,
        out_shape=jax.ShapeDtypeStruct((B_pad, C_pad), jnp.float32),
        grid=(B_pad // block_b,),
        in_specs=[
            pl.BlockSpec((block_b, F_pad), lambda i: (i, 0)),   # activations: streamed
            pl.BlockSpec((F_pad, pca_dim), const),
            pl.BlockSpec((pca_dim, hidden), const),
            pl.BlockSpec((1, hidden), const),
            pl.BlockSpec((hidden, hidden), const),
            pl.BlockSpec((1, hidden), const),
            pl.BlockSpec((hidden, C_pad), const),
            pl.BlockSpec((1, C_pad), const),
        ],
        out_specs=pl.BlockSpec((block_b, C_pad), lambda i: (i, 0)),
        compiler_params=pltpu.CompilerParams(
            dimension_semantics=("parallel",)),
        # No vmem_limit override: bf16 weights keep the footprint (~7 MiB) well inside
        # the default scoped VMEM on v5e/v6e/v7x (v7x physical VMEM is only 64 MiB).
    )(feats_p, pca_p, w1_b, b1, w2_b, b2, w3_p, b3_p)
    return out[:B, :classes]


# ----------------------------------------------------------------------------
# Scattering2D forward (FFT-domain wavelet convolutions, batched Pallas modulus)
# ----------------------------------------------------------------------------
def subsample_fourier(x, k):
    if k == 1:
        return x
    sh = x.shape
    m, n = sh[-2], sh[-1]
    y = x.reshape(sh[:-2] + (k, m // k, k, n // k))
    return jnp.mean(y, axis=(-4, -2))


def scattering2d(x, phi, psi):
    # TODO(synk): kymatio's reflect pad/unpad is omitted (periodic boundary used);
    # output shapes and channel ordering match kymatio exactly.
    B, C, M, N = x.shape
    BC = B * C
    xr = x.reshape(BC, M, N).astype(jnp.float32)
    X0 = jnp.fft.fft2(xr)                                  # (BC, M, N) complex64
    hJ, wJ = M // 2 ** J, N // 2 ** J

    def lowpass(U_hat, res):
        Y = U_hat * phi[res]
        Y = subsample_fourier(Y, 2 ** (J - res))
        return jnp.real(jnp.fft.ifft2(Y)).astype(jnp.float32)

    S0 = lowpass(X0, 0)                                    # (BC, hJ, wJ)

    # ---- first order: compute every band first, take |.| with ONE pallas_call
    y1_list = []
    for j1 in range(J):
        Y1 = X0[:, None, :, :] * psi[j1][0]                # (BC, L, M, N)
        Y1 = subsample_fourier(Y1, 2 ** j1)
        y1_list.append(jnp.fft.ifft2(Y1))                  # (BC, L, M/2^j1, N/2^j1)
    U1_list = pallas_modulus_many(y1_list)
    U1_hat = [jnp.fft.fft2(u) for u in U1_list]
    out1 = [lowpass(U1_hat[j1], j1) for j1 in range(J)]    # each (BC, L, hJ, wJ)

    # ---- second order: again one pallas_call for all (j1, j2) bands
    y2_list, y2_index = [], []
    for j1 in range(J):
        for j2 in range(j1 + 1, J):
            Y2 = U1_hat[j1][:, :, None, :, :] * psi[j2][j1]  # (BC, L, L, m1, n1)
            Y2 = subsample_fourier(Y2, 2 ** (j2 - j1))
            y2_list.append(jnp.fft.ifft2(Y2))
            y2_index.append((j1, j2))
    U2_list = pallas_modulus_many(y2_list)
    out2 = [[] for _ in range(J)]
    for (j1, j2), U2 in zip(y2_index, U2_list):
        out2[j1].append(lowpass(jnp.fft.fft2(U2), j2))       # (BC, L, L, hJ, wJ)

    chans = [S0[:, None]]
    chans.append(jnp.concatenate(out1, axis=1))            # order: j1 major, theta1 minor
    for j1 in range(J):
        if out2[j1]:
            s = jnp.stack(out2[j1], axis=2)                # (BC, L1, n_j2, L2, hJ, wJ)
            chans.append(s.reshape(BC, -1, hJ, wJ))        # theta1 > j2 > theta2 ordering
    S = jnp.concatenate(chans, axis=1)                     # (BC, K, hJ, wJ)
    return S.reshape(B, C, -1, hJ, wJ)


def scatnet2d_forward(x, phi, psi, pca, w1, b1, w2, b2, w3, b3):
    S = scattering2d(x, phi, psi)              # (B, C, K, h, w)
    B = x.shape[0]
    feats = S.reshape(B, -1)                   # flatten(start_dim=1)
    return pallas_classifier(feats, pca, w1, b1, w2, b2, w3, b3)


# ----------------------------------------------------------------------------
if __name__ == "__main__":
    B, C, H, W = 2, 3, 16, 16
    classes = 10
    pca_dim = 64
    hidden = 1024
    K = 1 + J * L + L ** 2 * J * (J - 1) // 2              # 417
    coefficients = K * (W // 2 ** J) * (H // 2 ** J) * C   # 1251

    phi, psi = build_filter_bank(H, W)

    key = jax.random.PRNGKey(0)
    kx, kp, k1, k2, k3 = jax.random.split(key, 5)
    x = jax.random.normal(kx, (B, C, H, W), dtype=jnp.float32)
    pca = jax.random.normal(kp, (coefficients, pca_dim), jnp.float32) * 0.02
    # TODO(synk): MLP internals not shown in the reference module; assuming
    # Linear(pca_dim,1024)-ReLU-Linear(1024,1024)-ReLU-Linear(1024,classes), no dropout.
    w1 = jax.random.normal(k1, (pca_dim, hidden), jnp.float32) * (1.0 / math.sqrt(pca_dim))
    b1 = jnp.zeros((1, hidden), jnp.float32)
    w2 = jax.random.normal(k2, (hidden, hidden), jnp.float32) * (1.0 / math.sqrt(hidden))
    b2 = jnp.zeros((1, hidden), jnp.float32)
    w3 = jax.random.normal(k3, (hidden, classes), jnp.float32) * (1.0 / math.sqrt(hidden))
    b3 = jnp.zeros((1, classes), jnp.float32)

    fwd = jax.jit(scatnet2d_forward)
    out = fwd(x, phi, psi, pca, w1, b1, w2, b2, w3, b3)
    jax.block_until_ready(out)
    assert out.shape == (B, classes) and out.dtype == jnp.float32
    print("KERNEL_OK")
</pallas_src>

<mosaic_0001>
module attributes {stable_mosaic.version = 11 : i64} {
  func.func @_modulus_kernel(%arg0: i32, %arg1: memref<128x128xf32, #tpu.memory_space<vmem>>, %arg2: memref<128x128xf32, #tpu.memory_space<vmem>>, %arg3: memref<128x128xf32, #tpu.memory_space<vmem>>) attributes {dimension_semantics = [#tpu.dimension_semantics<parallel>], iteration_bounds = array<i64: 1>, scalar_prefetch = 0 : i64, scratch_operands = 0 : i64, tpu.core_type = #tpu.core_type<tc>, window_params = [{transform_indices = @transform_0, window_bounds = array<i64: 128, 128>}, {transform_indices = @transform_1, window_bounds = array<i64: 128, 128>}, {transform_indices = @transform_2, window_bounds = array<i64: 128, 128>}]} {
    %c0 = arith.constant 0 : index
    %c0_0 = arith.constant 0 : index
    %0 = vector.load %arg1[%c0, %c0_0] : memref<128x128xf32, #tpu.memory_space<vmem>>, vector<128x128xf32>
    %c0_1 = arith.constant 0 : index
    %c0_2 = arith.constant 0 : index
    %1 = vector.load %arg2[%c0_1, %c0_2] : memref<128x128xf32, #tpu.memory_space<vmem>>, vector<128x128xf32>
    %2 = arith.mulf %0, %0 : vector<128x128xf32>
    %3 = arith.mulf %1, %1 : vector<128x128xf32>
    %4 = arith.addf %2, %3 : vector<128x128xf32>
    %5 = math.sqrt %4 : vector<128x128xf32>
    %c0_3 = arith.constant 0 : index
    %c0_4 = arith.constant 0 : index
    %6 = vector.load %arg3[%c0_3, %c0_4] : memref<128x128xf32, #tpu.memory_space<vmem>>, vector<128x128xf32>
    tpu.vector_store %arg3[%c0_3, %c0_4], %5 {strides = array<i32>} : memref<128x128xf32, #tpu.memory_space<vmem>>, vector<128x128xf32>,
    return
  }
  func.func @transform_0(%arg0: i32) -> (i32, i32) {
    %c0_i32 = arith.constant 0 : i32
    %c0_i32_0 = arith.constant 0 : i32
    return %arg0, %c0_i32 : i32, i32
  }
  func.func @transform_1(%arg0: i32) -> (i32, i32) {
    %c0_i32 = arith.constant 0 : i32
    %c0_i32_0 = arith.constant 0 : i32
    return %arg0, %c0_i32 : i32, i32
  }
  func.func @transform_2(%arg0: i32) -> (i32, i32) {
    %c0_i32 = arith.constant 0 : i32
    %c0_i32_0 = arith.constant 0 : i32
    return %arg0, %c0_i32 : i32, i32
  }
}

module attributes {stable_mosaic.version = 11 : i64} {
  func.func @_modulus_kernel(%arg0: i32, %arg1: memref<328x128xf32, #tpu.memory_space<vmem>>, %arg2: memref<328x128xf32, #tpu.memory_space<vmem>>, %arg3: memref<328x128xf32, #tpu.memory_space<vmem>>) attributes {dimension_semantics = [#tpu.dimension_semantics<parallel>], iteration_bounds = array<i64: 1>, scalar_prefetch = 0 : i64, scratch_operands = 0 : i64, tpu.core_type = #tpu.core_type<tc>, window_params = [{transform_indices = @transform_0, window_bounds = array<i64: 328, 128>}, {transform_indices = @transform_1, window_bounds = array<i64: 328, 128>}, {transform_indices = @transform_2, window_bounds = array<i64: 328, 128>}]} {
    %c0 = arith.constant 0 : index
    %c0_0 = arith.constant 0 : index
    %0 = vector.load %arg1[%c0, %c0_0] : memref<328x128xf32, #tpu.memory_space<vmem>>, vector<328x128xf32>
    %c0_1 = arith.constant 0 : index
    %c0_2 = arith.constant 0 : index
    %1 = vector.load %arg2[%c0_1, %c0_2] : memref<328x128xf32, #tpu.memory_space<vmem>>, vector<328x128xf32>
    %2 = arith.mulf %0, %0 : vector<328x128xf32>
    %3 = arith.mulf %1, %1 : vector<328x128xf32>
    %4 = arith.addf %2, %3 : vector<328x128xf32>
    %5 = math.sqrt %4 : vector<328x128xf32>
    %c0_3 = arith.constant 0 : index
    %c0_4 = arith.constant 0 : index
    %6 = vector.load %arg3[%c0_3, %c0_4] : memref<328x128xf32, #tpu.memory_space<vmem>>, vector<328x128xf32>
    tpu.vector_store %arg3[%c0_3, %c0_4], %5 {strides = array<i32>} : memref<328x128xf32, #tpu.memory_space<vmem>>, vector<328x128xf32>,
    return
  }
  func.func @transform_0(%arg0: i32) -> (i32, i32) {
    %c0_i32 = arith.constant 0 : i32
    %c0_i32_0 = arith.constant 0 : i32
    return %arg0, %c0_i32 : i32, i32
  }
  func.func @transform_1(%arg0: i32) -> (i32, i32) {
    %c0_i32 = arith.constant 0 : i32
    %c0_i32_0 = arith.constant 0 : i32
    return %arg0, %c0_i32 : i32, i32
  }
  func.func @transform_2(%arg0: i32) -> (i32, i32) {
    %c0_i32 = arith.constant 0 : i32
    %c0_i32_0 = arith.constant 0 : i32
    return %arg0, %c0_i32 : i32, i32
  }
}

module attributes {stable_mosaic.version = 11 : i64} {
  func.func @_head_kernel(%arg0: i32, %arg1: memref<8x1280xf32, #tpu.memory_space<vmem>>, %arg2: memref<1280x64xbf16, #tpu.memory_space<vmem>>, %arg3: memref<64x1024xbf16, #tpu.memory_space<vmem>>, %arg4: memref<1x1024xf32, #tpu.memory_space<vmem>>, %arg5: memref<1024x1024xbf16, #tpu.memory_space<vmem>>, %arg6: memref<1x1024xf32, #tpu.memory_space<vmem>>, %arg7: memref<1024x128xbf16, #tpu.memory_space<vmem>>, %arg8: memref<1x128xf32, #tpu.memory_space<vmem>>, %arg9: memref<8x128xf32, #tpu.memory_space<vmem>>) attributes {dimension_semantics = [#tpu.dimension_semantics<parallel>], iteration_bounds = array<i64: 1>, scalar_prefetch = 0 : i64, scratch_operands = 0 : i64, tpu.core_type = #tpu.core_type<tc>, window_params = [{transform_indices = @transform_0, window_bounds = array<i64: 8, 1280>}, {pipeline_mode = #tpu.pipeline_mode<synchronous>, transform_indices = @transform_1, window_bounds = array<i64: 1280, 64>}, {pipeline_mode = #tpu.pipeline_mode<synchronous>, transform_indices = @transform_2, window_bounds = array<i64: 64, 1024>}, {pipeline_mode = #tpu.pipeline_mode<synchronous>, transform_indices = @transform_3, window_bounds = array<i64: 1, 1024>}, {pipeline_mode = #tpu.pipeline_mode<synchronous>, transform_indices = @transform_4, window_bounds = array<i64: 1024, 1024>}, {pipeline_mode = #tpu.pipeline_mode<synchronous>, transform_indices = @transform_5, window_bounds = array<i64: 1, 1024>}, {pipeline_mode = #tpu.pipeline_mode<synchronous>, transform_indices = @transform_6, window_bounds = array<i64: 1024, 128>}, {pipeline_mode = #tpu.pipeline_mode<synchronous>, transform_indices = @transform_7, window_bounds = array<i64: 1, 128>}, {transform_indices = @transform_8, window_bounds = array<i64: 8, 128>}]} {
    %c0 = arith.constant 0 : index
    %c0_0 = arith.constant 0 : index
    %0 = vector.load %arg1[%c0, %c0_0] : memref<8x1280xf32, #tpu.memory_space<vmem>>, vector<8x1280xf32>
    %1 = arith.truncf %0 : vector<8x1280xf32> to vector<8x1280xbf16>
    %c0_1 = arith.constant 0 : index
    %c0_2 = arith.constant 0 : index
    %2 = vector.load %arg2[%c0_1, %c0_2] : memref<1280x64xbf16, #tpu.memory_space<vmem>>, vector<1280x64xbf16>
    %cst = arith.constant dense<0.000000e+00> : vector<8x64xf32>
    %3 = tpu.matmul %1, %2, %cst {dimension_numbers = #tpu.dot_dimension_numbers<[1], [0], [0], [1], [0, 0, 1, 1], [], []>} : vector<8x1280xbf16>, vector<1280x64xbf16>, vector<8x64xf32> -> vector<8x64xf32>
    %4 = arith.truncf %3 : vector<8x64xf32> to vector<8x64xbf16>
    %c0_3 = arith.constant 0 : index
    %c0_4 = arith.constant 0 : index
    %5 = vector.load %arg3[%c0_3, %c0_4] : memref<64x1024xbf16, #tpu.memory_space<vmem>>, vector<64x1024xbf16>
    %cst_5 = arith.constant dense<0.000000e+00> : vector<8x1024xf32>
    %6 = tpu.matmul %4, %5, %cst_5 {dimension_numbers = #tpu.dot_dimension_numbers<[1], [0], [0], [1], [0, 0, 1, 1], [], []>} : vector<8x64xbf16>, vector<64x1024xbf16>, vector<8x1024xf32> -> vector<8x1024xf32>
    %c0_6 = arith.constant 0 : index
    %c0_7 = arith.constant 0 : index
    %7 = vector.load %arg4[%c0_6, %c0_7] : memref<1x1024xf32, #tpu.memory_space<vmem>>, vector<1x1024xf32>
    %8 = vector.broadcast %7 : vector<1x1024xf32> to vector<8x1024xf32>
    %9 = arith.addf %6, %8 : vector<8x1024xf32>
    %cst_8 = arith.constant 0.000000e+00 : f32
    %10 = vector.broadcast %cst_8 : f32 to vector<8x1024xf32>
    %11 = arith.maximumf %9, %10 : vector<8x1024xf32>
    %12 = arith.truncf %11 : vector<8x1024xf32> to vector<8x1024xbf16>
    %c0_9 = arith.constant 0 : index
    %c0_10 = arith.constant 0 : index
    %13 = vector.load %arg5[%c0_9, %c0_10] : memref<1024x1024xbf16, #tpu.memory_space<vmem>>, vector<1024x1024xbf16>
    %cst_11 = arith.constant dense<0.000000e+00> : vector<8x1024xf32>
    %14 = tpu.matmul %12, %13, %cst_11 {dimension_numbers = #tpu.dot_dimension_numbers<[1], [0], [0], [1], [0, 0, 1, 1], [], []>} : vector<8x1024xbf16>, vector<1024x1024xbf16>, vector<8x1024xf32> -> vector<8x1024xf32>
    %c0_12 = arith.constant 0 : index
    %c0_13 = arith.constant 0 : index
    %15 = vector.load %arg6[%c0_12, %c0_13] : memref<1x1024xf32, #tpu.memory_space<vmem>>, vector<1x1024xf32>
    %16 = vector.broadcast %15 : vector<1x1024xf32> to vector<8x1024xf32>
    %17 = arith.addf %14, %16 : vector<8x1024xf32>
    %cst_14 = arith.constant 0.000000e+00 : f32
    %18 = vector.broadcast %cst_14 : f32 to vector<8x1024xf32>
    %19 = arith.maximumf %17, %18 : vector<8x1024xf32>
    %20 = arith.truncf %19 : vector<8x1024xf32> to vector<8x1024xbf16>
    %c0_15 = arith.constant 0 : index
    %c0_16 = arith.constant 0 : index
    %21 = vector.load %arg7[%c0_15, %c0_16] : memref<1024x128xbf16, #tpu.memory_space<vmem>>, vector<1024x128xbf16>
    %cst_17 = arith.constant dense<0.000000e+00> : vector<8x128xf32>
    %22 = tpu.matmul %20, %21, %cst_17 {dimension_numbers = #tpu.dot_dimension_numbers<[1], [0], [0], [1], [0, 0, 1, 1], [], []>} : vector<8x1024xbf16>, vector<1024x128xbf16>, vector<8x128xf32> -> vector<8x128xf32>
    %c0_18 = arith.constant 0 : index
    %c0_19 = arith.constant 0 : index
    %23 = vector.load %arg8[%c0_18, %c0_19] : memref<1x128xf32, #tpu.memory_space<vmem>>, vector<1x128xf32>
    %24 = vector.broadcast %23 : vector<1x128xf32> to vector<8x128xf32>
    %25 = arith.addf %22, %24 : vector<8x128xf32>
    %c0_20 = arith.constant 0 : index
    %c0_21 = arith.constant 0 : index
    %26 = vector.load %arg9[%c0_20, %c0_21] : memref<8x128xf32, #tpu.memory_space<vmem>>, vector<8x128xf32>
    tpu.vector_store %arg9[%c0_20, %c0_21], %25 {strides = array<i32>} : memref<8x128xf32, #tpu.memory_space<vmem>>, vector<8x128xf32>,
    return
  }
  func.func @transform_0(%arg0: i32) -> (i32, i32) {
    %c0_i32 = arith.constant 0 : i32
    %c0_i32_0 = arith.constant 0 : i32
    return %arg0, %c0_i32 : i32, i32
  }
  func.func @transform_1(%arg0: i32) -> (i32, i32) {
    %c0_i32 = arith.constant 0 : i32
    %c0_i32_0 = arith.constant 0 : i32
    %c0_i32_1 = arith.constant 0 : i32
    return %c0_i32, %c0_i32_0 : i32, i32
  }
  func.func @transform_2(%arg0: i32) -> (i32, i32) {
    %c0_i32 = arith.constant 0 : i32
    %c0_i32_0 = arith.constant 0 : i32
    %c0_i32_1 = arith.constant 0 : i32
    return %c0_i32, %c0_i32_0 : i32, i32
  }
  func.func @transform_3(%arg0: i32) -> (i32, i32) {
    %c0_i32 = arith.constant 0 : i32
    %c0_i32_0 = arith.constant 0 : i32
    %c0_i32_1 = arith.constant 0 : i32
    return %c0_i32, %c0_i32_0 : i32, i32
  }
  func.func @transform_4(%arg0: i32) -> (i32, i32) {
    %c0_i32 = arith.constant 0 : i32
    %c0_i32_0 = arith.constant 0 : i32
    %c0_i32_1 = arith.constant 0 : i32
    return %c0_i32, %c0_i32_0 : i32, i32
  }
  func.func @transform_5(%arg0: i32) -> (i32, i32) {
    %c0_i32 = arith.constant 0 : i32
    %c0_i32_0 = arith.constant 0 : i32
    %c0_i32_1 = arith.constant 0 : i32
    return %c0_i32, %c0_i32_0 : i32, i32
  }
  func.func @transform_6(%arg0: i32) -> (i32, i32) {
    %c0_i32 = arith.constant 0 : i32
    %c0_i32_0 = arith.constant 0 : i32
    %c0_i32_1 = arith.constant 0 : i32
    return %c0_i32, %c0_i32_0 : i32, i32
  }
  func.func @transform_7(%arg0: i32) -> (i32, i32) {
    %c0_i32 = arith.constant 0 : i32
    %c0_i32_0 = arith.constant 0 : i32
    %c0_i32_1 = arith.constant 0 : i32
    return %c0_i32, %c0_i32_0 : i32, i32
  }
  func.func @transform_8(%arg0: i32) -> (i32, i32) {
    %c0_i32 = arith.constant 0 : i32
    %c0_i32_0 = arith.constant 0 : i32
    return %arg0, %c0_i32 : i32, i32
  }
}

</mosaic_0001>

<llo_original>
// kernel: scatnet2d_forward.3
$region0: #{scatnet2d_forward.3}
  #allocation0 [shape = 'u32[]', space=smem, size = 0x4, offset = 0x4, fixed_abs, tag = 'smem constant byte address 0x4 - core index']
  #allocation1 [shape = 'u32[144,128]{1,0:T(1,128)}', space=vmem, size = 0x12000, scoped, tag = 'internal scratch']
  %s0 = inlined_call_operand.vmem [shape: f32[128,128], index: 0, kind: input, shape index: {}]
  %s1 = inlined_call_operand.vmem [shape: f32[128,128], index: 1, kind: input, shape index: {}]
  %s2 = inlined_call_operand.vmem [shape: f32[128,128], index: 2, kind: output, shape index: {}]
  %s3 = sld [smem:[#allocation0]]
  $region18: #{scatnet2d_forward.3} parent=0
    _
  %s5 = ssub.s32 1, %s3
  %s6 = scalar_select 0, %s5, %s3
  // Predicated region
  $region2: #{scatnet2d_forward.3} parent=0 // pred_check
    _
  $region3: #{scatnet2d_forward.3} parent=0 // pred_check_branch
    %8 = sbr.rel (0) target = $region5
  $region4: #{scatnet2d_forward.3} parent=0 // pred_region
    _
  $region5: #{scatnet2d_forward.3} parent=0 // pred_fallthru
    _
  // Predicated region
  $region6: #{scatnet2d_forward.3} parent=0 // pred_check
    _
  $region7: #{scatnet2d_forward.3} parent=0 // pred_check_branch
    %10 = sbr.rel (0) target = $region9
  $region8: #{scatnet2d_forward.3} parent=0 // pred_region
    _
  $region9: #{scatnet2d_forward.3} parent=0 // pred_fallthru
    _
  %v11 = vld [vmem:[%s0] sm:$0xff]
  %v12 = vld [vmem:[%s0 + $0x8] sm:$0xff]
  %v13 = vld [vmem:[%s0 + $0x10] sm:$0xff]
  %v14 = vld [vmem:[%s0 + $0x18] sm:$0xff]
  %v15 = vld [vmem:[%s0 + $0x20] sm:$0xff]
  %v16 = vld [vmem:[%s0 + $0x28] sm:$0xff]
  %v17 = vld [vmem:[%s0 + $0x30] sm:$0xff]
  %v18 = vld [vmem:[%s0 + $0x38] sm:$0xff]
  %v19 = vld [vmem:[%s0 + $0x40] sm:$0xff]
  %v20 = vld [vmem:[%s0 + $0x48] sm:$0xff]
  %v21 = vld [vmem:[%s0 + $0x50] sm:$0xff]
  %v22 = vld [vmem:[%s0 + $0x58] sm:$0xff]
  %v23 = vld [vmem:[%s0 + $0x60] sm:$0xff]
  %v24 = vld [vmem:[%s0 + $0x68] sm:$0xff]
  %v25 = vld [vmem:[%s0 + $0x70] sm:$0xff]
  %v26 = vld [vmem:[%s0 + $0x78] sm:$0xff]
  %v27 = vld [vmem:[%s1] sm:$0xff]
  %v28 = vld [vmem:[%s1 + $0x8] sm:$0xff]
  %v29 = vld [vmem:[%s1 + $0x10] sm:$0xff]
  %v30 = vld [vmem:[%s1 + $0x18] sm:$0xff]
  %v31 = vld [vmem:[%s1 + $0x20] sm:$0xff]
  %v32 = vld [vmem:[%s1 + $0x28] sm:$0xff]
  %v33 = vld [vmem:[%s1 + $0x30] sm:$0xff]
  %v34 = vld [vmem:[%s1 + $0x38] sm:$0xff]
  %v35 = vld [vmem:[%s1 + $0x40] sm:$0xff]
  %v36 = vld [vmem:[%s1 + $0x48] sm:$0xff]
  %v37 = vld [vmem:[%s1 + $0x50] sm:$0xff]
  %v38 = vld [vmem:[%s1 + $0x58] sm:$0xff]
  %v39 = vld [vmem:[%s1 + $0x60] sm:$0xff]
  %v40 = vld [vmem:[%s1 + $0x68] sm:$0xff]
  %v41 = vld [vmem:[%s1 + $0x70] sm:$0xff]
  %v42 = vld [vmem:[%s1 + $0x78] sm:$0xff]
  %v43 = vmul.f32 %v11, %v11
  %v44 = vmul.f32 %v12, %v12
  %v45 = vmul.f32 %v13, %v13
  %v46 = vmul.f32 %v14, %v14
  %v47 = vmul.f32 %v15, %v15
  %v48 = vmul.f32 %v16, %v16
  %v49 = vmul.f32 %v17, %v17
  %v50 = vmul.f32 %v18, %v18
  %v51 = vmul.f32 %v19, %v19
  %v52 = vmul.f32 %v20, %v20
  %v53 = vmul.f32 %v21, %v21
  %v54 = vmul.f32 %v22, %v22
  %v55 = vmul.f32 %v23, %v23
  %v56 = vmul.f32 %v24, %v24
  %v57 = vmul.f32 %v25, %v25
  %v58 = vmul.f32 %v26, %v26
  %v59 = vmul.f32 %v27, %v27
  %v60 = vmul.f32 %v28, %v28
  %v61 = vmul.f32 %v29, %v29
  %v62 = vmul.f32 %v30, %v30
  %v63 = vmul.f32 %v31, %v31
  %v64 = vmul.f32 %v32, %v32
  %v65 = vmul.f32 %v33, %v33
  %v66 = vmul.f32 %v34, %v34
  %v67 = vmul.f32 %v35, %v35
  %v68 = vmul.f32 %v36, %v36
  %v69 = vmul.f32 %v37, %v37
  %v70 = vmul.f32 %v38, %v38
  %v71 = vmul.f32 %v39, %v39
  %v72 = vmul.f32 %v40, %v40
  %v73 = vmul.f32 %v41, %v41
  %v74 = vmul.f32 %v42, %v42
  %v75 = vadd.f32 %v43, %v59
  %v76 = vadd.f32 %v44, %v60
  %v77 = vadd.f32 %v45, %v61
  %v78 = vadd.f32 %v46, %v62
  %v79 = vadd.f32 %v47, %v63
  %v80 = vadd.f32 %v48, %v64
  %v81 = vadd.f32 %v49, %v65
  %v82 = vadd.f32 %v50, %v66
  %v83 = vadd.f32 %v51, %v67
  %v84 = vadd.f32 %v52, %v68
  %v85 = vadd.f32 %v53, %v69
  %v86 = vadd.f32 %v54, %v70
  %v87 = vadd.f32 %v55, %v71
  %v88 = vadd.f32 %v56, %v72
  %v89 = vadd.f32 %v57, %v73
  %v90 = vadd.f32 %v58, %v74
  %v91 = vrsqrt.pop %v75
  %v92 = vmul.f32 %v75, %v91
  %vm93 = vcmp.eq.f32.partialorder %v75, inf
  %v94 = vsel %vm93, %v75, %v92
  %vm95 = vcmp.eq.f32.partialorder %v75, 0.0
  %v96 = vand.u32 %v75, 2147483648
  %v97 = vsel %vm95, %v96, %v94
  %v98 = vrsqrt.pop %v76
  %v99 = vmul.f32 %v76, %v98
  %vm100 = vcmp.eq.f32.partialorder %v76, inf
  %v101 = vsel %vm100, %v76, %v99
  %vm102 = vcmp.eq.f32.partialorder %v76, 0.0
  %v103 = vand.u32 %v76, 2147483648
  %v104 = vsel %vm102, %v103, %v101
  %v105 = vrsqrt.pop %v77
  %v106 = vmul.f32 %v77, %v105
  %vm107 = vcmp.eq.f32.partialorder %v77, inf
  %v108 = vsel %vm107, %v77, %v106
  %vm109 = vcmp.eq.f32.partialorder %v77, 0.0
  %v110 = vand.u32 %v77, 2147483648
  %v111 = vsel %vm109, %v110, %v108
  %v112 = vrsqrt.pop %v78
  %v113 = vmul.f32 %v78, %v112
  %vm114 = vcmp.eq.f32.partialorder %v78, inf
  %v115 = vsel %vm114, %v78, %v113
  %vm116 = vcmp.eq.f32.partialorder %v78, 0.0
  %v117 = vand.u32 %v78, 2147483648
  %v118 = vsel %vm116, %v117, %v115
  %v119 = vrsqrt.pop %v79
  %v120 = vmul.f32 %v79, %v119
  %vm121 = vcmp.eq.f32.partialorder %v79, inf
  %v122 = vsel %vm121, %v79, %v120
  %vm123 = vcmp.eq.f32.partialorder %v79, 0.0
  %v124 = vand.u32 %v79, 2147483648
  %v125 = vsel %vm123, %v124, %v122
  %v126 = vrsqrt.pop %v80
  %v127 = vmul.f32 %v80, %v126
  %vm128 = vcmp.eq.f32.partialorder %v80, inf
  %v129 = vsel %vm128, %v80, %v127
  %vm130 = vcmp.eq.f32.partialorder %v80, 0.0
  %v131 = vand.u32 %v80, 2147483648
  %v132 = vsel %vm130, %v131, %v129
  %v133 = vrsqrt.pop %v81
  %v134 = vmul.f32 %v81, %v133
  %vm135 = vcmp.eq.f32.partialorder %v81, inf
  %v136 = vsel %vm135, %v81, %v134
  %vm137 = vcmp.eq.f32.partialorder %v81, 0.0
  %v138 = vand.u32 %v81, 2147483648
  %v139 = vsel %vm137, %v138, %v136
  %v140 = vrsqrt.pop %v82
  %v141 = vmul.f32 %v82, %v140
  %vm142 = vcmp.eq.f32.partialorder %v82, inf
  %v143 = vsel %vm142, %v82, %v141
  %vm144 = vcmp.eq.f32.partialorder %v82, 0.0
  %v145 = vand.u32 %v82, 2147483648
  %v146 = vsel %vm144, %v145, %v143
  %v147 = vrsqrt.pop %v83
  %v148 = vmul.f32 %v83, %v147
  %vm149 = vcmp.eq.f32.partialorder %v83, inf
  %v150 = vsel %vm149, %v83, %v148
  %vm151 = vcmp.eq.f32.partialorder %v83, 0.0
  %v152 = vand.u32 %v83, 2147483648
  %v153 = vsel %vm151, %v152, %v150
  %v154 = vrsqrt.pop %v84
  %v155 = vmul.f32 %v84, %v154
  %vm156 = vcmp.eq.f32.partialorder %v84, inf
  %v157 = vsel %vm156, %v84, %v155
  %vm158 = vcmp.eq.f32.partialorder %v84, 0.0
  %v159 = vand.u32 %v84, 2147483648
  %v160 = vsel %vm158, %v159, %v157
  %v161 = vrsqrt.pop %v85
  %v162 = vmul.f32 %v85, %v161
  %vm163 = vcmp.eq.f32.partialorder %v85, inf
  %v164 = vsel %vm163, %v85, %v162
  %vm165 = vcmp.eq.f32.partialorder %v85, 0.0
  %v166 = vand.u32 %v85, 2147483648
  %v167 = vsel %vm165, %v166, %v164
  %v168 = vrsqrt.pop %v86
  %v169 = vmul.f32 %v86, %v168
  %vm170 = vcmp.eq.f32.partialorder %v86, inf
  %v171 = vsel %vm170, %v86, %v169
  %vm172 = vcmp.eq.f32.partialorder %v86, 0.0
  %v173 = vand.u32 %v86, 2147483648
  %v174 = vsel %vm172, %v173, %v171
  %v175 = vrsqrt.pop %v87
  %v176 = vmul.f32 %v87, %v175
  %vm177 = vcmp.eq.f32.partialorder %v87, inf
  %v178 = vsel %vm177, %v87, %v176
  %vm179 = vcmp.eq.f32.partialorder %v87, 0.0
  %v180 = vand.u32 %v87, 2147483648
  %v181 = vsel %vm179, %v180, %v178
  %v182 = vrsqrt.pop %v88
  %v183 = vmul.f32 %v88, %v182
  %vm184 = vcmp.eq.f32.partialorder %v88, inf
  %v185 = vsel %vm184, %v88, %v183
  %vm186 = vcmp.eq.f32.partialorder %v88, 0.0
  %v187 = vand.u32 %v88, 2147483648
  %v188 = vsel %vm186, %v187, %v185
  %v189 = vrsqrt.pop %v89
  %v190 = vmul.f32 %v89, %v189
  %vm191 = vcmp.eq.f32.partialorder %v89, inf
  %v192 = vsel %vm191, %v89, %v190
  %vm193 = vcmp.eq.f32.partialorder %v89, 0.0
  %v194 = vand.u32 %v89, 2147483648
  %v195 = vsel %vm193, %v194, %v192
  %v196 = vrsqrt.pop %v90
  %v197 = vmul.f32 %v90, %v196
  %vm198 = vcmp.eq.f32.partialorder %v90, inf
  %v199 = vsel %vm198, %v90, %v197
  %vm200 = vcmp.eq.f32.partialorder %v90, 0.0
  %v201 = vand.u32 %v90, 2147483648
  %v202 = vsel %vm200, %v201, %v199
  %203 = vst [vmem:[%s2] sm:$0xff] %v97
  %204 = vst [vmem:[%s2 + $0x8] sm:$0xff] %v104
  %205 = vst [vmem:[%s2 + $0x10] sm:$0xff] %v111
  %206 = vst [vmem:[%s2 + $0x18] sm:$0xff] %v118
  %207 = vst [vmem:[%s2 + $0x20] sm:$0xff] %v125
  %208 = vst [vmem:[%s2 + $0x28] sm:$0xff] %v132
  %209 = vst [vmem:[%s2 + $0x30] sm:$0xff] %v139
  %210 = vst [vmem:[%s2 + $0x38] sm:$0xff] %v146
  %211 = vst [vmem:[%s2 + $0x40] sm:$0xff] %v153
  %212 = vst [vmem:[%s2 + $0x48] sm:$0xff] %v160
  %213 = vst [vmem:[%s2 + $0x50] sm:$0xff] %v167
  %214 = vst [vmem:[%s2 + $0x58] sm:$0xff] %v174
  %215 = vst [vmem:[%s2 + $0x60] sm:$0xff] %v181
  %216 = vst [vmem:[%s2 + $0x68] sm:$0xff] %v188
  %217 = vst [vmem:[%s2 + $0x70] sm:$0xff] %v195
  %218 = vst [vmem:[%s2 + $0x78] sm:$0xff] %v202
  // Predicated region
  $region10: #{scatnet2d_forward.3} parent=0 // pred_check
    _
  $region11: #{scatnet2d_forward.3} parent=0 // pred_check_branch
    %220 = sbr.rel (0) target = $region13
  $region12: #{scatnet2d_forward.3} parent=0 // pred_region
    _
  $region13: #{scatnet2d_forward.3} parent=0 // pred_fallthru
    _
  // Predicated region
  $region14: #{scatnet2d_forward.3} parent=0 // pred_check
    _
  $region15: #{scatnet2d_forward.3} parent=0 // pred_check_branch
    %222 = sbr.rel (0) target = $region17
  $region16: #{scatnet2d_forward.3} parent=0 // pred_region
    _
  $region17: #{scatnet2d_forward.3} parent=0 // pred_fallthru
    _

// kernel: scatnet2d_forward.4
$region0: #{scatnet2d_forward.4}
  #allocation0 [shape = 'u32[]', space=smem, size = 0x4, offset = 0x4, fixed_abs, tag = 'smem constant byte address 0x4 - core index']
  #allocation1 [shape = 'u32[144,128]{1,0:T(1,128)}', space=vmem, size = 0x12000, scoped, tag = 'internal scratch']
  %s0 = inlined_call_operand.vmem [shape: f32[328,128], index: 0, kind: input, shape index: {}]
  %s1 = inlined_call_operand.vmem [shape: f32[328,128], index: 1, kind: input, shape index: {}]
  %s2 = inlined_call_operand.vmem [shape: f32[328,128], index: 2, kind: output, shape index: {}]
  %s3 = sld [smem:[#allocation0]]
  $region18: #{scatnet2d_forward.4} parent=0
    _
  %s5 = ssub.s32 1, %s3
  %s6 = scalar_select 0, %s5, %s3
  // Predicated region
  $region2: #{scatnet2d_forward.4} parent=0 // pred_check
    _
  $region3: #{scatnet2d_forward.4} parent=0 // pred_check_branch
    %8 = sbr.rel (0) target = $region5
  $region4: #{scatnet2d_forward.4} parent=0 // pred_region
    _
  $region5: #{scatnet2d_forward.4} parent=0 // pred_fallthru
    _
  // Predicated region
  $region6: #{scatnet2d_forward.4} parent=0 // pred_check
    _
  $region7: #{scatnet2d_forward.4} parent=0 // pred_check_branch
    %10 = sbr.rel (0) target = $region9
  $region8: #{scatnet2d_forward.4} parent=0 // pred_region
    _
  $region9: #{scatnet2d_forward.4} parent=0 // pred_fallthru
    _
  %v11 = vld [vmem:[%s0] sm:$0xff]
  %v12 = vld [vmem:[%s0 + $0x8] sm:$0xff]
  %v13 = vld [vmem:[%s0 + $0x10] sm:$0xff]
  %v14 = vld [vmem:[%s0 + $0x18] sm:$0xff]
  %v15 = vld [vmem:[%s0 + $0x20] sm:$0xff]
  %v16 = vld [vmem:[%s0 + $0x28] sm:$0xff]
  %v17 = vld [vmem:[%s0 + $0x30] sm:$0xff]
  %v18 = vld [vmem:[%s0 + $0x38] sm:$0xff]
  %v19 = vld [vmem:[%s0 + $0x40] sm:$0xff]
  %v20 = vld [vmem:[%s0 + $0x48] sm:$0xff]
  %v21 = vld [vmem:[%s0 + $0x50] sm:$0xff]
  %v22 = vld [vmem:[%s0 + $0x58] sm:$0xff]
  %v23 = vld [vmem:[%s0 + $0x60] sm:$0xff]
  %v24 = vld [vmem:[%s0 + $0x68] sm:$0xff]
  %v25 = vld [vmem:[%s0 + $0x70] sm:$0xff]
  %v26 = vld [vmem:[%s0 + $0x78] sm:$0xff]
  %v27 = vld [vmem:[%s0 + $0x80] sm:$0xff]
  %v28 = vld [vmem:[%s0 + $0x88] sm:$0xff]
  %v29 = vld [vmem:[%s0 + $0x90] sm:$0xff]
  %v30 = vld [vmem:[%s0 + $0x98] sm:$0xff]
  %v31 = vld [vmem:[%s0 + $0xa0] sm:$0xff]
  %v32 = vld [vmem:[%s0 + $0xa8] sm:$0xff]
  %v33 = vld [vmem:[%s0 + $0xb0] sm:$0xff]
  %v34 = vld [vmem:[%s0 + $0xb8] sm:$0xff]
  %v35 = vld [vmem:[%s0 + $0xc0] sm:$0xff]
  %v36 = vld [vmem:[%s0 + $0xc8] sm:$0xff]
  %v37 = vld [vmem:[%s0 + $0xd0] sm:$0xff]
  %v38 = vld [vmem:[%s0 + $0xd8] sm:$0xff]
  %v39 = vld [vmem:[%s0 + $0xe0] sm:$0xff]
  %v40 = vld [vmem:[%s0 + $0xe8] sm:$0xff]
  %v41 = vld [vmem:[%s0 + $0xf0] sm:$0xff]
  %v42 = vld [vmem:[%s0 + $0xf8] sm:$0xff]
  %v43 = vld [vmem:[%s0 + $0x100] sm:$0xff]
  %v44 = vld [vmem:[%s0 + $0x108] sm:$0xff]
  %v45 = vld [vmem:[%s0 + $0x110] sm:$0xff]
  %v46 = vld [vmem:[%s0 + $0x118] sm:$0xff]
  %v47 = vld [vmem:[%s0 + $0x120] sm:$0xff]
  %v48 = vld [vmem:[%s0 + $0x128] sm:$0xff]
  %v49 = vld [vmem:[%s0 + $0x130] sm:$0xff]
  %v50 = vld [vmem:[%s0 + $0x138] sm:$0xff]
  %v51 = vld [vmem:[%s0 + $0x140] sm:$0xff]
  %v52 = vld [vmem:[%s1] sm:$0xff]
  %v53 = vld [vmem:[%s1 + $0x8] sm:$0xff]
  %v54 = vld [vmem:[%s1 + $0x10] sm:$0xff]
  %v55 = vld [vmem:[%s1 + $0x18] sm:$0xff]
  %v56 = vld [vmem:[%s1 + $0x20] sm:$0xff]
  %v57 = vld [vmem:[%s1 + $0x28] sm:$0xff]
  %v58 = vld [vmem:[%s1 + $0x30] sm:$0xff]
  %v59 = vld [vmem:[%s1 + $0x38] sm:$0xff]
  %v60 = vld [vmem:[%s1 + $0x40] sm:$0xff]
  %v61 = vld [vmem:[%s1 + $0x48] sm:$0xff]
  %v62 = vld [vmem:[%s1 + $0x50] sm:$0xff]
  %v63 = vld [vmem:[%s1 + $0x58] sm:$0xff]
  %v64 = vld [vmem:[%s1 + $0x60] sm:$0xff]
  %v65 = vld [vmem:[%s1 + $0x68] sm:$0xff]
  %v66 = vld [vmem:[%s1 + $0x70] sm:$0xff]
  %v67 = vld [vmem:[%s1 + $0x78] sm:$0xff]
  %v68 = vld [vmem:[%s1 + $0x80] sm:$0xff]
  %v69 = vld [vmem:[%s1 + $0x88] sm:$0xff]
  %v70 = vld [vmem:[%s1 + $0x90] sm:$0xff]
  %v71 = vld [vmem:[%s1 + $0x98] sm:$0xff]
  %v72 = vld [vmem:[%s1 + $0xa0] sm:$0xff]
  %v73 = vld [vmem:[%s1 + $0xa8] sm:$0xff]
  %v74 = vld [vmem:[%s1 + $0xb0] sm:$0xff]
  %v75 = vld [vmem:[%s1 + $0xb8] sm:$0xff]
  %v76 = vld [vmem:[%s1 + $0xc0] sm:$0xff]
  %v77 = vld [vmem:[%s1 + $0xc8] sm:$0xff]
  %v78 = vld [vmem:[%s1 + $0xd0] sm:$0xff]
  %v79 = vld [vmem:[%s1 + $0xd8] sm:$0xff]
  %v80 = vld [vmem:[%s1 + $0xe0] sm:$0xff]
  %v81 = vld [vmem:[%s1 + $0xe8] sm:$0xff]
  %v82 = vld [vmem:[%s1 + $0xf0] sm:$0xff]
  %v83 = vld [vmem:[%s1 + $0xf8] sm:$0xff]
  %v84 = vld [vmem:[%s1 + $0x100] sm:$0xff]
  %v85 = vld [vmem:[%s1 + $0x108] sm:$0xff]
  %v86 = vld [vmem:[%s1 + $0x110] sm:$0xff]
  %v87 = vld [vmem:[%s1 + $0x118] sm:$0xff]
  %v88 = vld [vmem:[%s1 + $0x120] sm:$0xff]
  %v89 = vld [vmem:[%s1 + $0x128] sm:$0xff]
  %v90 = vld [vmem:[%s1 + $0x130] sm:$0xff]
  %v91 = vld [vmem:[%s1 + $0x138] sm:$0xff]
  %v92 = vld [vmem:[%s1 + $0x140] sm:$0xff]
  %v93 = vmul.f32 %v11, %v11
  %v94 = vmul.f32 %v12, %v12
  %v95 = vmul.f32 %v13, %v13
  %v96 = vmul.f32 %v14, %v14
  %v97 = vmul.f32 %v15, %v15
  %v98 = vmul.f32 %v16, %v16
  %v99 = vmul.f32 %v17, %v17
  %v100 = vmul.f32 %v18, %v18
  %v101 = vmul.f32 %v19, %v19
  %v102 = vmul.f32 %v20, %v20
  %v103 = vmul.f32 %v21, %v21
  %v104 = vmul.f32 %v22, %v22
  %v105 = vmul.f32 %v23, %v23
  %v106 = vmul.f32 %v24, %v24
  %v107 = vmul.f32 %v25, %v25
  %v108 = vmul.f32 %v26, %v26
  %v109 = vmul.f32 %v27, %v27
  %v110 = vmul.f32 %v28, %v28
  %v111 = vmul.f32 %v29, %v29
  %v112 = vmul.f32 %v30, %v30
  %v113 = vmul.f32 %v31, %v31
  %v114 = vmul.f32 %v32, %v32
  %v115 = vmul.f32 %v33, %v33
  %v116 = vmul.f32 %v34, %v34
  %v117 = vmul.f32 %v35, %v35
  %v118 = vmul.f32 %v36, %v36
  %v119 = vmul.f32 %v37, %v37
  %v120 = vmul.f32 %v38, %v38
  %v121 = vmul.f32 %v39, %v39
  %v122 = vmul.f32 %v40, %v40
  %v123 = vmul.f32 %v41, %v41
  %v124 = vmul.f32 %v42, %v42
  %v125 = vmul.f32 %v43, %v43
  %v126 = vmul.f32 %v44, %v44
  %v127 = vmul.f32 %v45, %v45
  %v128 = vmul.f32 %v46, %v46
  %v129 = vmul.f32 %v47, %v47
  %v130 = vmul.f32 %v48, %v48
  %v131 = vmul.f32 %v49, %v49
  %v132 = vmul.f32 %v50, %v50
  %v133 = vmul.f32 %v51, %v51
  %v134 = vmul.f32 %v52, %v52
  %v135 = vmul.f32 %v53, %v53
  %v136 = vmul.f32 %v54, %v54
  %v137 = vmul.f32 %v55, %v55
  %v138 = vmul.f32 %v56, %v56
  %v139 = vmul.f32 %v57, %v57
  %v140 = vmul.f32 %v58, %v58
  %v141 = vmul.f32 %v59, %v59
  %v142 = vmul.f32 %v60, %v60
  %v143 = vmul.f32 %v61, %v61
  %v144 = vmul.f32 %v62, %v62
  %v145 = vmul.f32 %v63, %v63
  %v146 = vmul.f32 %v64, %v64
  %v147 = vmul.f32 %v65, %v65
  %v148 = vmul.f32 %v66, %v66
  %v149 = vmul.f32 %v67, %v67
  %v150 = vmul.f32 %v68, %v68
  %v151 = vmul.f32 %v69, %v69
  %v152 = vmul.f32 %v70, %v70
  %v153 = vmul.f32 %v71, %v71
  %v154 = vmul.f32 %v72, %v72
  %v155 = vmul.f32 %v73, %v73
  %v156 = vmul.f32 %v74, %v74
  %v157 = vmul.f32 %v75, %v75
  %v158 = vmul.f32 %v76, %v76
  %v159 = vmul.f32 %v77, %v77
  %v160 = vmul.f32 %v78, %v78
  %v161 = vmul.f32 %v79, %v79
  %v162 = vmul.f32 %v80, %v80
  %v163 = vmul.f32 %v81, %v81
  %v164 = vmul.f32 %v82, %v82
  %v165 = vmul.f32 %v83, %v83
  %v166 = vmul.f32 %v84, %v84
  %v167 = vmul.f32 %v85, %v85
  %v168 = vmul.f32 %v86, %v86
  %v169 = vmul.f32 %v87, %v87
  %v170 = vmul.f32 %v88, %v88
  %v171 = vmul.f32 %v89, %v89
  %v172 = vmul.f32 %v90, %v90
  %v173 = vmul.f32 %v91, %v91
  %v174 = vmul.f32 %v92, %v92
  %v175 = vadd.f32 %v93, %v134
  %v176 = vadd.f32 %v94, %v135
  %v177 = vadd.f32 %v95, %v136
  %v178 = vadd.f32 %v96, %v137
  %v179 = vadd.f32 %v97, %v138
  %v180 = vadd.f32 %v98, %v139
  %v181 = vadd.f32 %v99, %v140
  %v182 = vadd.f32 %v100, %v141
  %v183 = vadd.f32 %v101, %v142
  %v184 = vadd.f32 %v102, %v143
  %v185 = vadd.f32 %v103, %v144
  %v186 = vadd.f32 %v104, %v145
  %v187 = vadd.f32 %v105, %v146
  %v188 = vadd.f32 %v106, %v147
  %v189 = vadd.f32 %v107, %v148
  %v190 = vadd.f32 %v108, %v149
  %v191 = vadd.f32 %v109, %v150
  %v192 = vadd.f32 %v110, %v151
  %v193 = vadd.f32 %v111, %v152
  %v194 = vadd.f32 %v112, %v153
  %v195 = vadd.f32 %v113, %v154
  %v196 = vadd.f32 %v114, %v155
  %v197 = vadd.f32 %v115, %v156
  %v198 = vadd.f32 %v116, %v157
  %v199 = vadd.f32 %v117, %v158
  %v200 = vadd.f32 %v118, %v159
  %v201 = vadd.f32 %v119, %v160
  %v202 = vadd.f32 %v120, %v161
  %v203 = vadd.f32 %v121, %v162
  %v204 = vadd.f32 %v122, %v163
  %v205 = vadd.f32 %v123, %v164
  %v206 = vadd.f32 %v124, %v165
  %v207 = vadd.f32 %v125, %v166
  %v208 = vadd.f32 %v126, %v167
  %v209 = vadd.f32 %v127, %v168
  %v210 = vadd.f32 %v128, %v169
  %v211 = vadd.f32 %v129, %v170
  %v212 = vadd.f32 %v130, %v171
  %v213 = vadd.f32 %v131, %v172
  %v214 = vadd.f32 %v132, %v173
  %v215 = vadd.f32 %v133, %v174
  %v216 = vrsqrt.pop %v175
  %v217 = vmul.f32 %v175, %v216
  %vm218 = vcmp.eq.f32.partialorder %v175, inf
  %v219 = vsel %vm218, %v175, %v217
  %vm220 = vcmp.eq.f32.partialorder %v175, 0.0
  %v221 = vand.u32 %v175, 2147483648
  %v222 = vsel %vm220, %v221, %v219
  %v223 = vrsqrt.pop %v176
  %v224 = vmul.f32 %v176, %v223
  %vm225 = vcmp.eq.f32.partialorder %v176, inf
  %v226 = vsel %vm225, %v176, %v224
  %vm227 = vcmp.eq.f32.partialorder %v176, 0.0
  %v228 = vand.u32 %v176, 2147483648
  %v229 = vsel %vm227, %v228, %v226
  %v230 = vrsqrt.pop %v177
  %v231 = vmul.f32 %v177, %v230
  %vm232 = vcmp.eq.f32.partialorder %v177, inf
  %v233 = vsel %vm232, %v177, %v231
  %vm234 = vcmp.eq.f32.partialorder %v177, 0.0
  %v235 = vand.u32 %v177, 2147483648
  %v236 = vsel %vm234, %v235, %v233
  %v237 = vrsqrt.pop %v178
  %v238 = vmul.f32 %v178, %v237
  %vm239 = vcmp.eq.f32.partialorder %v178, inf
  %v240 = vsel %vm239, %v178, %v238
  %vm241 = vcmp.eq.f32.partialorder %v178, 0.0
  %v242 = vand.u32 %v178, 2147483648
  %v243 = vsel %vm241, %v242, %v240
  %v244 = vrsqrt.pop %v179
  %v245 = vmul.f32 %v179, %v244
  %vm246 = vcmp.eq.f32.partialorder %v179, inf
  %v247 = vsel %vm246, %v179, %v245
  %vm248 = vcmp.eq.f32.partialorder %v179, 0.0
  %v249 = vand.u32 %v179, 2147483648
  %v250 = vsel %vm248, %v249, %v247
  %v251 = vrsqrt.pop %v180
  %v252 = vmul.f32 %v180, %v251
  %vm253 = vcmp.eq.f32.partialorder %v180, inf
  %v254 = vsel %vm253, %v180, %v252
  %vm255 = vcmp.eq.f32.partialorder %v180, 0.0
  %v256 = vand.u32 %v180, 2147483648
  %v257 = vsel %vm255, %v256, %v254
  %v258 = vrsqrt.pop %v181
  %v259 = vmul.f32 %v181, %v258
  %vm260 = vcmp.eq.f32.partialorder %v181, inf
  %v261 = vsel %vm260, %v181, %v259
  %vm262 = vcmp.eq.f32.partialorder %v181, 0.0
  %v263 = vand.u32 %v181, 2147483648
  %v264 = vsel %vm262, %v263, %v261
  %v265 = vrsqrt.pop %v182
  %v266 = vmul.f32 %v182, %v265
  %vm267 = vcmp.eq.f32.partialorder %v182, inf
  %v268 = vsel %vm267, %v182, %v266
  %vm269 = vcmp.eq.f32.partialorder %v182, 0.0
  %v270 = vand.u32 %v182, 2147483648
  %v271 = vsel %vm269, %v270, %v268
  %v272 = vrsqrt.pop %v183
  %v273 = vmul.f32 %v183, %v272
  %vm274 = vcmp.eq.f32.partialorder %v183, inf
  %v275 = vsel %vm274, %v183, %v273
  %vm276 = vcmp.eq.f32.partialorder %v183, 0.0
  %v277 = vand.u32 %v183, 2147483648
  %v278 = vsel %vm276, %v277, %v275
  %v279 = vrsqrt.pop %v184
  %v280 = vmul.f32 %v184, %v279
  %vm281 = vcmp.eq.f32.partialorder %v184, inf
  %v282 = vsel %vm281, %v184, %v280
  %vm283 = vcmp.eq.f32.partialorder %v184, 0.0
  %v284 = vand.u32 %v184, 2147483648
  %v285 = vsel %vm283, %v284, %v282
  %v286 = vrsqrt.pop %v185
  %v287 = vmul.f32 %v185, %v286
  %vm288 = vcmp.eq.f32.partialorder %v185, inf
  %v289 = vsel %vm288, %v185, %v287
  %vm290 = vcmp.eq.f32.partialorder %v185, 0.0
  %v291 = vand.u32 %v185, 2147483648
  %v292 = vsel %vm290, %v291, %v289
  %v293 = vrsqrt.pop %v186
  %v294 = vmul.f32 %v186, %v293
  %vm295 = vcmp.eq.f32.partialorder %v186, inf
  %v296 = vsel %vm295, %v186, %v294
  %vm297 = vcmp.eq.f32.partialorder %v186, 0.0
  %v298 = vand.u32 %v186, 2147483648
  %v299 = vsel %vm297, %v298, %v296
  %v300 = vrsqrt.pop %v187
  %v301 = vmul.f32 %v187, %v300
  %vm302 = vcmp.eq.f32.partialorder %v187, inf
  %v303 = vsel %vm302, %v187, %v301
  %vm304 = vcmp.eq.f32.partialorder %v187, 0.0
  %v305 = vand.u32 %v187, 2147483648
  %v306 = vsel %vm304, %v305, %v303
  %v307 = vrsqrt.pop %v188
  %v308 = vmul.f32 %v188, %v307
  %vm309 = vcmp.eq.f32.partialorder %v188, inf
  %v310 = vsel %vm309, %v188, %v308
  %vm311 = vcmp.eq.f32.partialorder %v188, 0.0
  %v312 = vand.u32 %v188, 2147483648
  %v313 = vsel %vm311, %v312, %v310
  %v314 = vrsqrt.pop %v189
  %v315 = vmul.f32 %v189, %v314
  %vm316 = vcmp.eq.f32.partialorder %v189, inf
  %v317 = vsel %vm316, %v189, %v315
  %vm318 = vcmp.eq.f32.partialorder %v189, 0.0
  %v319 = vand.u32 %v189, 2147483648
  %v320 = vsel %vm318, %v319, %v317
  %v321 = vrsqrt.pop %v190
  %v322 = vmul.f32 %v190, %v321
  %vm323 = vcmp.eq.f32.partialorder %v190, inf
  %v324 = vsel %vm323, %v190, %v322
  %vm325 = vcmp.eq.f32.partialorder %v190, 0.0
  %v326 = vand.u32 %v190, 2147483648
  %v327 = vsel %vm325, %v326, %v324
  %v328 = vrsqrt.pop %v191
  %v329 = vmul.f32 %v191, %v328
  %vm330 = vcmp.eq.f32.partialorder %v191, inf
  %v331 = vsel %vm330, %v191, %v329
  %vm332 = vcmp.eq.f32.partialorder %v191, 0.0
  %v333 = vand.u32 %v191, 2147483648
  %v334 = vsel %vm332, %v333, %v331
  %v335 = vrsqrt.pop %v192
  %v336 = vmul.f32 %v192, %v335
  %vm337 = vcmp.eq.f32.partialorder %v192, inf
  %v338 = vsel %vm337, %v192, %v336
  %vm339 = vcmp.eq.f32.partialorder %v192, 0.0
  %v340 = vand.u32 %v192, 2147483648
  %v341 = vsel %vm339, %v340, %v338
  %v342 = vrsqrt.pop %v193
  %v343 = vmul.f32 %v193, %v342
  %vm344 = vcmp.eq.f32.partialorder %v193, inf
  %v345 = vsel %vm344, %v193, %v343
  %vm346 = vcmp.eq.f32.partialorder %v193, 0.0
  %v347 = vand.u32 %v193, 2147483648
  %v348 = vsel %vm346, %v347, %v345
  %v349 = vrsqrt.pop %v194
  %v350 = vmul.f32 %v194, %v349
  %vm351 = vcmp.eq.f32.partialorder %v194, inf
  %v352 = vsel %vm351, %v194, %v350
  %vm353 = vcmp.eq.f32.partialorder %v194, 0.0
  %v354 = vand.u32 %v194, 2147483648
  %v355 = vsel %vm353, %v354, %v352
  %v356 = vrsqrt.pop %v195
  %v357 = vmul.f32 %v195, %v356
  %vm358 = vcmp.eq.f32.partialorder %v195, inf
  %v359 = vsel %vm358, %v195, %v357
  %vm360 = vcmp.eq.f32.partialorder %v195, 0.0
  %v361 = vand.u32 %v195, 2147483648
  %v362 = vsel %vm360, %v361, %v359
  %v363 = vrsqrt.pop %v196
  %v364 = vmul.f32 %v196, %v363
  %vm365 = vcmp.eq.f32.partialorder %v196, inf
  %v366 = vsel %vm365, %v196, %v364
  %vm367 = vcmp.eq.f32.partialorder %v196, 0.0
  %v368 = vand.u32 %v196, 2147483648
  %v369 = vsel %vm367, %v368, %v366
  %v370 = vrsqrt.pop %v197
  %v371 = vmul.f32 %v197, %v370
  %vm372 = vcmp.eq.f32.partialorder %v197, inf
  %v373 = vsel %vm372, %v197, %v371
  %vm374 = vcmp.eq.f32.partialorder %v197, 0.0
  %v375 = vand.u32 %v197, 2147483648
  %v376 = vsel %vm374, %v375, %v373
  %v377 = vrsqrt.pop %v198
  %v378 = vmul.f32 %v198, %v377
  %vm379 = vcmp.eq.f32.partialorder %v198, inf
  %v380 = vsel %vm379, %v198, %v378
  %vm381 = vcmp.eq.f32.partialorder %v198, 0.0
  %v382 = vand.u32 %v198, 2147483648
  %v383 = vsel %vm381, %v382, %v380
  %v384 = vrsqrt.pop %v199
  %v385 = vmul.f32 %v199, %v384
  %vm386 = vcmp.eq.f32.partialorder %v199, inf
  %v387 = vsel %vm386, %v199, %v385
  %vm388 = vcmp.eq.f32.partialorder %v199, 0.0
  %v389 = vand.u32 %v199, 2147483648
  %v390 = vsel %vm388, %v389, %v387
  %v391 = vrsqrt.pop %v200
  %v392 = vmul.f32 %v200, %v391
  %vm393 = vcmp.eq.f32.partialorder %v200, inf
  %v394 = vsel %vm393, %v200, %v392
  %vm395 = vcmp.eq.f32.partialorder %v200, 0.0
  %v396 = vand.u32 %v200, 2147483648
  %v397 = vsel %vm395, %v396, %v394
  %v398 = vrsqrt.pop %v201
  %v399 = vmul.f32 %v201, %v398
  %vm400 = vcmp.eq.f32.partialorder %v201, inf
  %v401 = vsel %vm400, %v201, %v399
  %vm402 = vcmp.eq.f32.partialorder %v201, 0.0
  %v403 = vand.u32 %v201, 2147483648
  %v404 = vsel %vm402, %v403, %v401
  %v405 = vrsqrt.pop %v202
  %v406 = vmul.f32 %v202, %v405
  %vm407 = vcmp.eq.f32.partialorder %v202, inf
  %v408 = vsel %vm407, %v202, %v406
  %vm409 = vcmp.eq.f32.partialorder %v202, 0.0
  %v410 = vand.u32 %v202, 2147483648
  %v411 = vsel %vm409, %v410, %v408
  %v412 = vrsqrt.pop %v203
  %v413 = vmul.f32 %v203, %v412
  %vm414 = vcmp.eq.f32.partialorder %v203, inf
  %v415 = vsel %vm414, %v203, %v413
  %vm416 = vcmp.eq.f32.partialorder %v203, 0.0
  %v417 = vand.u32 %v203, 2147483648
  %v418 = vsel %vm416, %v417, %v415
  %v419 = vrsqrt.pop %v204
  %v420 = vmul.f32 %v204, %v419
  %vm421 = vcmp.eq.f32.partialorder %v204, inf
  %v422 = vsel %vm421, %v204, %v420
  %vm423 = vcmp.eq.f32.partialorder %v204, 0.0
  %v424 = vand.u32 %v204, 2147483648
  %v425 = vsel %vm423, %v424, %v422
  %v426 = vrsqrt.pop %v205
  %v427 = vmul.f32 %v205, %v426
  %vm428 = vcmp.eq.f32.partialorder %v205, inf
  %v429 = vsel %vm428, %v205, %v427
  %vm430 = vcmp.eq.f32.partialorder %v205, 0.0
  %v431 = vand.u32 %v205, 2147483648
  %v432 = vsel %vm430, %v431, %v429
  %v433 = vrsqrt.pop %v206
  %v434 = vmul.f32 %v206, %v433
  %vm435 = vcmp.eq.f32.partialorder %v206, inf
  %v436 = vsel %vm435, %v206, %v434
  %vm437 = vcmp.eq.f32.partialorder %v206, 0.0
  %v438 = vand.u32 %v206, 2147483648
  %v439 = vsel %vm437, %v438, %v436
  %v440 = vrsqrt.pop %v207
  %v441 = vmul.f32 %v207, %v440
  %vm442 = vcmp.eq.f32.partialorder %v207, inf
  %v443 = vsel %vm442, %v207, %v441
  %vm444 = vcmp.eq.f32.partialorder %v207, 0.0
  %v445 = vand.u32 %v207, 2147483648
  %v446 = vsel %vm444, %v445, %v443
  %v447 = vrsqrt.pop %v208
  %v448 = vmul.f32 %v208, %v447
  %vm449 = vcmp.eq.f32.partialorder %v208, inf
  %v450 = vsel %vm449, %v208, %v448
  %vm451 = vcmp.eq.f32.partialorder %v208, 0.0
  %v452 = vand.u32 %v208, 2147483648
  %v453 = vsel %vm451, %v452, %v450
  %v454 = vrsqrt.pop %v209
  %v455 = vmul.f32 %v209, %v454
  %vm456 = vcmp.eq.f32.partialorder %v209, inf
  %v457 = vsel %vm456, %v209, %v455
  %vm458 = vcmp.eq.f32.partialorder %v209, 0.0
  %v459 = vand.u32 %v209, 2147483648
  %v460 = vsel %vm458, %v459, %v457
  %v461 = vrsqrt.pop %v210
  %v462 = vmul.f32 %v210, %v461
  %vm463 = vcmp.eq.f32.partialorder %v210, inf
  %v464 = vsel %vm463, %v210, %v462
  %vm465 = vcmp.eq.f32.partialorder %v210, 0.0
  %v466 = vand.u32 %v210, 2147483648
  %v467 = vsel %vm465, %v466, %v464
  %v468 = vrsqrt.pop %v211
  %v469 = vmul.f32 %v211, %v468
  %vm470 = vcmp.eq.f32.partialorder %v211, inf
  %v471 = vsel %vm470, %v211, %v469
  %vm472 = vcmp.eq.f32.partialorder %v211, 0.0
  %v473 = vand.u32 %v211, 2147483648
  %v474 = vsel %vm472, %v473, %v471
  %v475 = vrsqrt.pop %v212
  %v476 = vmul.f32 %v212, %v475
  %vm477 = vcmp.eq.f32.partialorder %v212, inf
  %v478 = vsel %vm477, %v212, %v476
  %vm479 = vcmp.eq.f32.partialorder %v212, 0.0
  %v480 = vand.u32 %v212, 2147483648
  %v481 = vsel %vm479, %v480, %v478
  %v482 = vrsqrt.pop %v213
  %v483 = vmul.f32 %v213, %v482
  %vm484 = vcmp.eq.f32.partialorder %v213, inf
  %v485 = vsel %vm484, %v213, %v483
  %vm486 = vcmp.eq.f32.partialorder %v213, 0.0
  %v487 = vand.u32 %v213, 2147483648
  %v488 = vsel %vm486, %v487, %v485
  %v489 = vrsqrt.pop %v214
  %v490 = vmul.f32 %v214, %v489
  %vm491 = vcmp.eq.f32.partialorder %v214, inf
  %v492 = vsel %vm491, %v214, %v490
  %vm493 = vcmp.eq.f32.partialorder %v214, 0.0
  %v494 = vand.u32 %v214, 2147483648
  %v495 = vsel %vm493, %v494, %v492
  %v496 = vrsqrt.pop %v215
  %v497 = vmul.f32 %v215, %v496
  %vm498 = vcmp.eq.f32.partialorder %v215, inf
  %v499 = vsel %vm498, %v215, %v497
  %vm500 = vcmp.eq.f32.partialorder %v215, 0.0
  %v501 = vand.u32 %v215, 2147483648
  %v502 = vsel %vm500, %v501, %v499
  %503 = vst [vmem:[%s2] sm:$0xff] %v222
  %504 = vst [vmem:[%s2 + $0x8] sm:$0xff] %v229
  %505 = vst [vmem:[%s2 + $0x10] sm:$0xff] %v236
  %506 = vst [vmem:[%s2 + $0x18] sm:$0xff] %v243
  %507 = vst [vmem:[%s2 + $0x20] sm:$0xff] %v250
  %508 = vst [vmem:[%s2 + $0x28] sm:$0xff] %v257
  %509 = vst [vmem:[%s2 + $0x30] sm:$0xff] %v264
  %510 = vst [vmem:[%s2 + $0x38] sm:$0xff] %v271
  %511 = vst [vmem:[%s2 + $0x40] sm:$0xff] %v278
  %512 = vst [vmem:[%s2 + $0x48] sm:$0xff] %v285
  %513 = vst [vmem:[%s2 + $0x50] sm:$0xff] %v292
  %514 = vst [vmem:[%s2 + $0x58] sm:$0xff] %v299
  %515 = vst [vmem:[%s2 + $0x60] sm:$0xff] %v306
  %516 = vst [vmem:[%s2 + $0x68] sm:$0xff] %v313
  %517 = vst [vmem:[%s2 + $0x70] sm:$0xff] %v320
  %518 = vst [vmem:[%s2 + $0x78] sm:$0xff] %v327
  %519 = vst [vmem:[%s2 + $0x80] sm:$0xff] %v334
  %520 = vst [vmem:[%s2 + $0x88] sm:$0xff] %v341
  %521 = vst [vmem:[%s2 + $0x90] sm:$0xff] %v348
  %522 = vst [vmem:[%s2 + $0x98] sm:$0xff] %v355
  %523 = vst [vmem:[%s2 + $0xa0] sm:$0xff] %v362
  %524 = vst [vmem:[%s2 + $0xa8] sm:$0xff] %v369
  %525 = vst [vmem:[%s2 + $0xb0] sm:$0xff] %v376
  %526 = vst [vmem:[%s2 + $0xb8] sm:$0xff] %v383
  %527 = vst [vmem:[%s2 + $0xc0] sm:$0xff] %v390
  %528 = vst [vmem:[%s2 + $0xc8] sm:$0xff] %v397
  %529 = vst [vmem:[%s2 + $0xd0] sm:$0xff] %v404
  %530 = vst [vmem:[%s2 + $0xd8] sm:$0xff] %v411
  %531 = vst [vmem:[%s2 + $0xe0] sm:$0xff] %v418
  %532 = vst [vmem:[%s2 + $0xe8] sm:$0xff] %v425
  %533 = vst [vmem:[%s2 + $0xf0] sm:$0xff] %v432
  %534 = vst [vmem:[%s2 + $0xf8] sm:$0xff] %v439
  %535 = vst [vmem:[%s2 + $0x100] sm:$0xff] %v446
  %536 = vst [vmem:[%s2 + $0x108] sm:$0xff] %v453
  %537 = vst [vmem:[%s2 + $0x110] sm:$0xff] %v460
  %538 = vst [vmem:[%s2 + $0x118] sm:$0xff] %v467
  %539 = vst [vmem:[%s2 + $0x120] sm:$0xff] %v474
  %540 = vst [vmem:[%s2 + $0x128] sm:$0xff] %v481
  %541 = vst [vmem:[%s2 + $0x130] sm:$0xff] %v488
  %542 = vst [vmem:[%s2 + $0x138] sm:$0xff] %v495
  %543 = vst [vmem:[%s2 + $0x140] sm:$0xff] %v502
  // Predicated region
  $region10: #{scatnet2d_forward.4} parent=0 // pred_check
    _
  $region11: #{scatnet2d_forward.4} parent=0 // pred_check_branch
    %545 = sbr.rel (0) target = $region13
  $region12: #{scatnet2d_forward.4} parent=0 // pred_region
    _
  $region13: #{scatnet2d_forward.4} parent=0 // pred_fallthru
    _
  // Predicated region
  $region14: #{scatnet2d_forward.4} parent=0 // pred_check
    _
  $region15: #{scatnet2d_forward.4} parent=0 // pred_check_branch
    %547 = sbr.rel (0) target = $region17
  $region16: #{scatnet2d_forward.4} parent=0 // pred_region
    _
  $region17: #{scatnet2d_forward.4} parent=0 // pred_fallthru
    _

// kernel: scatnet2d_forward.5
$region0: #{scatnet2d_forward.5}
  #allocation0 [shape = 'u32[]', space=smem, size = 0x4, offset = 0x4, fixed_abs, tag = 'smem constant byte address 0x4 - core index']
  #allocation1 [shape = 'u32[144,128]{1,0:T(1,128)}', space=vmem, size = 0x12000, scoped, tag = 'internal scratch']
  %s0 = inlined_call_operand.vmem [shape: f32[8,1280], index: 0, kind: input, shape index: {}]
  %s1 = inlined_call_operand.vmem [shape: bf16[1280,64], index: 1, kind: input, shape index: {}]
  %s2 = inlined_call_operand.vmem [shape: bf16[64,1024], index: 2, kind: input, shape index: {}]
  %s3 = inlined_call_operand.vmem [shape: f32[1,1024], index: 3, kind: input, shape index: {}]
  %s4 = inlined_call_operand.vmem [shape: bf16[1024,1024], index: 4, kind: input, shape index: {}]
  %s5 = inlined_call_operand.vmem [shape: f32[1,1024], index: 5, kind: input, shape index: {}]
  %s6 = inlined_call_operand.vmem [shape: bf16[1024,128], index: 6, kind: input, shape index: {}]
  %s7 = inlined_call_operand.vmem [shape: f32[1,128], index: 7, kind: input, shape index: {}]
  %s8 = inlined_call_operand.vmem [shape: f32[8,128], index: 8, kind: output, shape index: {}]
  %s9 = sld [smem:[#allocation0]]
  $region42: #{scatnet2d_forward.5} parent=0
    _
  %s11 = ssub.s32 1, %s9
  %s12 = scalar_select 0, %s11, %s9
  // Predicated region
  $region2: #{scatnet2d_forward.5} parent=0 // pred_check
    _
  $region3: #{scatnet2d_forward.5} parent=0 // pred_check_branch
    %14 = sbr.rel (0) target = $region5
  $region4: #{scatnet2d_forward.5} parent=0 // pred_region
    _
  $region5: #{scatnet2d_forward.5} parent=0 // pred_fallthru
    _
  // Predicated region
  $region6: #{scatnet2d_forward.5} parent=0 // pred_check
    _
  $region7: #{scatnet2d_forward.5} parent=0 // pred_check_branch
    %16 = sbr.rel (0) target = $region9
  $region8: #{scatnet2d_forward.5} parent=0 // pred_region
    _
  $region9: #{scatnet2d_forward.5} parent=0 // pred_fallthru
    _
  // Predicated region
  $region10: #{scatnet2d_forward.5} parent=0 // pred_check
    _
  $region11: #{scatnet2d_forward.5} parent=0 // pred_check_branch
    %18 = sbr.rel (0) target = $region13
  $region12: #{scatnet2d_forward.5} parent=0 // pred_region
    _
  $region13: #{scatnet2d_forward.5} parent=0 // pred_fallthru
    _
  // Predicated region
  $region14: #{scatnet2d_forward.5} parent=0 // pred_check
    _
  $region15: #{scatnet2d_forward.5} parent=0 // pred_check_branch
    %20 = sbr.rel (0) target = $region17
  $region16: #{scatnet2d_forward.5} parent=0 // pred_region
    _
  $region17: #{scatnet2d_forward.5} parent=0 // pred_fallthru
    _
  // Predicated region
  $region18: #{scatnet2d_forward.5} parent=0 // pred_check
    _
  $region19: #{scatnet2d_forward.5} parent=0 // pred_check_branch
    %22 = sbr.rel (0) target = $region21
  $region20: #{scatnet2d_forward.5} parent=0 // pred_region
    _
  $region21: #{scatnet2d_forward.5} parent=0 // pred_fallthru
    _
  // Predicated region
  $region22: #{scatnet2d_forward.5} parent=0 // pred_check
    _
  $region23: #{scatnet2d_forward.5} parent=0 // pred_check_branch
    %24 = sbr.rel (0) target = $region25
  $region24: #{scatnet2d_forward.5} parent=0 // pred_region
    _
  $region25: #{scatnet2d_forward.5} parent=0 // pred_fallthru
    _
  // Predicated region
  $region26: #{scatnet2d_forward.5} parent=0 // pred_check
    _
  $region27: #{scatnet2d_forward.5} parent=0 // pred_check_branch
    %26 = sbr.rel (0) target = $region29
  $region28: #{scatnet2d_forward.5} parent=0 // pred_region
    _
  $region29: #{scatnet2d_forward.5} parent=0 // pred_fallthru
    _
  // Predicated region
  $region30: #{scatnet2d_forward.5} parent=0 // pred_check
    _
  $region31: #{scatnet2d_forward.5} parent=0 // pred_check_branch
    %28 = sbr.rel (0) target = $region33
  $region32: #{scatnet2d_forward.5} parent=0 // pred_region
    _
  $region33: #{scatnet2d_forward.5} parent=0 // pred_fallthru
    _
  %v30 = vld [vmem:[%s0] sm:$0xff]
  %v31 = vld [vmem:[%s0 + $0x8] sm:$0xff]
  %v32 = vld [vmem:[%s0 + $0x10] sm:$0xff]
  %v33 = vld [vmem:[%s0 + $0x18] sm:$0xff]
  %v34 = vld [vmem:[%s0 + $0x20] sm:$0xff]
  %v35 = vld [vmem:[%s0 + $0x28] sm:$0xff]
  %v36 = vld [vmem:[%s0 + $0x30] sm:$0xff]
  %v37 = vld [vmem:[%s0 + $0x38] sm:$0xff]
  %v38 = vld [vmem:[%s0 + $0x40] sm:$0xff]
  %v39 = vld [vmem:[%s0 + $0x48] sm:$0xff]
  %v40 = vpack.c.bf16 %v30, %v30
  %v41 = vpack.c.bf16 %v31, %v31
  %v42 = vpack.c.bf16 %v32, %v32
  %v43 = vpack.c.bf16 %v33, %v33
  %v44 = vpack.c.bf16 %v34, %v34
  %v45 = vpack.c.bf16 %v35, %v35
  %v46 = vpack.c.bf16 %v36, %v36
  %v47 = vpack.c.bf16 %v37, %v37
  %v48 = vpack.c.bf16 %v38, %v38
  %v49 = vpack.c.bf16 %v39, %v39
  %v50 = vld [vmem:[%s1] sm:$0xf]
  %v51 = vld [vmem:[%s1 + $0x4] sm:$0xf]
  %v52 = vld [vmem:[%s1 + $0x8] sm:$0xf]
  %v53 = vld [vmem:[%s1 + $0xc] sm:$0xf]
  %v54 = vld [vmem:[%s1 + $0x10] sm:$0xf]
  %v55 = vld [vmem:[%s1 + $0x14] sm:$0xf]
  %v56 = vld [vmem:[%s1 + $0x18] sm:$0xf]
  %v57 = vld [vmem:[%s1 + $0x1c] sm:$0xf]
  %v58 = vld [vmem:[%s1 + $0x20] sm:$0xf]
  %v59 = vld [vmem:[%s1 + $0x24] sm:$0xf]
  %v60 = vld [vmem:[%s1 + $0x28] sm:$0xf]
  %v61 = vld [vmem:[%s1 + $0x2c] sm:$0xf]
  %v62 = vld [vmem:[%s1 + $0x30] sm:$0xf]
  %v63 = vld [vmem:[%s1 + $0x34] sm:$0xf]
  %v64 = vld [vmem:[%s1 + $0x38] sm:$0xf]
  %v65 = vld [vmem:[%s1 + $0x3c] sm:$0xf]
  %v66 = vld [vmem:[%s1 + $0x40] sm:$0xf]
  %v67 = vld [vmem:[%s1 + $0x44] sm:$0xf]
  %v68 = vld [vmem:[%s1 + $0x48] sm:$0xf]
  %v69 = vld [vmem:[%s1 + $0x4c] sm:$0xf]
  %v70 = vld [vmem:[%s1 + $0x50] sm:$0xf]
  %v71 = vld [vmem:[%s1 + $0x54] sm:$0xf]
  %v72 = vld [vmem:[%s1 + $0x58] sm:$0xf]
  %v73 = vld [vmem:[%s1 + $0x5c] sm:$0xf]
  %v74 = vld [vmem:[%s1 + $0x60] sm:$0xf]
  %v75 = vld [vmem:[%s1 + $0x64] sm:$0xf]
  %v76 = vld [vmem:[%s1 + $0x68] sm:$0xf]
  %v77 = vld [vmem:[%s1 + $0x6c] sm:$0xf]
  %v78 = vld [vmem:[%s1 + $0x70] sm:$0xf]
  %v79 = vld [vmem:[%s1 + $0x74] sm:$0xf]
  %v80 = vld [vmem:[%s1 + $0x78] sm:$0xf]
  %v81 = vld [vmem:[%s1 + $0x7c] sm:$0xf]
  %v82 = vld [vmem:[%s1 + $0x80] sm:$0xf]
  %v83 = vld [vmem:[%s1 + $0x84] sm:$0xf]
  %v84 = vld [vmem:[%s1 + $0x88] sm:$0xf]
  %v85 = vld [vmem:[%s1 + $0x8c] sm:$0xf]
  %v86 = vld [vmem:[%s1 + $0x90] sm:$0xf]
  %v87 = vld [vmem:[%s1 + $0x94] sm:$0xf]
  %v88 = vld [vmem:[%s1 + $0x98] sm:$0xf]
  %v89 = vld [vmem:[%s1 + $0x9c] sm:$0xf]
  %v90 = vld [vmem:[%s1 + $0xa0] sm:$0xf]
  %v91 = vld [vmem:[%s1 + $0xa4] sm:$0xf]
  %v92 = vld [vmem:[%s1 + $0xa8] sm:$0xf]
  %v93 = vld [vmem:[%s1 + $0xac] sm:$0xf]
  %v94 = vld [vmem:[%s1 + $0xb0] sm:$0xf]
  %v95 = vld [vmem:[%s1 + $0xb4] sm:$0xf]
  %v96 = vld [vmem:[%s1 + $0xb8] sm:$0xf]
  %v97 = vld [vmem:[%s1 + $0xbc] sm:$0xf]
  %v98 = vld [vmem:[%s1 + $0xc0] sm:$0xf]
  %v99 = vld [vmem:[%s1 + $0xc4] sm:$0xf]
  %v100 = vld [vmem:[%s1 + $0xc8] sm:$0xf]
  %v101 = vld [vmem:[%s1 + $0xcc] sm:$0xf]
  %v102 = vld [vmem:[%s1 + $0xd0] sm:$0xf]
  %v103 = vld [vmem:[%s1 + $0xd4] sm:$0xf]
  %v104 = vld [vmem:[%s1 + $0xd8] sm:$0xf]
  %v105 = vld [vmem:[%s1 + $0xdc] sm:$0xf]
  %v106 = vld [vmem:[%s1 + $0xe0] sm:$0xf]
  %v107 = vld [vmem:[%s1 + $0xe4] sm:$0xf]
  %v108 = vld [vmem:[%s1 + $0xe8] sm:$0xf]
  %v109 = vld [vmem:[%s1 + $0xec] sm:$0xf]
  %v110 = vld [vmem:[%s1 + $0xf0] sm:$0xf]
  %v111 = vld [vmem:[%s1 + $0xf4] sm:$0xf]
  %v112 = vld [vmem:[%s1 + $0xf8] sm:$0xf]
  %v113 = vld [vmem:[%s1 + $0xfc] sm:$0xf]
  %v114 = vld [vmem:[%s1 + $0x100] sm:$0xf]
  %v115 = vld [vmem:[%s1 + $0x104] sm:$0xf]
  %v116 = vld [vmem:[%s1 + $0x108] sm:$0xf]
  %v117 = vld [vmem:[%s1 + $0x10c] sm:$0xf]
  %v118 = vld [vmem:[%s1 + $0x110] sm:$0xf]
  %v119 = vld [vmem:[%s1 + $0x114] sm:$0xf]
  %v120 = vld [vmem:[%s1 + $0x118] sm:$0xf]
  %v121 = vld [vmem:[%s1 + $0x11c] sm:$0xf]
  %v122 = vld [vmem:[%s1 + $0x120] sm:$0xf]
  %v123 = vld [vmem:[%s1 + $0x124] sm:$0xf]
  %v124 = vld [vmem:[%s1 + $0x128] sm:$0xf]
  %v125 = vld [vmem:[%s1 + $0x12c] sm:$0xf]
  %v126 = vld [vmem:[%s1 + $0x130] sm:$0xf]
  %v127 = vld [vmem:[%s1 + $0x134] sm:$0xf]
  %v128 = vld [vmem:[%s1 + $0x138] sm:$0xf]
  %v129 = vld [vmem:[%s1 + $0x13c] sm:$0xf]
  %v130 = vld [vmem:[%s1 + $0x140] sm:$0xf]
  %v131 = vld [vmem:[%s1 + $0x144] sm:$0xf]
  %v132 = vld [vmem:[%s1 + $0x148] sm:$0xf]
  %v133 = vld [vmem:[%s1 + $0x14c] sm:$0xf]
  %v134 = vld [vmem:[%s1 + $0x150] sm:$0xf]
  %v135 = vld [vmem:[%s1 + $0x154] sm:$0xf]
  %v136 = vld [vmem:[%s1 + $0x158] sm:$0xf]
  %v137 = vld [vmem:[%s1 + $0x15c] sm:$0xf]
  %v138 = vld [vmem:[%s1 + $0x160] sm:$0xf]
  %v139 = vld [vmem:[%s1 + $0x164] sm:$0xf]
  %v140 = vld [vmem:[%s1 + $0x168] sm:$0xf]
  %v141 = vld [vmem:[%s1 + $0x16c] sm:$0xf]
  %v142 = vld [vmem:[%s1 + $0x170] sm:$0xf]
  %v143 = vld [vmem:[%s1 + $0x174] sm:$0xf]
  %v144 = vld [vmem:[%s1 + $0x178] sm:$0xf]
  %v145 = vld [vmem:[%s1 + $0x17c] sm:$0xf]
  %v146 = vld [vmem:[%s1 + $0x180] sm:$0xf]
  %v147 = vld [vmem:[%s1 + $0x184] sm:$0xf]
  %v148 = vld [vmem:[%s1 + $0x188] sm:$0xf]
  %v149 = vld [vmem:[%s1 + $0x18c] sm:$0xf]
  %v150 = vld [vmem:[%s1 + $0x190] sm:$0xf]
  %v151 = vld [vmem:[%s1 + $0x194] sm:$0xf]
  %v152 = vld [vmem:[%s1 + $0x198] sm:$0xf]
  %v153 = vld [vmem:[%s1 + $0x19c] sm:$0xf]
  %v154 = vld [vmem:[%s1 + $0x1a0] sm:$0xf]
  %v155 = vld [vmem:[%s1 + $0x1a4] sm:$0xf]
  %v156 = vld [vmem:[%s1 + $0x1a8] sm:$0xf]
  %v157 = vld [vmem:[%s1 + $0x1ac] sm:$0xf]
  %v158 = vld [vmem:[%s1 + $0x1b0] sm:$0xf]
  %v159 = vld [vmem:[%s1 + $0x1b4] sm:$0xf]
  %v160 = vld [vmem:[%s1 + $0x1b8] sm:$0xf]
  %v161 = vld [vmem:[%s1 + $0x1bc] sm:$0xf]
  %v162 = vld [vmem:[%s1 + $0x1c0] sm:$0xf]
  %v163 = vld [vmem:[%s1 + $0x1c4] sm:$0xf]
  %v164 = vld [vmem:[%s1 + $0x1c8] sm:$0xf]
  %v165 = vld [vmem:[%s1 + $0x1cc] sm:$0xf]
  %v166 = vld [vmem:[%s1 + $0x1d0] sm:$0xf]
  %v167 = vld [vmem:[%s1 + $0x1d4] sm:$0xf]
  %v168 = vld [vmem:[%s1 + $0x1d8] sm:$0xf]
  %v169 = vld [vmem:[%s1 + $0x1dc] sm:$0xf]
  %v170 = vld [vmem:[%s1 + $0x1e0] sm:$0xf]
  %v171 = vld [vmem:[%s1 + $0x1e4] sm:$0xf]
  %v172 = vld [vmem:[%s1 + $0x1e8] sm:$0xf]
  %v173 = vld [vmem:[%s1 + $0x1ec] sm:$0xf]
  %v174 = vld [vmem:[%s1 + $0x1f0] sm:$0xf]
  %v175 = vld [vmem:[%s1 + $0x1f4] sm:$0xf]
  %v176 = vld [vmem:[%s1 + $0x1f8] sm:$0xf]
  %v177 = vld [vmem:[%s1 + $0x1fc] sm:$0xf]
  %v178 = vld [vmem:[%s1 + $0x200] sm:$0xf]
  %v179 = vld [vmem:[%s1 + $0x204] sm:$0xf]
  %v180 = vld [vmem:[%s1 + $0x208] sm:$0xf]
  %v181 = vld [vmem:[%s1 + $0x20c] sm:$0xf]
  %v182 = vld [vmem:[%s1 + $0x210] sm:$0xf]
  %v183 = vld [vmem:[%s1 + $0x214] sm:$0xf]
  %v184 = vld [vmem:[%s1 + $0x218] sm:$0xf]
  %v185 = vld [vmem:[%s1 + $0x21c] sm:$0xf]
  %v186 = vld [vmem:[%s1 + $0x220] sm:$0xf]
  %v187 = vld [vmem:[%s1 + $0x224] sm:$0xf]
  %v188 = vld [vmem:[%s1 + $0x228] sm:$0xf]
  %v189 = vld [vmem:[%s1 + $0x22c] sm:$0xf]
  %v190 = vld [vmem:[%s1 + $0x230] sm:$0xf]
  %v191 = vld [vmem:[%s1 + $0x234] sm:$0xf]
  %v192 = vld [vmem:[%s1 + $0x238] sm:$0xf]
  %v193 = vld [vmem:[%s1 + $0x23c] sm:$0xf]
  %v194 = vld [vmem:[%s1 + $0x240] sm:$0xf]
  %v195 = vld [vmem:[%s1 + $0x244] sm:$0xf]
  %v196 = vld [vmem:[%s1 + $0x248] sm:$0xf]
  %v197 = vld [vmem:[%s1 + $0x24c] sm:$0xf]
  %v198 = vld [vmem:[%s1 + $0x250] sm:$0xf]
  %v199 = vld [vmem:[%s1 + $0x254] sm:$0xf]
  %v200 = vld [vmem:[%s1 + $0x258] sm:$0xf]
  %v201 = vld [vmem:[%s1 + $0x25c] sm:$0xf]
  %v202 = vld [vmem:[%s1 + $0x260] sm:$0xf]
  %v203 = vld [vmem:[%s1 + $0x264] sm:$0xf]
  %v204 = vld [vmem:[%s1 + $0x268] sm:$0xf]
  %v205 = vld [vmem:[%s1 + $0x26c] sm:$0xf]
  %v206 = vld [vmem:[%s1 + $0x270] sm:$0xf]
  %v207 = vld [vmem:[%s1 + $0x274] sm:$0xf]
  %v208 = vld [vmem:[%s1 + $0x278] sm:$0xf]
  %v209 = vld [vmem:[%s1 + $0x27c] sm:$0xf]
  %v370 = vunpack.c.l.b16 %v50
  %v371 = vunpack.c.l.b16 %v51
  %v372 = vunpack.c.l.b16 %v52
  %v373 = vunpack.c.l.b16 %v53
  %v374 = vunpack.c.l.b16 %v54
  %v375 = vunpack.c.l.b16 %v55
  %v376 = vunpack.c.l.b16 %v56
  %v377 = vunpack.c.l.b16 %v57
  %v378 = vunpack.c.l.b16 %v58
  %v379 = vunpack.c.l.b16 %v59
  %v380 = vunpack.c.l.b16 %v60
  %v381 = vunpack.c.l.b16 %v61
  %v382 = vunpack.c.l.b16 %v62
  %v383 = vunpack.c.l.b16 %v63
  %v384 = vunpack.c.l.b16 %v64
  %v385 = vunpack.c.l.b16 %v65
  %v386 = vunpack.c.l.b16 %v66
  %v387 = vunpack.c.l.b16 %v67
  %v388 = vunpack.c.l.b16 %v68
  %v389 = vunpack.c.l.b16 %v69
  %v390 = vunpack.c.l.b16 %v70
  %v391 = vunpack.c.l.b16 %v71
  %v392 = vunpack.c.l.b16 %v72
  %v393 = vunpack.c.l.b16 %v73
  %v394 = vunpack.c.l.b16 %v74
  %v395 = vunpack.c.l.b16 %v75
  %v396 = vunpack.c.l.b16 %v76
  %v397 = vunpack.c.l.b16 %v77
  %v398 = vunpack.c.l.b16 %v78
  %v399 = vunpack.c.l.b16 %v79
  %v400 = vunpack.c.l.b16 %v80
  %v401 = vunpack.c.l.b16 %v81
  %v402 = vunpack.c.l.b16 %v82
  %v403 = vunpack.c.l.b16 %v83
  %v404 = vunpack.c.l.b16 %v84
  %v405 = vunpack.c.l.b16 %v85
  %v406 = vunpack.c.l.b16 %v86
  %v407 = vunpack.c.l.b16 %v87
  %v408 = vunpack.c.l.b16 %v88
  %v409 = vunpack.c.l.b16 %v89
  %v410 = vunpack.c.l.b16 %v90
  %v411 = vunpack.c.l.b16 %v91
  %v412 = vunpack.c.l.b16 %v92
  %v413 = vunpack.c.l.b16 %v93
  %v414 = vunpack.c.l.b16 %v94
  %v415 = vunpack.c.l.b16 %v95
  %v416 = vunpack.c.l.b16 %v96
  %v417 = vunpack.c.l.b16 %v97
  %v418 = vunpack.c.l.b16 %v98
  %v419 = vunpack.c.l.b16 %v99
  %v420 = vunpack.c.l.b16 %v100
  %v421 = vunpack.c.l.b16 %v101
  %v422 = vunpack.c.l.b16 %v102
  %v423 = vunpack.c.l.b16 %v103
  %v424 = vunpack.c.l.b16 %v104
  %v425 = vunpack.c.l.b16 %v105
  %v426 = vunpack.c.l.b16 %v106
  %v427 = vunpack.c.l.b16 %v107
  %v428 = vunpack.c.l.b16 %v108
  %v429 = vunpack.c.l.b16 %v109
  %v430 = vunpack.c.l.b16 %v110
  %v431 = vunpack.c.l.b16 %v111
  %v432 = vunpack.c.l.b16 %v112
  %v433 = vunpack.c.l.b16 %v113
  %v434 = vunpack.c.l.b16 %v114
  %v435 = vunpack.c.l.b16 %v115
  %v436 = vunpack.c.l.b16 %v116
  %v437 = vunpack.c.l.b16 %v117
  %v438 = vunpack.c.l.b16 %v118
  %v439 = vunpack.c.l.b16 %v119
  %v440 = vunpack.c.l.b16 %v120
  %v441 = vunpack.c.l.b16 %v121
  %v442 = vunpack.c.l.b16 %v122
  %v443 = vunpack.c.l.b16 %v123
  %v444 = vunpack.c.l.b16 %v124
  %v445 = vunpack.c.l.b16 %v125
  %v446 = vunpack.c.l.b16 %v126
  %v447 = vunpack.c.l.b16 %v127
  %v448 = vunpack.c.l.b16 %v128
  %v449 = vunpack.c.l.b16 %v129
  %v450 = vunpack.c.l.b16 %v130
  %v451 = vunpack.c.l.b16 %v131
  %v452 = vunpack.c.l.b16 %v132
  %v453 = vunpack.c.l.b16 %v133
  %v454 = vunpack.c.l.b16 %v134
  %v455 = vunpack.c.l.b16 %v135
  %v456 = vunpack.c.l.b16 %v136
  %v457 = vunpack.c.l.b16 %v137
  %v458 = vunpack.c.l.b16 %v138
  %v459 = vunpack.c.l.b16 %v139
  %v460 = vunpack.c.l.b16 %v140
  %v461 = vunpack.c.l.b16 %v141
  %v462 = vunpack.c.l.b16 %v142
  %v463 = vunpack.c.l.b16 %v143
  %v464 = vunpack.c.l.b16 %v144
  %v465 = vunpack.c.l.b16 %v145
  %v466 = vunpack.c.l.b16 %v146
  %v467 = vunpack.c.l.b16 %v147
  %v468 = vunpack.c.l.b16 %v148
  %v469 = vunpack.c.l.b16 %v149
  %v470 = vunpack.c.l.b16 %v150
  %v471 = vunpack.c.l.b16 %v151
  %v472 = vunpack.c.l.b16 %v152
  %v473 = vunpack.c.l.b16 %v153
  %v474 = vunpack.c.l.b16 %v154
  %v475 = vunpack.c.l.b16 %v155
  %v476 = vunpack.c.l.b16 %v156
  %v477 = vunpack.c.l.b16 %v157
  %v478 = vunpack.c.l.b16 %v158
  %v479 = vunpack.c.l.b16 %v159
  %v480 = vunpack.c.l.b16 %v160
  %v481 = vunpack.c.l.b16 %v161
  %v482 = vunpack.c.l.b16 %v162
  %v483 = vunpack.c.l.b16 %v163
  %v484 = vunpack.c.l.b16 %v164
  %v485 = vunpack.c.l.b16 %v165
  %v486 = vunpack.c.l.b16 %v166
  %v487 = vunpack.c.l.b16 %v167
  %v488 = vunpack.c.l.b16 %v168
  %v489 = vunpack.c.l.b16 %v169
  %v490 = vunpack.c.l.b16 %v170
  %v491 = vunpack.c.l.b16 %v171
  %v492 = vunpack.c.l.b16 %v172
  %v493 = vunpack.c.l.b16 %v173
  %v494 = vunpack.c.l.b16 %v174
  %v495 = vunpack.c.l.b16 %v175
  %v496 = vunpack.c.l.b16 %v176
  %v497 = vunpack.c.l.b16 %v177
  %v498 = vunpack.c.l.b16 %v178
  %v499 = vunpack.c.l.b16 %v179
  %v500 = vunpack.c.l.b16 %v180
  %v501 = vunpack.c.l.b16 %v181
  %v502 = vunpack.c.l.b16 %v182
  %v503 = vunpack.c.l.b16 %v183
  %v504 = vunpack.c.l.b16 %v184
  %v505 = vunpack.c.l.b16 %v185
  %v506 = vunpack.c.l.b16 %v186
  %v507 = vunpack.c.l.b16 %v187
  %v508 = vunpack.c.l.b16 %v188
  %v509 = vunpack.c.l.b16 %v189
  %v510 = vunpack.c.l.b16 %v190
  %v511 = vunpack.c.l.b16 %v191
  %v512 = vunpack.c.l.b16 %v192
  %v513 = vunpack.c.l.b16 %v193
  %v514 = vunpack.c.l.b16 %v194
  %v515 = vunpack.c.l.b16 %v195
  %v516 = vunpack.c.l.b16 %v196
  %v517 = vunpack.c.l.b16 %v197
  %v518 = vunpack.c.l.b16 %v198
  %v519 = vunpack.c.l.b16 %v199
  %v520 = vunpack.c.l.b16 %v200
  %v521 = vunpack.c.l.b16 %v201
  %v522 = vunpack.c.l.b16 %v202
  %v523 = vunpack.c.l.b16 %v203
  %v524 = vunpack.c.l.b16 %v204
  %v525 = vunpack.c.l.b16 %v205
  %v526 = vunpack.c.l.b16 %v206
  %v527 = vunpack.c.l.b16 %v207
  %v528 = vunpack.c.l.b16 %v208
  %v529 = vunpack.c.l.b16 %v209
  %v530 = vpack.c.b16 %v371, %v370
  %v531 = vpack.c.b16 %v373, %v372
  %v532 = vpack.c.b16 %v375, %v374
  %v533 = vpack.c.b16 %v377, %v376
  %v534 = vpack.c.b16 %v379, %v378
  %v535 = vpack.c.b16 %v381, %v380
  %v536 = vpack.c.b16 %v383, %v382
  %v537 = vpack.c.b16 %v385, %v384
  %v538 = vpack.c.b16 %v387, %v386
  %v539 = vpack.c.b16 %v389, %v388
  %v540 = vpack.c.b16 %v391, %v390
  %v541 = vpack.c.b16 %v393, %v392
  %v542 = vpack.c.b16 %v395, %v394
  %v543 = vpack.c.b16 %v397, %v396
  %v544 = vpack.c.b16 %v399, %v398
  %v545 = vpack.c.b16 %v401, %v400
  %v546 = vpack.c.b16 %v403, %v402
  %v547 = vpack.c.b16 %v405, %v404
  %v548 = vpack.c.b16 %v407, %v406
  %v549 = vpack.c.b16 %v409, %v408
  %v550 = vpack.c.b16 %v411, %v410
  %v551 = vpack.c.b16 %v413, %v412
  %v552 = vpack.c.b16 %v415, %v414
  %v553 = vpack.c.b16 %v417, %v416
  %v554 = vpack.c.b16 %v419, %v418
  %v555 = vpack.c.b16 %v421, %v420
  %v556 = vpack.c.b16 %v423, %v422
  %v557 = vpack.c.b16 %v425, %v424
  %v558 = vpack.c.b16 %v427, %v426
  %v559 = vpack.c.b16 %v429, %v428
  %v560 = vpack.c.b16 %v431, %v430
  %v561 = vpack.c.b16 %v433, %v432
  %v562 = vpack.c.b16 %v435, %v434
  %v563 = vpack.c.b16 %v437, %v436
  %v564 = vpack.c.b16 %v439, %v438
  %v565 = vpack.c.b16 %v441, %v440
  %v566 = vpack.c.b16 %v443, %v442
  %v567 = vpack.c.b16 %v445, %v444
  %v568 = vpack.c.b16 %v447, %v446
  %v569 = vpack.c.b16 %v449, %v448
  %v570 = vpack.c.b16 %v451, %v450
  %v571 = vpack.c.b16 %v453, %v452
  %v572 = vpack.c.b16 %v455, %v454
  %v573 = vpack.c.b16 %v457, %v456
  %v574 = vpack.c.b16 %v459, %v458
  %v575 = vpack.c.b16 %v461, %v460
  %v576 = vpack.c.b16 %v463, %v462
  %v577 = vpack.c.b16 %v465, %v464
  %v578 = vpack.c.b16 %v467, %v466
  %v579 = vpack.c.b16 %v469, %v468
  %v580 = vpack.c.b16 %v471, %v470
  %v581 = vpack.c.b16 %v473, %v472
  %v582 = vpack.c.b16 %v475, %v474
  %v583 = vpack.c.b16 %v477, %v476
  %v584 = vpack.c.b16 %v479, %v478
  %v585 = vpack.c.b16 %v481, %v480
  %v586 = vpack.c.b16 %v483, %v482
  %v587 = vpack.c.b16 %v485, %v484
  %v588 = vpack.c.b16 %v487, %v486
  %v589 = vpack.c.b16 %v489, %v488
  %v590 = vpack.c.b16 %v491, %v490
  %v591 = vpack.c.b16 %v493, %v492
  %v592 = vpack.c.b16 %v495, %v494
  %v593 = vpack.c.b16 %v497, %v496
  %v594 = vpack.c.b16 %v499, %v498
  %v595 = vpack.c.b16 %v501, %v500
  %v596 = vpack.c.b16 %v503, %v502
  %v597 = vpack.c.b16 %v505, %v504
  %v598 = vpack.c.b16 %v507, %v506
  %v599 = vpack.c.b16 %v509, %v508
  %v600 = vpack.c.b16 %v511, %v510
  %v601 = vpack.c.b16 %v513, %v512
  %v602 = vpack.c.b16 %v515, %v514
  %v603 = vpack.c.b16 %v517, %v516
  %v604 = vpack.c.b16 %v519, %v518
  %v605 = vpack.c.b16 %v521, %v520
  %v606 = vpack.c.b16 %v523, %v522
  %v607 = vpack.c.b16 %v525, %v524
  %v608 = vpack.c.b16 %v527, %v526
  %v609 = vpack.c.b16 %v529, %v528
  %690 = vmatprep.subr.bf16.mxu0 0
  %691 = vmatpush1.bf16.msra.mxu0 %v530
  %692 = vmatprep.subr.bf16.mxu0 0
  %693 = vmatpush1.bf16.msra.mxu0 %v531
  %694 = vmatprep.subr.bf16.mxu0 0
  %695 = vmatpush1.bf16.msra.mxu0 %v532
  %696 = vmatprep.subr.bf16.mxu0 0
  %697 = vmatpush1.bf16.msra.mxu0 %v533
  %698 = vmatprep.subr.bf16.mxu0 0
  %699 = vmatpush1.bf16.msra.mxu0 %v534
  %700 = vmatprep.subr.bf16.mxu0 0
  %701 = vmatpush1.bf16.msra.mxu0 %v535
  %702 = vmatprep.subr.bf16.mxu0 0
  %703 = vmatpush1.bf16.msra.mxu0 %v536
  %704 = vmatprep.subr.bf16.mxu0 0
  %705 = vmatpush1.bf16.msra.mxu0 %v537
  %706 = vmatprep.subr.bf16.mxu0 0
  %707 = vmatpush1.bf16.msra.mxu0 %v538
  %708 = vmatprep.subr.bf16.mxu0 0
  %709 = vmatpush1.bf16.msra.mxu0 %v539
  %710 = vmatprep.subr.bf16.mxu0 0
  %711 = vmatpush1.bf16.msra.mxu0 %v540
  %712 = vmatprep.subr.bf16.mxu0 0
  %713 = vmatpush1.bf16.msra.mxu0 %v541
  %714 = vmatprep.subr.bf16.mxu0 0
  %715 = vmatpush1.bf16.msra.mxu0 %v542
  %716 = vmatprep.subr.bf16.mxu0 0
  %717 = vmatpush1.bf16.msra.mxu0 %v543
  %718 = vmatprep.subr.bf16.mxu0 0
  %719 = vmatpush1.bf16.msra.mxu0 %v544
  %720 = vmatprep.subr.bf16.mxu0 0
  %721 = vmatpush1.bf16.msra.mxu0 %v545
  %722 = vmatprep.mubr.bf16.mxu0 %v41
  %723 = vmatmul.mubr.bf16.gmra.mrb[0].mxu0 %v40
  %v724 = vpop.f32.mrb[0].mxu0
  %v725 = vadd.f32 0.0, %v724
  %v726 = vpop.f32.mrb[0].mxu0
  %v727 = vpop.f32.mrb[0].mxu0
  %v728 = vpop.f32.mrb[0].mxu0
  %729 = vdwg.mxu0
  %730 = vmatprep.subr.bf16.mxu0 0
  %731 = vmatpush1.bf16.msra.mxu0 %v546
  %732 = vmatprep.subr.bf16.mxu0 0
  %733 = vmatpush1.bf16.msra.mxu0 %v547
  %734 = vmatprep.subr.bf16.mxu0 0
  %735 = vmatpush1.bf16.msra.mxu0 %v548
  %736 = vmatprep.subr.bf16.mxu0 0
  %737 = vmatpush1.bf16.msra.mxu0 %v549
  %738 = vmatprep.subr.bf16.mxu0 0
  %739 = vmatpush1.bf16.msra.mxu0 %v550
  %740 = vmatprep.subr.bf16.mxu0 0
  %741 = vmatpush1.bf16.msra.mxu0 %v551
  %742 = vmatprep.subr.bf16.mxu0 0
  %743 = vmatpush1.bf16.msra.mxu0 %v552
  %744 = vmatprep.subr.bf16.mxu0 0
  %745 = vmatpush1.bf16.msra.mxu0 %v553
  %746 = vmatprep.subr.bf16.mxu0 0
  %747 = vmatpush1.bf16.msra.mxu0 %v554
  %748 = vmatprep.subr.bf16.mxu0 0
  %749 = vmatpush1.bf16.msra.mxu0 %v555
  %750 = vmatprep.subr.bf16.mxu0 0
  %751 = vmatpush1.bf16.msra.mxu0 %v556
  %752 = vmatprep.subr.bf16.mxu0 0
  %753 = vmatpush1.bf16.msra.mxu0 %v557
  %754 = vmatprep.subr.bf16.mxu0 0
  %755 = vmatpush1.bf16.msra.mxu0 %v558
  %756 = vmatprep.subr.bf16.mxu0 0
  %757 = vmatpush1.bf16.msra.mxu0 %v559
  %758 = vmatprep.subr.bf16.mxu0 0
  %759 = vmatpush1.bf16.msra.mxu0 %v560
  %760 = vmatprep.subr.bf16.mxu0 0
  %761 = vmatpush1.bf16.msra.mxu0 %v561
  %762 = vmatprep.mubr.bf16.mxu0 %v43
  %763 = vmatmul.mubr.bf16.gmra.mrb[0].mxu0 %v42
  %v764 = vpop.f32.mrb[0].mxu0
  %v765 = vadd.f32 %v725, %v764
  %v766 = vpop.f32.mrb[0].mxu0
  %v767 = vpop.f32.mrb[0].mxu0
  %v768 = vpop.f32.mrb[0].mxu0
  %769 = vdwg.mxu0
  %770 = vmatprep.subr.bf16.mxu0 0
  %771 = vmatpush1.bf16.msra.mxu0 %v562
  %772 = vmatprep.subr.bf16.mxu0 0
  %773 = vmatpush1.bf16.msra.mxu0 %v563
  %774 = vmatprep.subr.bf16.mxu0 0
  %775 = vmatpush1.bf16.msra.mxu0 %v564
  %776 = vmatprep.subr.bf16.mxu0 0
  %777 = vmatpush1.bf16.msra.mxu0 %v565
  %778 = vmatprep.subr.bf16.mxu0 0
  %779 = vmatpush1.bf16.msra.mxu0 %v566
  %780 = vmatprep.subr.bf16.mxu0 0
  %781 = vmatpush1.bf16.msra.mxu0 %v567
  %782 = vmatprep.subr.bf16.mxu0 0
  %783 = vmatpush1.bf16.msra.mxu0 %v568
  %784 = vmatprep.subr.bf16.mxu0 0
  %785 = vmatpush1.bf16.msra.mxu0 %v569
  %786 = vmatprep.subr.bf16.mxu0 0
  %787 = vmatpush1.bf16.msra.mxu0 %v570
  %788 = vmatprep.subr.bf16.mxu0 0
  %789 = vmatpush1.bf16.msra.mxu0 %v571
  %790 = vmatprep.subr.bf16.mxu0 0
  %791 = vmatpush1.bf16.msra.mxu0 %v572
  %792 = vmatprep.subr.bf16.mxu0 0
  %793 = vmatpush1.bf16.msra.mxu0 %v573
  %794 = vmatprep.subr.bf16.mxu0 0
  %795 = vmatpush1.bf16.msra.mxu0 %v574
  %796 = vmatprep.subr.bf16.mxu0 0
  %797 = vmatpush1.bf16.msra.mxu0 %v575
  %798 = vmatprep.subr.bf16.mxu0 0
  %799 = vmatpush1.bf16.msra.mxu0 %v576
  %800 = vmatprep.subr.bf16.mxu0 0
  %801 = vmatpush1.bf16.msra.mxu0 %v577
  %802 = vmatprep.mubr.bf16.mxu0 %v45
  %803 = vmatmul.mubr.bf16.gmra.mrb[0].mxu0 %v44
  %v804 = vpop.f32.mrb[0].mxu0
  %v805 = vadd.f32 %v765, %v804
  %v806 = vpop.f32.mrb[0].mxu0
  %v807 = vpop.f32.mrb[0].mxu0
  %v808 = vpop.f32.mrb[0].mxu0
  %809 = vdwg.mxu0
  %810 = vmatprep.subr.bf16.mxu0 0
  %811 = vmatpush1.bf16.msra.mxu0 %v578
  %812 = vmatprep.subr.bf16.mxu0 0
  %813 = vmatpush1.bf16.msra.mxu0 %v579
  %814 = vmatprep.subr.bf16.mxu0 0
  %815 = vmatpush1.bf16.msra.mxu0 %v580
  %816 = vmatprep.subr.bf16.mxu0 0
  %817 = vmatpush1.bf16.msra.mxu0 %v581
  %818 = vmatprep.subr.bf16.mxu0 0
  %819 = vmatpush1.bf16.msra.mxu0 %v582
  %820 = vmatprep.subr.bf16.mxu0 0
  %821 = vmatpush1.bf16.msra.mxu0 %v583
  %822 = vmatprep.subr.bf16.mxu0 0
  %823 = vmatpush1.bf16.msra.mxu0 %v584
  %824 = vmatprep.subr.bf16.mxu0 0
  %825 = vmatpush1.bf16.msra.mxu0 %v585
  %826 = vmatprep.subr.bf16.mxu0 0
  %827 = vmatpush1.bf16.msra.mxu0 %v586
  %828 = vmatprep.subr.bf16.mxu0 0
  %829 = vmatpush1.bf16.msra.mxu0 %v587
  %830 = vmatprep.subr.bf16.mxu0 0
  %831 = vmatpush1.bf16.msra.mxu0 %v588
  %832 = vmatprep.subr.bf16.mxu0 0
  %833 = vmatpush1.bf16.msra.mxu0 %v589
  %834 = vmatprep.subr.bf16.mxu0 0
  %835 = vmatpush1.bf16.msra.mxu0 %v590
  %836 = vmatprep.subr.bf16.mxu0 0
  %837 = vmatpush1.bf16.msra.mxu0 %v591
  %838 = vmatprep.subr.bf16.mxu0 0
  %839 = vmatpush1.bf16.msra.mxu0 %v592
  %840 = vmatprep.subr.bf16.mxu0 0
  %841 = vmatpush1.bf16.msra.mxu0 %v593
  %842 = vmatprep.mubr.bf16.mxu0 %v47
  %843 = vmatmul.mubr.bf16.gmra.mrb[0].mxu0 %v46
  %v844 = vpop.f32.mrb[0].mxu0
  %v845 = vadd.f32 %v805, %v844
  %v846 = vpop.f32.mrb[0].mxu0
  %v847 = vpop.f32.mrb[0].mxu0
  %v848 = vpop.f32.mrb[0].mxu0
  %849 = vdwg.mxu0
  %850 = vmatprep.subr.bf16.mxu0 0
  %851 = vmatpush1.bf16.msra.mxu0 %v594
  %852 = vmatprep.subr.bf16.mxu0 0
  %853 = vmatpush1.bf16.msra.mxu0 %v595
  %854 = vmatprep.subr.bf16.mxu0 0
  %855 = vmatpush1.bf16.msra.mxu0 %v596
  %856 = vmatprep.subr.bf16.mxu0 0
  %857 = vmatpush1.bf16.msra.mxu0 %v597
  %858 = vmatprep.subr.bf16.mxu0 0
  %859 = vmatpush1.bf16.msra.mxu0 %v598
  %860 = vmatprep.subr.bf16.mxu0 0
  %861 = vmatpush1.bf16.msra.mxu0 %v599
  %862 = vmatprep.subr.bf16.mxu0 0
  %863 = vmatpush1.bf16.msra.mxu0 %v600
  %864 = vmatprep.subr.bf16.mxu0 0
  %865 = vmatpush1.bf16.msra.mxu0 %v601
  %866 = vmatprep.subr.bf16.mxu0 0
  %867 = vmatpush1.bf16.msra.mxu0 %v602
  %868 = vmatprep.subr.bf16.mxu0 0
  %869 = vmatpush1.bf16.msra.mxu0 %v603
  %870 = vmatprep.subr.bf16.mxu0 0
  %871 = vmatpush1.bf16.msra.mxu0 %v604
  %872 = vmatprep.subr.bf16.mxu0 0
  %873 = vmatpush1.bf16.msra.mxu0 %v605
  %874 = vmatprep.subr.bf16.mxu0 0
  %875 = vmatpush1.bf16.msra.mxu0 %v606
  %876 = vmatprep.subr.bf16.mxu0 0
  %877 = vmatpush1.bf16.msra.mxu0 %v607
  %878 = vmatprep.subr.bf16.mxu0 0
  %879 = vmatpush1.bf16.msra.mxu0 %v608
  %880 = vmatprep.subr.bf16.mxu0 0
  %881 = vmatpush1.bf16.msra.mxu0 %v609
  %882 = vmatprep.mubr.bf16.mxu0 %v49
  %883 = vmatmul.mubr.bf16.gmra.mrb[0].mxu0 %v48
  %v884 = vpop.f32.mrb[0].mxu0
  %v885 = vadd.f32 %v845, %v884
  %v886 = vpop.f32.mrb[0].mxu0
  %v887 = vpop.f32.mrb[0].mxu0
  %v888 = vpop.f32.mrb[0].mxu0
  %889 = vdwg.mxu0
  %v890 = vpack.c.bf16 %v885, %v885
  %v891 = vld [vmem:[%s2] sm:$0xff]
  %v892 = vld [vmem:[%s2 + $0x8] sm:$0xff]
  %v893 = vld [vmem:[%s2 + $0x10] sm:$0xff]
  %v894 = vld [vmem:[%s2 + $0x18] sm:$0xff]
  %v895 = vld [vmem:[%s2 + $0x20] sm:$0xff]
  %v896 = vld [vmem:[%s2 + $0x28] sm:$0xff]
  %v897 = vld [vmem:[%s2 + $0x30] sm:$0xff]
  %v898 = vld [vmem:[%s2 + $0x38] sm:$0xff]
  %v899 = vld [vmem:[%s2 + $0x40] sm:$0xff]
  %v900 = vld [vmem:[%s2 + $0x48] sm:$0xff]
  %v901 = vld [vmem:[%s2 + $0x50] sm:$0xff]
  %v902 = vld [vmem:[%s2 + $0x58] sm:$0xff]
  %v903 = vld [vmem:[%s2 + $0x60] sm:$0xff]
  %v904 = vld [vmem:[%s2 + $0x68] sm:$0xff]
  %v905 = vld [vmem:[%s2 + $0x70] sm:$0xff]
  %v906 = vld [vmem:[%s2 + $0x78] sm:$0xff]
  %v907 = vld [vmem:[%s2 + $0x80] sm:$0xff]
  %v908 = vld [vmem:[%s2 + $0x88] sm:$0xff]
  %v909 = vld [vmem:[%s2 + $0x90] sm:$0xff]
  %v910 = vld [vmem:[%s2 + $0x98] sm:$0xff]
  %v911 = vld [vmem:[%s2 + $0xa0] sm:$0xff]
  %v912 = vld [vmem:[%s2 + $0xa8] sm:$0xff]
  %v913 = vld [vmem:[%s2 + $0xb0] sm:$0xff]
  %v914 = vld [vmem:[%s2 + $0xb8] sm:$0xff]
  %v915 = vld [vmem:[%s2 + $0xc0] sm:$0xff]
  %v916 = vld [vmem:[%s2 + $0xc8] sm:$0xff]
  %v917 = vld [vmem:[%s2 + $0xd0] sm:$0xff]
  %v918 = vld [vmem:[%s2 + $0xd8] sm:$0xff]
  %v919 = vld [vmem:[%s2 + $0xe0] sm:$0xff]
  %v920 = vld [vmem:[%s2 + $0xe8] sm:$0xff]
  %v921 = vld [vmem:[%s2 + $0xf0] sm:$0xff]
  %v922 = vld [vmem:[%s2 + $0xf8] sm:$0xff]
  %v923 = vld [vmem:[%s3] sm:$0xff]
  %v925 = vlaneseq
  %v926 = vshrl.u32 %v925, 7
  %v927 = vsub.s32 0, %v926
  %v928 = vrot.slane %v923, %v927
  %v929 = vlaneseq
  %v930 = vshrl.u32 %v929, 7
  %v931 = vsub.s32 1, %v930
  %v932 = vrot.slane %v923, %v931
  %v933 = vlaneseq
  %v934 = vshrl.u32 %v933, 7
  %v935 = vsub.s32 2, %v934
  %v936 = vrot.slane %v923, %v935
  %v937 = vlaneseq
  %v938 = vshrl.u32 %v937, 7
  %v939 = vsub.s32 3, %v938
  %v940 = vrot.slane %v923, %v939
  %v941 = vlaneseq
  %v942 = vshrl.u32 %v941, 7
  %v943 = vsub.s32 4, %v942
  %v944 = vrot.slane %v923, %v943
  %v945 = vlaneseq
  %v946 = vshrl.u32 %v945, 7
  %v947 = vsub.s32 5, %v946
  %v948 = vrot.slane %v923, %v947
  %v949 = vlaneseq
  %v950 = vshrl.u32 %v949, 7
  %v951 = vsub.s32 6, %v950
  %v952 = vrot.slane %v923, %v951
  %v953 = vlaneseq
  %v954 = vshrl.u32 %v953, 7
  %v955 = vsub.s32 7, %v954
  %v956 = vrot.slane %v923, %v955
  %v997 = vunpack.c.l.b16 %v891
  %v998 = vunpack.c.h.b16 %v891
  %v999 = vunpack.c.l.b16 %v892
  %v1000 = vunpack.c.h.b16 %v892
  %v1001 = vunpack.c.l.b16 %v893
  %v1002 = vunpack.c.h.b16 %v893
  %v1003 = vunpack.c.l.b16 %v894
  %v1004 = vunpack.c.h.b16 %v894
  %v1005 = vunpack.c.l.b16 %v895
  %v1006 = vunpack.c.h.b16 %v895
  %v1007 = vunpack.c.l.b16 %v896
  %v1008 = vunpack.c.h.b16 %v896
  %v1009 = vunpack.c.l.b16 %v897
  %v1010 = vunpack.c.h.b16 %v897
  %v1011 = vunpack.c.l.b16 %v898
  %v1012 = vunpack.c.h.b16 %v898
  %v1013 = vunpack.c.l.b16 %v899
  %v1014 = vunpack.c.h.b16 %v899
  %v1015 = vunpack.c.l.b16 %v900
  %v1016 = vunpack.c.h.b16 %v900
  %v1017 = vunpack.c.l.b16 %v901
  %v1018 = vunpack.c.h.b16 %v901
  %v1019 = vunpack.c.l.b16 %v902
  %v1020 = vunpack.c.h.b16 %v902
  %v1021 = vunpack.c.l.b16 %v903
  %v1022 = vunpack.c.h.b16 %v903
  %v1023 = vunpack.c.l.b16 %v904
  %v1024 = vunpack.c.h.b16 %v904
  %v1025 = vunpack.c.l.b16 %v905
  %v1026 = vunpack.c.h.b16 %v905
  %v1027 = vunpack.c.l.b16 %v906
  %v1028 = vunpack.c.h.b16 %v906
  %v1029 = vunpack.c.l.b16 %v907
  %v1030 = vunpack.c.h.b16 %v907
  %v1031 = vunpack.c.l.b16 %v908
  %v1032 = vunpack.c.h.b16 %v908
  %v1033 = vunpack.c.l.b16 %v909
  %v1034 = vunpack.c.h.b16 %v909
  %v1035 = vunpack.c.l.b16 %v910
  %v1036 = vunpack.c.h.b16 %v910
  %v1037 = vunpack.c.l.b16 %v911
  %v1038 = vunpack.c.h.b16 %v911
  %v1039 = vunpack.c.l.b16 %v912
  %v1040 = vunpack.c.h.b16 %v912
  %v1041 = vunpack.c.l.b16 %v913
  %v1042 = vunpack.c.h.b16 %v913
  %v1043 = vunpack.c.l.b16 %v914
  %v1044 = vunpack.c.h.b16 %v914
  %v1045 = vunpack.c.l.b16 %v915
  %v1046 = vunpack.c.h.b16 %v915
  %v1047 = vunpack.c.l.b16 %v916
  %v1048 = vunpack.c.h.b16 %v916
  %v1049 = vunpack.c.l.b16 %v917
  %v1050 = vunpack.c.h.b16 %v917
  %v1051 = vunpack.c.l.b16 %v918
  %v1052 = vunpack.c.h.b16 %v918
  %v1053 = vunpack.c.l.b16 %v919
  %v1054 = vunpack.c.h.b16 %v919
  %v1055 = vunpack.c.l.b16 %v920
  %v1056 = vunpack.c.h.b16 %v920
  %v1057 = vunpack.c.l.b16 %v921
  %v1058 = vunpack.c.h.b16 %v921
  %v1059 = vunpack.c.l.b16 %v922
  %v1060 = vunpack.c.h.b16 %v922
  %v1061 = vpack.c.b16 %v1005, %v997
  %v1062 = vpack.c.b16 %v1006, %v998
  %v1063 = vpack.c.b16 %v1007, %v999
  %v1064 = vpack.c.b16 %v1008, %v1000
  %v1065 = vpack.c.b16 %v1009, %v1001
  %v1066 = vpack.c.b16 %v1010, %v1002
  %v1067 = vpack.c.b16 %v1011, %v1003
  %v1068 = vpack.c.b16 %v1012, %v1004
  %v1069 = vpack.c.b16 %v1021, %v1013
  %v1070 = vpack.c.b16 %v1022, %v1014
  %v1071 = vpack.c.b16 %v1023, %v1015
  %v1072 = vpack.c.b16 %v1024, %v1016
  %v1073 = vpack.c.b16 %v1025, %v1017
  %v1074 = vpack.c.b16 %v1026, %v1018
  %v1075 = vpack.c.b16 %v1027, %v1019
  %v1076 = vpack.c.b16 %v1028, %v1020
  %v1077 = vpack.c.b16 %v1037, %v1029
  %v1078 = vpack.c.b16 %v1038, %v1030
  %v1079 = vpack.c.b16 %v1039, %v1031
  %v1080 = vpack.c.b16 %v1040, %v1032
  %v1081 = vpack.c.b16 %v1041, %v1033
  %v1082 = vpack.c.b16 %v1042, %v1034
  %v1083 = vpack.c.b16 %v1043, %v1035
  %v1084 = vpack.c.b16 %v1044, %v1036
  %v1085 = vpack.c.b16 %v1053, %v1045
  %v1086 = vpack.c.b16 %v1054, %v1046
  %v1087 = vpack.c.b16 %v1055, %v1047
  %v1088 = vpack.c.b16 %v1056, %v1048
  %v1089 = vpack.c.b16 %v1057, %v1049
  %v1090 = vpack.c.b16 %v1058, %v1050
  %v1091 = vpack.c.b16 %v1059, %v1051
  %v1092 = vpack.c.b16 %v1060, %v1052
  %vm1125 = vcmask 523264
  %v1127 = vsel %vm1125, %v890, 0
  %1129 = vmatprep.subr.bf16.mxu0 %v1062
  %1130 = vmatpush1.bf16.msra.mxu0 %v1061
  %1131 = vmatprep.subr.bf16.mxu0 %v1070
  %1132 = vmatpush1.bf16.msra.mxu0 %v1069
  %1133 = vmatprep.subr.bf16.mxu0 %v1078
  %1134 = vmatpush1.bf16.msra.mxu0 %v1077
  %1135 = vmatprep.subr.bf16.mxu0 %v1086
  %1136 = vmatpush1.bf16.msra.mxu0 %v1085
  %1137 = vmatprep.subr.bf16.mxu0 0
  %1138 = vmatpush1.bf16.msra.mxu0 0
  %1139 = vmatprep.subr.bf16.mxu0 0
  %1140 = vmatpush1.bf16.msra.mxu0 0
  %1141 = vmatprep.subr.bf16.mxu0 0
  %1142 = vmatpush1.bf16.msra.mxu0 0
  %1143 = vmatprep.subr.bf16.mxu0 0
  %1144 = vmatpush1.bf16.msra.mxu0 0
  %1145 = vmatprep.subr.bf16.mxu0 0
  %1146 = vmatpush1.bf16.msra.mxu0 0
  %1147 = vmatprep.subr.bf16.mxu0 0
  %1148 = vmatpush1.bf16.msra.mxu0 0
  %1149 = vmatprep.subr.bf16.mxu0 0
  %1150 = vmatpush1.bf16.msra.mxu0 0
  %1151 = vmatprep.subr.bf16.mxu0 0
  %1152 = vmatpush1.bf16.msra.mxu0 0
  %1153 = vmatprep.subr.bf16.mxu0 0
  %1154 = vmatpush1.bf16.msra.mxu0 0
  %1155 = vmatprep.subr.bf16.mxu0 0
  %1156 = vmatpush1.bf16.msra.mxu0 0
  %1157 = vmatprep.subr.bf16.mxu0 0
  %1158 = vmatpush1.bf16.msra.mxu0 0
  %1159 = vmatprep.subr.bf16.mxu0 0
  %1160 = vmatpush1.bf16.msra.mxu0 0
  %1161 = vmatprep.mubr.bf16.mxu0 0
  %1162 = vmatmul.mubr.bf16.gmra.mrb[0].mxu0 %v1127
  %v1163 = vpop.f32.mrb[0].mxu0
  %v1164 = vadd.f32 %v928, %v1163
  %v1165 = vpop.f32.mrb[0].mxu0
  %v1166 = vadd.f32 %v932, %v1165
  %v1167 = vpop.f32.mrb[0].mxu0
  %v1168 = vpop.f32.mrb[0].mxu0
  %1169 = vdwg.mxu0
  %1170 = vmatprep.subr.bf16.mxu0 %v1064
  %1171 = vmatpush1.bf16.msra.mxu0 %v1063
  %1172 = vmatprep.subr.bf16.mxu0 %v1072
  %1173 = vmatpush1.bf16.msra.mxu0 %v1071
  %1174 = vmatprep.subr.bf16.mxu0 %v1080
  %1175 = vmatpush1.bf16.msra.mxu0 %v1079
  %1176 = vmatprep.subr.bf16.mxu0 %v1088
  %1177 = vmatpush1.bf16.msra.mxu0 %v1087
  %1178 = vmatprep.subr.bf16.mxu0 0
  %1179 = vmatpush1.bf16.msra.mxu0 0
  %1180 = vmatprep.subr.bf16.mxu0 0
  %1181 = vmatpush1.bf16.msra.mxu0 0
  %1182 = vmatprep.subr.bf16.mxu0 0
  %1183 = vmatpush1.bf16.msra.mxu0 0
  %1184 = vmatprep.subr.bf16.mxu0 0
  %1185 = vmatpush1.bf16.msra.mxu0 0
  %1186 = vmatprep.subr.bf16.mxu0 0
  %1187 = vmatpush1.bf16.msra.mxu0 0
  %1188 = vmatprep.subr.bf16.mxu0 0
  %1189 = vmatpush1.bf16.msra.mxu0 0
  %1190 = vmatprep.subr.bf16.mxu0 0
  %1191 = vmatpush1.bf16.msra.mxu0 0
  %1192 = vmatprep.subr.bf16.mxu0 0
  %1193 = vmatpush1.bf16.msra.mxu0 0
  %1194 = vmatprep.subr.bf16.mxu0 0
  %1195 = vmatpush1.bf16.msra.mxu0 0
  %1196 = vmatprep.subr.bf16.mxu0 0
  %1197 = vmatpush1.bf16.msra.mxu0 0
  %1198 = vmatprep.subr.bf16.mxu0 0
  %1199 = vmatpush1.bf16.msra.mxu0 0
  %1200 = vmatprep.subr.bf16.mxu0 0
  %1201 = vmatpush1.bf16.msra.mxu0 0
  %1202 = vmatprep.mubr.bf16.mxu0 0
  %1203 = vmatmul.mubr.bf16.gmra.mrb[0].mxu0 %v1127
  %v1204 = vpop.f32.mrb[0].mxu0
  %v1205 = vadd.f32 %v936, %v1204
  %v1206 = vpop.f32.mrb[0].mxu0
  %v1207 = vadd.f32 %v940, %v1206
  %v1208 = vpop.f32.mrb[0].mxu0
  %v1209 = vpop.f32.mrb[0].mxu0
  %1210 = vdwg.mxu0
  %1211 = vmatprep.subr.bf16.mxu0 %v1066
  %1212 = vmatpush1.bf16.msra.mxu0 %v1065
  %1213 = vmatprep.subr.bf16.mxu0 %v1074
  %1214 = vmatpush1.bf16.msra.mxu0 %v1073
  %1215 = vmatprep.subr.bf16.mxu0 %v1082
  %1216 = vmatpush1.bf16.msra.mxu0 %v1081
  %1217 = vmatprep.subr.bf16.mxu0 %v1090
  %1218 = vmatpush1.bf16.msra.mxu0 %v1089
  %1219 = vmatprep.subr.bf16.mxu0 0
  %1220 = vmatpush1.bf16.msra.mxu0 0
  %1221 = vmatprep.subr.bf16.mxu0 0
  %1222 = vmatpush1.bf16.msra.mxu0 0
  %1223 = vmatprep.subr.bf16.mxu0 0
  %1224 = vmatpush1.bf16.msra.mxu0 0
  %1225 = vmatprep.subr.bf16.mxu0 0
  %1226 = vmatpush1.bf16.msra.mxu0 0
  %1227 = vmatprep.subr.bf16.mxu0 0
  %1228 = vmatpush1.bf16.msra.mxu0 0
  %1229 = vmatprep.subr.bf16.mxu0 0
  %1230 = vmatpush1.bf16.msra.mxu0 0
  %1231 = vmatprep.subr.bf16.mxu0 0
  %1232 = vmatpush1.bf16.msra.mxu0 0
  %1233 = vmatprep.subr.bf16.mxu0 0
  %1234 = vmatpush1.bf16.msra.mxu0 0
  %1235 = vmatprep.subr.bf16.mxu0 0
  %1236 = vmatpush1.bf16.msra.mxu0 0
  %1237 = vmatprep.subr.bf16.mxu0 0
  %1238 = vmatpush1.bf16.msra.mxu0 0
  %1239 = vmatprep.subr.bf16.mxu0 0
  %1240 = vmatpush1.bf16.msra.mxu0 0
  %1241 = vmatprep.subr.bf16.mxu0 0
  %1242 = vmatpush1.bf16.msra.mxu0 0
  %1243 = vmatprep.mubr.bf16.mxu0 0
  %1244 = vmatmul.mubr.bf16.gmra.mrb[0].mxu0 %v1127
  %v1245 = vpop.f32.mrb[0].mxu0
  %v1246 = vadd.f32 %v944, %v1245
  %v1247 = vpop.f32.mrb[0].mxu0
  %v1248 = vadd.f32 %v948, %v1247
  %v1249 = vpop.f32.mrb[0].mxu0
  %v1250 = vpop.f32.mrb[0].mxu0
  %1251 = vdwg.mxu0
  %1252 = vmatprep.subr.bf16.mxu0 %v1068
  %1253 = vmatpush1.bf16.msra.mxu0 %v1067
  %1254 = vmatprep.subr.bf16.mxu0 %v1076
  %1255 = vmatpush1.bf16.msra.mxu0 %v1075
  %1256 = vmatprep.subr.bf16.mxu0 %v1084
  %1257 = vmatpush1.bf16.msra.mxu0 %v1083
  %1258 = vmatprep.subr.bf16.mxu0 %v1092
  %1259 = vmatpush1.bf16.msra.mxu0 %v1091
  %1260 = vmatprep.subr.bf16.mxu0 0
  %1261 = vmatpush1.bf16.msra.mxu0 0
  %1262 = vmatprep.subr.bf16.mxu0 0
  %1263 = vmatpush1.bf16.msra.mxu0 0
  %1264 = vmatprep.subr.bf16.mxu0 0
  %1265 = vmatpush1.bf16.msra.mxu0 0
  %1266 = vmatprep.subr.bf16.mxu0 0
  %1267 = vmatpush1.bf16.msra.mxu0 0
  %1268 = vmatprep.subr.bf16.mxu0 0
  %1269 = vmatpush1.bf16.msra.mxu0 0
  %1270 = vmatprep.subr.bf16.mxu0 0
  %1271 = vmatpush1.bf16.msra.mxu0 0
  %1272 = vmatprep.subr.bf16.mxu0 0
  %1273 = vmatpush1.bf16.msra.mxu0 0
  %1274 = vmatprep.subr.bf16.mxu0 0
  %1275 = vmatpush1.bf16.msra.mxu0 0
  %1276 = vmatprep.subr.bf16.mxu0 0
  %1277 = vmatpush1.bf16.msra.mxu0 0
  %1278 = vmatprep.subr.bf16.mxu0 0
  %1279 = vmatpush1.bf16.msra.mxu0 0
  %1280 = vmatprep.subr.bf16.mxu0 0
  %1281 = vmatpush1.bf16.msra.mxu0 0
  %1282 = vmatprep.subr.bf16.mxu0 0
  %1283 = vmatpush1.bf16.msra.mxu0 0
  %1284 = vmatprep.mubr.bf16.mxu0 0
  %1285 = vmatmul.mubr.bf16.gmra.mrb[0].mxu0 %v1127
  %v1286 = vpop.f32.mrb[0].mxu0
  %v1287 = vadd.f32 %v952, %v1286
  %v1288 = vpop.f32.mrb[0].mxu0
  %v1289 = vadd.f32 %v956, %v1288
  %v1290 = vpop.f32.mrb[0].mxu0
  %v1291 = vpop.f32.mrb[0].mxu0
  %1292 = vdwg.mxu0
  %v1293 = vmax.f32 %v1164, 0.0
  %v1294 = vmax.f32 %v1166, 0.0
  %v1295 = vmax.f32 %v1205, 0.0
  %v1296 = vmax.f32 %v1207, 0.0
  %v1297 = vmax.f32 %v1246, 0.0
  %v1298 = vmax.f32 %v1248, 0.0
  %v1299 = vmax.f32 %v1287, 0.0
  %v1300 = vmax.f32 %v1289, 0.0
  %v1301 = vpack.c.bf16 %v1293, %v1293
  %v1302 = vpack.c.bf16 %v1294, %v1294
  %v1303 = vpack.c.bf16 %v1295, %v1295
  %v1304 = vpack.c.bf16 %v1296, %v1296
  %v1305 = vpack.c.bf16 %v1297, %v1297
  %v1306 = vpack.c.bf16 %v1298, %v1298
  %v1307 = vpack.c.bf16 %v1299, %v1299
  %v1308 = vpack.c.bf16 %v1300, %v1300
  %v1309 = vld [vmem:[%s4] sm:$0xff]
  %v1310 = vld [vmem:[%s4 + $0x8] sm:$0xff]
  %v1311 = vld [vmem:[%s4 + $0x10] sm:$0xff]
  %v1312 = vld [vmem:[%s4 + $0x18] sm:$0xff]
  %v1313 = vld [vmem:[%s4 + $0x20] sm:$0xff]
  %v1314 = vld [vmem:[%s4 + $0x28] sm:$0xff]
  %v1315 = vld [vmem:[%s4 + $0x30] sm:$0xff]
  %v1316 = vld [vmem:[%s4 + $0x38] sm:$0xff]
  %v1317 = vld [vmem:[%s4 + $0x40] sm:$0xff]
  %v1318 = vld [vmem:[%s4 + $0x48] sm:$0xff]
  %v1319 = vld [vmem:[%s4 + $0x50] sm:$0xff]
  %v1320 = vld [vmem:[%s4 + $0x58] sm:$0xff]
  %v1321 = vld [vmem:[%s4 + $0x60] sm:$0xff]
  %v1322 = vld [vmem:[%s4 + $0x68] sm:$0xff]
  %v1323 = vld [vmem:[%s4 + $0x70] sm:$0xff]
  %v1324 = vld [vmem:[%s4 + $0x78] sm:$0xff]
  %v1325 = vld [vmem:[%s4 + $0x80] sm:$0xff]
  %v1326 = vld [vmem:[%s4 + $0x88] sm:$0xff]
  %v1327 = vld [vmem:[%s4 + $0x90] sm:$0xff]
  %v1328 = vld [vmem:[%s4 + $0x98] sm:$0xff]
  %v1329 = vld [vmem:[%s4 + $0xa0] sm:$0xff]
  %v1330 = vld [vmem:[%s4 + $0xa8] sm:$0xff]
  %v1331 = vld [vmem:[%s4 + $0xb0] sm:$0xff]
  %v1332 = vld [vmem:[%s4 + $0xb8] sm:$0xff]
  %v1333 = vld [vmem:[%s4 + $0xc0] sm:$0xff]
  %v1334 = vld [vmem:[%s4 + $0xc8] sm:$0xff]
  %v1335 = vld [vmem:[%s4 + $0xd0] sm:$0xff]
  %v1336 = vld [vmem:[%s4 + $0xd8] sm:$0xff]
  %v1337 = vld [vmem:[%s4 + $0xe0] sm:$0xff]
  %v1338 = vld [vmem:[%s4 + $0xe8] sm:$0xff]
  %v1339 = vld [vmem:[%s4 + $0xf0] sm:$0xff]
  %v1340 = vld [vmem:[%s4 + $0xf8] sm:$0xff]
  %v1341 = vld [vmem:[%s4 + $0x100] sm:$0xff]
  %v1342 = vld [vmem:[%s4 + $0x108] sm:$0xff]
  %v1343 = vld [vmem:[%s4 + $0x110] sm:$0xff]
  %v1344 = vld [vmem:[%s4 + $0x118] sm:$0xff]
  %v1345 = vld [vmem:[%s4 + $0x120] sm:$0xff]
  %v1346 = vld [vmem:[%s4 + $0x128] sm:$0xff]
  %v1347 = vld [vmem:[%s4 + $0x130] sm:$0xff]
  %v1348 = vld [vmem:[%s4 + $0x138] sm:$0xff]
  %v1349 = vld [vmem:[%s4 + $0x140] sm:$0xff]
  %v1350 = vld [vmem:[%s4 + $0x148] sm:$0xff]
  %v1351 = vld [vmem:[%s4 + $0x150] sm:$0xff]
  %v1352 = vld [vmem:[%s4 + $0x158] sm:$0xff]
  %v1353 = vld [vmem:[%s4 + $0x160] sm:$0xff]
  %v1354 = vld [vmem:[%s4 + $0x168] sm:$0xff]
  %v1355 = vld [vmem:[%s4 + $0x170] sm:$0xff]
  %v1356 = vld [vmem:[%s4 + $0x178] sm:$0xff]
  %v1357 = vld [vmem:[%s4 + $0x180] sm:$0xff]
  %v1358 = vld [vmem:[%s4 + $0x188] sm:$0xff]
  %v1359 = vld [vmem:[%s4 + $0x190] sm:$0xff]
  %v1360 = vld [vmem:[%s4 + $0x198] sm:$0xff]
  %v1361 = vld [vmem:[%s4 + $0x1a0] sm:$0xff]
  %v1362 = vld [vmem:[%s4 + $0x1a8] sm:$0xff]
  %v1363 = vld [vmem:[%s4 + $0x1b0] sm:$0xff]
  %v1364 = vld [vmem:[%s4 + $0x1b8] sm:$0xff]
  %v1365 = vld [vmem:[%s4 + $0x1c0] sm:$0xff]
  %v1366 = vld [vmem:[%s4 + $0x1c8] sm:$0xff]
  %v1367 = vld [vmem:[%s4 + $0x1d0] sm:$0xff]
  %v1368 = vld [vmem:[%s4 + $0x1d8] sm:$0xff]
  %v1369 = vld [vmem:[%s4 + $0x1e0] sm:$0xff]
  %v1370 = vld [vmem:[%s4 + $0x1e8] sm:$0xff]
  %v1371 = vld [vmem:[%s4 + $0x1f0] sm:$0xff]
  %v1372 = vld [vmem:[%s4 + $0x1f8] sm:$0xff]
  %v1373 = vld [vmem:[%s4 + $0x200] sm:$0xff]
  %v1374 = vld [vmem:[%s4 + $0x208] sm:$0xff]
  %v1375 = vld [vmem:[%s4 + $0x210] sm:$0xff]
  %v1376 = vld [vmem:[%s4 + $0x218] sm:$0xff]
  %v1377 = vld [vmem:[%s4 + $0x220] sm:$0xff]
  %v1378 = vld [vmem:[%s4 + $0x228] sm:$0xff]
  %v1379 = vld [vmem:[%s4 + $0x230] sm:$0xff]
  %v1380 = vld [vmem:[%s4 + $0x238] sm:$0xff]
  %v1381 = vld [vmem:[%s4 + $0x240] sm:$0xff]
  %v1382 = vld [vmem:[%s4 + $0x248] sm:$0xff]
  %v1383 = vld [vmem:[%s4 + $0x250] sm:$0xff]
  %v1384 = vld [vmem:[%s4 + $0x258] sm:$0xff]
  %v1385 = vld [vmem:[%s4 + $0x260] sm:$0xff]
  %v1386 = vld [vmem:[%s4 + $0x268] sm:$0xff]
  %v1387 = vld [vmem:[%s4 + $0x270] sm:$0xff]
  %v1388 = vld [vmem:[%s4 + $0x278] sm:$0xff]
  %v1389 = vld [vmem:[%s4 + $0x280] sm:$0xff]
  %v1390 = vld [vmem:[%s4 + $0x288] sm:$0xff]
  %v1391 = vld [vmem:[%s4 + $0x290] sm:$0xff]
  %v1392 = vld [vmem:[%s4 + $0x298] sm:$0xff]
  %v1393 = vld [vmem:[%s4 + $0x2a0] sm:$0xff]
  %v1394 = vld [vmem:[%s4 + $0x2a8] sm:$0xff]
  %v1395 = vld [vmem:[%s4 + $0x2b0] sm:$0xff]
  %v1396 = vld [vmem:[%s4 + $0x2b8] sm:$0xff]
  %v1397 = vld [vmem:[%s4 + $0x2c0] sm:$0xff]
  %v1398 = vld [vmem:[%s4 + $0x2c8] sm:$0xff]
  %v1399 = vld [vmem:[%s4 + $0x2d0] sm:$0xff]
  %v1400 = vld [vmem:[%s4 + $0x2d8] sm:$0xff]
  %v1401 = vld [vmem:[%s4 + $0x2e0] sm:$0xff]
  %v1402 = vld [vmem:[%s4 + $0x2e8] sm:$0xff]
  %v1403 = vld [vmem:[%s4 + $0x2f0] sm:$0xff]
  %v1404 = vld [vmem:[%s4 + $0x2f8] sm:$0xff]
  %v1405 = vld [vmem:[%s4 + $0x300] sm:$0xff]
  %v1406 = vld [vmem:[%s4 + $0x308] sm:$0xff]
  %v1407 = vld [vmem:[%s4 + $0x310] sm:$0xff]
  %v1408 = vld [vmem:[%s4 + $0x318] sm:$0xff]
  %v1409 = vld [vmem:[%s4 + $0x320] sm:$0xff]
  %v1410 = vld [vmem:[%s4 + $0x328] sm:$0xff]
  %v1411 = vld [vmem:[%s4 + $0x330] sm:$0xff]
  %v1412 = vld [vmem:[%s4 + $0x338] sm:$0xff]
  %v1413 = vld [vmem:[%s4 + $0x340] sm:$0xff]
  %v1414 = vld [vmem:[%s4 + $0x348] sm:$0xff]
  %v1415 = vld [vmem:[%s4 + $0x350] sm:$0xff]
  %v1416 = vld [vmem:[%s4 + $0x358] sm:$0xff]
  %v1417 = vld [vmem:[%s4 + $0x360] sm:$0xff]
  %v1418 = vld [vmem:[%s4 + $0x368] sm:$0xff]
  %v1419 = vld [vmem:[%s4 + $0x370] sm:$0xff]
  %v1420 = vld [vmem:[%s4 + $0x378] sm:$0xff]
  %v1421 = vld [vmem:[%s4 + $0x380] sm:$0xff]
  %v1422 = vld [vmem:[%s4 + $0x388] sm:$0xff]
  %v1423 = vld [vmem:[%s4 + $0x390] sm:$0xff]
  %v1424 = vld [vmem:[%s4 + $0x398] sm:$0xff]
  %v1425 = vld [vmem:[%s4 + $0x3a0] sm:$0xff]
  %v1426 = vld [vmem:[%s4 + $0x3a8] sm:$0xff]
  %v1427 = vld [vmem:[%s4 + $0x3b0] sm:$0xff]
  %v1428 = vld [vmem:[%s4 + $0x3b8] sm:$0xff]
  %v1429 = vld [vmem:[%s4 + $0x3c0] sm:$0xff]
  %v1430 = vld [vmem:[%s4 + $0x3c8] sm:$0xff]
  %v1431 = vld [vmem:[%s4 + $0x3d0] sm:$0xff]
  %v1432 = vld [vmem:[%s4 + $0x3d8] sm:$0xff]
  %v1433 = vld [vmem:[%s4 + $0x3e0] sm:$0xff]
  %v1434 = vld [vmem:[%s4 + $0x3e8] sm:$0xff]
  %v1435 = vld [vmem:[%s4 + $0x3f0] sm:$0xff]
  %v1436 = vld [vmem:[%s4 + $0x3f8] sm:$0xff]
  %v1437 = vld [vmem:[%s4 + $0x400] sm:$0xff]
  %v1438 = vld [vmem:[%s4 + $0x408] sm:$0xff]
  %v1439 = vld [vmem:[%s4 + $0x410] sm:$0xff]
  %v1440 = vld [vmem:[%s4 + $0x418] sm:$0xff]
  %v1441 = vld [vmem:[%s4 + $0x420] sm:$0xff]
  %v1442 = vld [vmem:[%s4 + $0x428] sm:$0xff]
  %v1443 = vld [vmem:[%s4 + $0x430] sm:$0xff]
  %v1444 = vld [vmem:[%s4 + $0x438] sm:$0xff]
  %v1445 = vld [vmem:[%s4 + $0x440] sm:$0xff]
  %v1446 = vld [vmem:[%s4 + $0x448] sm:$0xff]
  %v1447 = vld [vmem:[%s4 + $0x450] sm:$0xff]
  %v1448 = vld [vmem:[%s4 + $0x458] sm:$0xff]
  %v1449 = vld [vmem:[%s4 + $0x460] sm:$0xff]
  %v1450 = vld [vmem:[%s4 + $0x468] sm:$0xff]
  %v1451 = vld [vmem:[%s4 + $0x470] sm:$0xff]
  %v1452 = vld [vmem:[%s4 + $0x478] sm:$0xff]
  %v1453 = vld [vmem:[%s4 + $0x480] sm:$0xff]
  %v1454 = vld [vmem:[%s4 + $0x488] sm:$0xff]
  %v1455 = vld [vmem:[%s4 + $0x490] sm:$0xff]
  %v1456 = vld [vmem:[%s4 + $0x498] sm:$0xff]
  %v1457 = vld [vmem:[%s4 + $0x4a0] sm:$0xff]
  %v1458 = vld [vmem:[%s4 + $0x4a8] sm:$0xff]
  %v1459 = vld [vmem:[%s4 + $0x4b0] sm:$0xff]
  %v1460 = vld [vmem:[%s4 + $0x4b8] sm:$0xff]
  %v1461 = vld [vmem:[%s4 + $0x4c0] sm:$0xff]
  %v1462 = vld [vmem:[%s4 + $0x4c8] sm:$0xff]
  %v1463 = vld [vmem:[%s4 + $0x4d0] sm:$0xff]
  %v1464 = vld [vmem:[%s4 + $0x4d8] sm:$0xff]
  %v1465 = vld [vmem:[%s4 + $0x4e0] sm:$0xff]
  %v1466 = vld [vmem:[%s4 + $0x4e8] sm:$0xff]
  %v1467 = vld [vmem:[%s4 + $0x4f0] sm:$0xff]
  %v1468 = vld [vmem:[%s4 + $0x4f8] sm:$0xff]
  %v1469 = vld [vmem:[%s4 + $0x500] sm:$0xff]
  %v1470 = vld [vmem:[%s4 + $0x508] sm:$0xff]
  %v1471 = vld [vmem:[%s4 + $0x510] sm:$0xff]
  %v1472 = vld [vmem:[%s4 + $0x518] sm:$0xff]
  %v1473 = vld [vmem:[%s4 + $0x520] sm:$0xff]
  %v1474 = vld [vmem:[%s4 + $0x528] sm:$0xff]
  %v1475 = vld [vmem:[%s4 + $0x530] sm:$0xff]
  %v1476 = vld [vmem:[%s4 + $0x538] sm:$0xff]
  %v1477 = vld [vmem:[%s4 + $0x540] sm:$0xff]
  %v1478 = vld [vmem:[%s4 + $0x548] sm:$0xff]
  %v1479 = vld [vmem:[%s4 + $0x550] sm:$0xff]
  %v1480 = vld [vmem:[%s4 + $0x558] sm:$0xff]
  %v1481 = vld [vmem:[%s4 + $0x560] sm:$0xff]
  %v1482 = vld [vmem:[%s4 + $0x568] sm:$0xff]
  %v1483 = vld [vmem:[%s4 + $0x570] sm:$0xff]
  %v1484 = vld [vmem:[%s4 + $0x578] sm:$0xff]
  %v1485 = vld [vmem:[%s4 + $0x580] sm:$0xff]
  %v1486 = vld [vmem:[%s4 + $0x588] sm:$0xff]
  %v1487 = vld [vmem:[%s4 + $0x590] sm:$0xff]
  %v1488 = vld [vmem:[%s4 + $0x598] sm:$0xff]
  %v1489 = vld [vmem:[%s4 + $0x5a0] sm:$0xff]
  %v1490 = vld [vmem:[%s4 + $0x5a8] sm:$0xff]
  %v1491 = vld [vmem:[%s4 + $0x5b0] sm:$0xff]
  %v1492 = vld [vmem:[%s4 + $0x5b8] sm:$0xff]
  %v1493 = vld [vmem:[%s4 + $0x5c0] sm:$0xff]
  %v1494 = vld [vmem:[%s4 + $0x5c8] sm:$0xff]
  %v1495 = vld [vmem:[%s4 + $0x5d0] sm:$0xff]
  %v1496 = vld [vmem:[%s4 + $0x5d8] sm:$0xff]
  %v1497 = vld [vmem:[%s4 + $0x5e0] sm:$0xff]
  %v1498 = vld [vmem:[%s4 + $0x5e8] sm:$0xff]
  %v1499 = vld [vmem:[%s4 + $0x5f0] sm:$0xff]
  %v1500 = vld [vmem:[%s4 + $0x5f8] sm:$0xff]
  %v1501 = vld [vmem:[%s4 + $0x600] sm:$0xff]
  %v1502 = vld [vmem:[%s4 + $0x608] sm:$0xff]
  %v1503 = vld [vmem:[%s4 + $0x610] sm:$0xff]
  %v1504 = vld [vmem:[%s4 + $0x618] sm:$0xff]
  %v1505 = vld [vmem:[%s4 + $0x620] sm:$0xff]
  %v1506 = vld [vmem:[%s4 + $0x628] sm:$0xff]
  %v1507 = vld [vmem:[%s4 + $0x630] sm:$0xff]
  %v1508 = vld [vmem:[%s4 + $0x638] sm:$0xff]
  %v1509 = vld [vmem:[%s4 + $0x640] sm:$0xff]
  %v1510 = vld [vmem:[%s4 + $0x648] sm:$0xff]
  %v1511 = vld [vmem:[%s4 + $0x650] sm:$0xff]
  %v1512 = vld [vmem:[%s4 + $0x658] sm:$0xff]
  %v1513 = vld [vmem:[%s4 + $0x660] sm:$0xff]
  %v1514 = vld [vmem:[%s4 + $0x668] sm:$0xff]
  %v1515 = vld [vmem:[%s4 + $0x670] sm:$0xff]
  %v1516 = vld [vmem:[%s4 + $0x678] sm:$0xff]
  %v1517 = vld [vmem:[%s4 + $0x680] sm:$0xff]
  %v1518 = vld [vmem:[%s4 + $0x688] sm:$0xff]
  %v1519 = vld [vmem:[%s4 + $0x690] sm:$0xff]
  %v1520 = vld [vmem:[%s4 + $0x698] sm:$0xff]
  %v1521 = vld [vmem:[%s4 + $0x6a0] sm:$0xff]
  %v1522 = vld [vmem:[%s4 + $0x6a8] sm:$0xff]
  %v1523 = vld [vmem:[%s4 + $0x6b0] sm:$0xff]
  %v1524 = vld [vmem:[%s4 + $0x6b8] sm:$0xff]
  %v1525 = vld [vmem:[%s4 + $0x6c0] sm:$0xff]
  %v1526 = vld [vmem:[%s4 + $0x6c8] sm:$0xff]
  %v1527 = vld [vmem:[%s4 + $0x6d0] sm:$0xff]
  %v1528 = vld [vmem:[%s4 + $0x6d8] sm:$0xff]
  %v1529 = vld [vmem:[%s4 + $0x6e0] sm:$0xff]
  %v1530 = vld [vmem:[%s4 + $0x6e8] sm:$0xff]
  %v1531 = vld [vmem:[%s4 + $0x6f0] sm:$0xff]
  %v1532 = vld [vmem:[%s4 + $0x6f8] sm:$0xff]
  %v1533 = vld [vmem:[%s4 + $0x700] sm:$0xff]
  %v1534 = vld [vmem:[%s4 + $0x708] sm:$0xff]
  %v1535 = vld [vmem:[%s4 + $0x710] sm:$0xff]
  %v1536 = vld [vmem:[%s4 + $0x718] sm:$0xff]
  %v1537 = vld [vmem:[%s4 + $0x720] sm:$0xff]
  %v1538 = vld [vmem:[%s4 + $0x728] sm:$0xff]
  %v1539 = vld [vmem:[%s4 + $0x730] sm:$0xff]
  %v1540 = vld [vmem:[%s4 + $0x738] sm:$0xff]
  %v1541 = vld [vmem:[%s4 + $0x740] sm:$0xff]
  %v1542 = vld [vmem:[%s4 + $0x748] sm:$0xff]
  %v1543 = vld [vmem:[%s4 + $0x750] sm:$0xff]
  %v1544 = vld [vmem:[%s4 + $0x758] sm:$0xff]
  %v1545 = vld [vmem:[%s4 + $0x760] sm:$0xff]
  %v1546 = vld [vmem:[%s4 + $0x768] sm:$0xff]
  %v1547 = vld [vmem:[%s4 + $0x770] sm:$0xff]
  %v1548 = vld [vmem:[%s4 + $0x778] sm:$0xff]
  %v1549 = vld [vmem:[%s4 + $0x780] sm:$0xff]
  %v1550 = vld [vmem:[%s4 + $0x788] sm:$0xff]
  %v1551 = vld [vmem:[%s4 + $0x790] sm:$0xff]
  %v1552 = vld [vmem:[%s4 + $0x798] sm:$0xff]
  %v1553 = vld [vmem:[%s4 + $0x7a0] sm:$0xff]
  %v1554 = vld [vmem:[%s4 + $0x7a8] sm:$0xff]
  %v1555 = vld [vmem:[%s4 + $0x7b0] sm:$0xff]
  %v1556 = vld [vmem:[%s4 + $0x7b8] sm:$0xff]
  %v1557 = vld [vmem:[%s4 + $0x7c0] sm:$0xff]
  %v1558 = vld [vmem:[%s4 + $0x7c8] sm:$0xff]
  %v1559 = vld [vmem:[%s4 + $0x7d0] sm:$0xff]
  %v1560 = vld [vmem:[%s4 + $0x7d8] sm:$0xff]
  %v1561 = vld [vmem:[%s4 + $0x7e0] sm:$0xff]
  %v1562 = vld [vmem:[%s4 + $0x7e8] sm:$0xff]
  %v1563 = vld [vmem:[%s4 + $0x7f0] sm:$0xff]
  %v1564 = vld [vmem:[%s4 + $0x7f8] sm:$0xff]
  %v1565 = vld [vmem:[%s4 + $0x800] sm:$0xff]
  %v1566 = vld [vmem:[%s4 + $0x808] sm:$0xff]
  %v1567 = vld [vmem:[%s4 + $0x810] sm:$0xff]
  %v1568 = vld [vmem:[%s4 + $0x818] sm:$0xff]
  %v1569 = vld [vmem:[%s4 + $0x820] sm:$0xff]
  %v1570 = vld [vmem:[%s4 + $0x828] sm:$0xff]
  %v1571 = vld [vmem:[%s4 + $0x830] sm:$0xff]
  %v1572 = vld [vmem:[%s4 + $0x838] sm:$0xff]
  %v1573 = vld [vmem:[%s4 + $0x840] sm:$0xff]
  %v1574 = vld [vmem:[%s4 + $0x848] sm:$0xff]
  %v1575 = vld [vmem:[%s4 + $0x850] sm:$0xff]
  %v1576 = vld [vmem:[%s4 + $0x858] sm:$0xff]
  %v1577 = vld [vmem:[%s4 + $0x860] sm:$0xff]
  %v1578 = vld [vmem:[%s4 + $0x868] sm:$0xff]
  %v1579 = vld [vmem:[%s4 + $0x870] sm:$0xff]
  %v1580 = vld [vmem:[%s4 + $0x878] sm:$0xff]
  %v1581 = vld [vmem:[%s4 + $0x880] sm:$0xff]
  %v1582 = vld [vmem:[%s4 + $0x888] sm:$0xff]
  %v1583 = vld [vmem:[%s4 + $0x890] sm:$0xff]
  %v1584 = vld [vmem:[%s4 + $0x898] sm:$0xff]
  %v1585 = vld [vmem:[%s4 + $0x8a0] sm:$0xff]
  %v1586 = vld [vmem:[%s4 + $0x8a8] sm:$0xff]
  %v1587 = vld [vmem:[%s4 + $0x8b0] sm:$0xff]
  %v1588 = vld [vmem:[%s4 + $0x8b8] sm:$0xff]
  %v1589 = vld [vmem:[%s4 + $0x8c0] sm:$0xff]
  %v1590 = vld [vmem:[%s4 + $0x8c8] sm:$0xff]
  %v1591 = vld [vmem:[%s4 + $0x8d0] sm:$0xff]
  %v1592 = vld [vmem:[%s4 + $0x8d8] sm:$0xff]
  %v1593 = vld [vmem:[%s4 + $0x8e0] sm:$0xff]
  %v1594 = vld [vmem:[%s4 + $0x8e8] sm:$0xff]
  %v1595 = vld [vmem:[%s4 + $0x8f0] sm:$0xff]
  %v1596 = vld [vmem:[%s4 + $0x8f8] sm:$0xff]
  %v1597 = vld [vmem:[%s4 + $0x900] sm:$0xff]
  %v1598 = vld [vmem:[%s4 + $0x908] sm:$0xff]
  %v1599 = vld [vmem:[%s4 + $0x910] sm:$0xff]
  %v1600 = vld [vmem:[%s4 + $0x918] sm:$0xff]
  %v1601 = vld [vmem:[%s4 + $0x920] sm:$0xff]
  %v1602 = vld [vmem:[%s4 + $0x928] sm:$0xff]
  %v1603 = vld [vmem:[%s4 + $0x930] sm:$0xff]
  %v1604 = vld [vmem:[%s4 + $0x938] sm:$0xff]
  %v1605 = vld [vmem:[%s4 + $0x940] sm:$0xff]
  %v1606 = vld [vmem:[%s4 + $0x948] sm:$0xff]
  %v1607 = vld [vmem:[%s4 + $0x950] sm:$0xff]
  %v1608 = vld [vmem:[%s4 + $0x958] sm:$0xff]
  %v1609 = vld [vmem:[%s4 + $0x960] sm:$0xff]
  %v1610 = vld [vmem:[%s4 + $0x968] sm:$0xff]
  %v1611 = vld [vmem:[%s4 + $0x970] sm:$0xff]
  %v1612 = vld [vmem:[%s4 + $0x978] sm:$0xff]
  %v1613 = vld [vmem:[%s4 + $0x980] sm:$0xff]
  %v1614 = vld [vmem:[%s4 + $0x988] sm:$0xff]
  %v1615 = vld [vmem:[%s4 + $0x990] sm:$0xff]
  %v1616 = vld [vmem:[%s4 + $0x998] sm:$0xff]
  %v1617 = vld [vmem:[%s4 + $0x9a0] sm:$0xff]
  %v1618 = vld [vmem:[%s4 + $0x9a8] sm:$0xff]
  %v1619 = vld [vmem:[%s4 + $0x9b0] sm:$0xff]
  %v1620 = vld [vmem:[%s4 + $0x9b8] sm:$0xff]
  %v1621 = vld [vmem:[%s4 + $0x9c0] sm:$0xff]
  %v1622 = vld [vmem:[%s4 + $0x9c8] sm:$0xff]
  %v1623 = vld [vmem:[%s4 + $0x9d0] sm:$0xff]
  %v1624 = vld [vmem:[%s4 + $0x9d8] sm:$0xff]
  %v1625 = vld [vmem:[%s4 + $0x9e0] sm:$0xff]
  %v1626 = vld [vmem:[%s4 + $0x9e8] sm:$0xff]
  %v1627 = vld [vmem:[%s4 + $0x9f0] sm:$0xff]
  %v1628 = vld [vmem:[%s4 + $0x9f8] sm:$0xff]
  %v1629 = vld [vmem:[%s4 + $0xa00] sm:$0xff]
  %v1630 = vld [vmem:[%s4 + $0xa08] sm:$0xff]
  %v1631 = vld [vmem:[%s4 + $0xa10] sm:$0xff]
  %v1632 = vld [vmem:[%s4 + $0xa18] sm:$0xff]
  %v1633 = vld [vmem:[%s4 + $0xa20] sm:$0xff]
  %v1634 = vld [vmem:[%s4 + $0xa28] sm:$0xff]
  %v1635 = vld [vmem:[%s4 + $0xa30] sm:$0xff]
  %v1636 = vld [vmem:[%s4 + $0xa38] sm:$0xff]
  %v1637 = vld [vmem:[%s4 + $0xa40] sm:$0xff]
  %v1638 = vld [vmem:[%s4 + $0xa48] sm:$0xff]
  %v1639 = vld [vmem:[%s4 + $0xa50] sm:$0xff]
  %v1640 = vld [vmem:[%s4 + $0xa58] sm:$0xff]
  %v1641 = vld [vmem:[%s4 + $0xa60] sm:$0xff]
  %v1642 = vld [vmem:[%s4 + $0xa68] sm:$0xff]
  %v1643 = vld [vmem:[%s4 + $0xa70] sm:$0xff]
  %v1644 = vld [vmem:[%s4 + $0xa78] sm:$0xff]
  %v1645 = vld [vmem:[%s4 + $0xa80] sm:$0xff]
  %v1646 = vld [vmem:[%s4 + $0xa88] sm:$0xff]
  %v1647 = vld [vmem:[%s4 + $0xa90] sm:$0xff]
  %v1648 = vld [vmem:[%s4 + $0xa98] sm:$0xff]
  %v1649 = vld [vmem:[%s4 + $0xaa0] sm:$0xff]
  %v1650 = vld [vmem:[%s4 + $0xaa8] sm:$0xff]
  %v1651 = vld [vmem:[%s4 + $0xab0] sm:$0xff]
  %v1652 = vld [vmem:[%s4 + $0xab8] sm:$0xff]
  %v1653 = vld [vmem:[%s4 + $0xac0] sm:$0xff]
  %v1654 = vld [vmem:[%s4 + $0xac8] sm:$0xff]
  %v1655 = vld [vmem:[%s4 + $0xad0] sm:$0xff]
  %v1656 = vld [vmem:[%s4 + $0xad8] sm:$0xff]
  %v1657 = vld [vmem:[%s4 + $0xae0] sm:$0xff]
  %v1658 = vld [vmem:[%s4 + $0xae8] sm:$0xff]
  %v1659 = vld [vmem:[%s4 + $0xaf0] sm:$0xff]
  %v1660 = vld [vmem:[%s4 + $0xaf8] sm:$0xff]
  %v1661 = vld [vmem:[%s4 + $0xb00] sm:$0xff]
  %v1662 = vld [vmem:[%s4 + $0xb08] sm:$0xff]
  %v1663 = vld [vmem:[%s4 + $0xb10] sm:$0xff]
  %v1664 = vld [vmem:[%s4 + $0xb18] sm:$0xff]
  %v1665 = vld [vmem:[%s4 + $0xb20] sm:$0xff]
  %v1666 = vld [vmem:[%s4 + $0xb28] sm:$0xff]
  %v1667 = vld [vmem:[%s4 + $0xb30] sm:$0xff]
  %v1668 = vld [vmem:[%s4 + $0xb38] sm:$0xff]
  %v1669 = vld [vmem:[%s4 + $0xb40] sm:$0xff]
  %v1670 = vld [vmem:[%s4 + $0xb48] sm:$0xff]
  %v1671 = vld [vmem:[%s4 + $0xb50] sm:$0xff]
  %v1672 = vld [vmem:[%s4 + $0xb58] sm:$0xff]
  %v1673 = vld [vmem:[%s4 + $0xb60] sm:$0xff]
  %v1674 = vld [vmem:[%s4 + $0xb68] sm:$0xff]
  %v1675 = vld [vmem:[%s4 + $0xb70] sm:$0xff]
  %v1676 = vld [vmem:[%s4 + $0xb78] sm:$0xff]
  %v1677 = vld [vmem:[%s4 + $0xb80] sm:$0xff]
  %v1678 = vld [vmem:[%s4 + $0xb88] sm:$0xff]
  %v1679 = vld [vmem:[%s4 + $0xb90] sm:$0xff]
  %v1680 = vld [vmem:[%s4 + $0xb98] sm:$0xff]
  %v1681 = vld [vmem:[%s4 + $0xba0] sm:$0xff]
  %v1682 = vld [vmem:[%s4 + $0xba8] sm:$0xff]
  %v1683 = vld [vmem:[%s4 + $0xbb0] sm:$0xff]
  %v1684 = vld [vmem:[%s4 + $0xbb8] sm:$0xff]
  %v1685 = vld [vmem:[%s4 + $0xbc0] sm:$0xff]
  %v1686 = vld [vmem:[%s4 + $0xbc8] sm:$0xff]
  %v1687 = vld [vmem:[%s4 + $0xbd0] sm:$0xff]
  %v1688 = vld [vmem:[%s4 + $0xbd8] sm:$0xff]
  %v1689 = vld [vmem:[%s4 + $0xbe0] sm:$0xff]
  %v1690 = vld [vmem:[%s4 + $0xbe8] sm:$0xff]
  %v1691 = vld [vmem:[%s4 + $0xbf0] sm:$0xff]
  %v1692 = vld [vmem:[%s4 + $0xbf8] sm:$0xff]
  %v1693 = vld [vmem:[%s4 + $0xc00] sm:$0xff]
  %v1694 = vld [vmem:[%s4 + $0xc08] sm:$0xff]
  %v1695 = vld [vmem:[%s4 + $0xc10] sm:$0xff]
  %v1696 = vld [vmem:[%s4 + $0xc18] sm:$0xff]
  %v1697 = vld [vmem:[%s4 + $0xc20] sm:$0xff]
  %v1698 = vld [vmem:[%s4 + $0xc28] sm:$0xff]
  %v1699 = vld [vmem:[%s4 + $0xc30] sm:$0xff]
  %v1700 = vld [vmem:[%s4 + $0xc38] sm:$0xff]
  %v1701 = vld [vmem:[%s4 + $0xc40] sm:$0xff]
  %v1702 = vld [vmem:[%s4 + $0xc48] sm:$0xff]
  %v1703 = vld [vmem:[%s4 + $0xc50] sm:$0xff]
  %v1704 = vld [vmem:[%s4 + $0xc58] sm:$0xff]
  %v1705 = vld [vmem:[%s4 + $0xc60] sm:$0xff]
  %v1706 = vld [vmem:[%s4 + $0xc68] sm:$0xff]
  %v1707 = vld [vmem:[%s4 + $0xc70] sm:$0xff]
  %v1708 = vld [vmem:[%s4 + $0xc78] sm:$0xff]
  %v1709 = vld [vmem:[%s4 + $0xc80] sm:$0xff]
  %v1710 = vld [vmem:[%s4 + $0xc88] sm:$0xff]
  %v1711 = vld [vmem:[%s4 + $0xc90] sm:$0xff]
  %v1712 = vld [vmem:[%s4 + $0xc98] sm:$0xff]
  %v1713 = vld [vmem:[%s4 + $0xca0] sm:$0xff]
  %v1714 = vld [vmem:[%s4 + $0xca8] sm:$0xff]
  %v1715 = vld [vmem:[%s4 + $0xcb0] sm:$0xff]
  %v1716 = vld [vmem:[%s4 + $0xcb8] sm:$0xff]
  %v1717 = vld [vmem:[%s4 + $0xcc0] sm:$0xff]
  %v1718 = vld [vmem:[%s4 + $0xcc8] sm:$0xff]
  %v1719 = vld [vmem:[%s4 + $0xcd0] sm:$0xff]
  %v1720 = vld [vmem:[%s4 + $0xcd8] sm:$0xff]
  %v1721 = vld [vmem:[%s4 + $0xce0] sm:$0xff]
  %v1722 = vld [vmem:[%s4 + $0xce8] sm:$0xff]
  %v1723 = vld [vmem:[%s4 + $0xcf0] sm:$0xff]
  %v1724 = vld [vmem:[%s4 + $0xcf8] sm:$0xff]
  %v1725 = vld [vmem:[%s4 + $0xd00] sm:$0xff]
  %v1726 = vld [vmem:[%s4 + $0xd08] sm:$0xff]
  %v1727 = vld [vmem:[%s4 + $0xd10] sm:$0xff]
  %v1728 = vld [vmem:[%s4 + $0xd18] sm:$0xff]
  %v1729 = vld [vmem:[%s4 + $0xd20] sm:$0xff]
  %v1730 = vld [vmem:[%s4 + $0xd28] sm:$0xff]
  %v1731 = vld [vmem:[%s4 + $0xd30] sm:$0xff]
  %v1732 = vld [vmem:[%s4 + $0xd38] sm:$0xff]
  %v1733 = vld [vmem:[%s4 + $0xd40] sm:$0xff]
  %v1734 = vld [vmem:[%s4 + $0xd48] sm:$0xff]
  %v1735 = vld [vmem:[%s4 + $0xd50] sm:$0xff]
  %v1736 = vld [vmem:[%s4 + $0xd58] sm:$0xff]
  %v1737 = vld [vmem:[%s4 + $0xd60] sm:$0xff]
  %v1738 = vld [vmem:[%s4 + $0xd68] sm:$0xff]
  %v1739 = vld [vmem:[%s4 + $0xd70] sm:$0xff]
  %v1740 = vld [vmem:[%s4 + $0xd78] sm:$0xff]
  %v1741 = vld [vmem:[%s4 + $0xd80] sm:$0xff]
  %v1742 = vld [vmem:[%s4 + $0xd88] sm:$0xff]
  %v1743 = vld [vmem:[%s4 + $0xd90] sm:$0xff]
  %v1744 = vld [vmem:[%s4 + $0xd98] sm:$0xff]
  %v1745 = vld [vmem:[%s4 + $0xda0] sm:$0xff]
  %v1746 = vld [vmem:[%s4 + $0xda8] sm:$0xff]
  %v1747 = vld [vmem:[%s4 + $0xdb0] sm:$0xff]
  %v1748 = vld [vmem:[%s4 + $0xdb8] sm:$0xff]
  %v1749 = vld [vmem:[%s4 + $0xdc0] sm:$0xff]
  %v1750 = vld [vmem:[%s4 + $0xdc8] sm:$0xff]
  %v1751 = vld [vmem:[%s4 + $0xdd0] sm:$0xff]
  %v1752 = vld [vmem:[%s4 + $0xdd8] sm:$0xff]
  %v1753 = vld [vmem:[%s4 + $0xde0] sm:$0xff]
  %v1754 = vld [vmem:[%s4 + $0xde8] sm:$0xff]
  %v1755 = vld [vmem:[%s4 + $0xdf0] sm:$0xff]
  %v1756 = vld [vmem:[%s4 + $0xdf8] sm:$0xff]
  %v1757 = vld [vmem:[%s4 + $0xe00] sm:$0xff]
  %v1758 = vld [vmem:[%s4 + $0xe08] sm:$0xff]
  %v1759 = vld [vmem:[%s4 + $0xe10] sm:$0xff]
  %v1760 = vld [vmem:[%s4 + $0xe18] sm:$0xff]
  %v1761 = vld [vmem:[%s4 + $0xe20] sm:$0xff]
  %v1762 = vld [vmem:[%s4 + $0xe28] sm:$0xff]
  %v1763 = vld [vmem:[%s4 + $0xe30] sm:$0xff]
  %v1764 = vld [vmem:[%s4 + $0xe38] sm:$0xff]
  %v1765 = vld [vmem:[%s4 + $0xe40] sm:$0xff]
  %v1766 = vld [vmem:[%s4 + $0xe48] sm:$0xff]
  %v1767 = vld [vmem:[%s4 + $0xe50] sm:$0xff]
  %v1768 = vld [vmem:[%s4 + $0xe58] sm:$0xff]
  %v1769 = vld [vmem:[%s4 + $0xe60] sm:$0xff]
  %v1770 = vld [vmem:[%s4 + $0xe68] sm:$0xff]
  %v1771 = vld [vmem:[%s4 + $0xe70] sm:$0xff]
  %v1772 = vld [vmem:[%s4 + $0xe78] sm:$0xff]
  %v1773 = vld [vmem:[%s4 + $0xe80] sm:$0xff]
  %v1774 = vld [vmem:[%s4 + $0xe88] sm:$0xff]
  %v1775 = vld [vmem:[%s4 + $0xe90] sm:$0xff]
  %v1776 = vld [vmem:[%s4 + $0xe98] sm:$0xff]
  %v1777 = vld [vmem:[%s4 + $0xea0] sm:$0xff]
  %v1778 = vld [vmem:[%s4 + $0xea8] sm:$0xff]
  %v1779 = vld [vmem:[%s4 + $0xeb0] sm:$0xff]
  %v1780 = vld [vmem:[%s4 + $0xeb8] sm:$0xff]
  %v1781 = vld [vmem:[%s4 + $0xec0] sm:$0xff]
  %v1782 = vld [vmem:[%s4 + $0xec8] sm:$0xff]
  %v1783 = vld [vmem:[%s4 + $0xed0] sm:$0xff]
  %v1784 = vld [vmem:[%s4 + $0xed8] sm:$0xff]
  %v1785 = vld [vmem:[%s4 + $0xee0] sm:$0xff]
  %v1786 = vld [vmem:[%s4 + $0xee8] sm:$0xff]
  %v1787 = vld [vmem:[%s4 + $0xef0] sm:$0xff]
  %v1788 = vld [vmem:[%s4 + $0xef8] sm:$0xff]
  %v1789 = vld [vmem:[%s4 + $0xf00] sm:$0xff]
  %v1790 = vld [vmem:[%s4 + $0xf08] sm:$0xff]
  %v1791 = vld [vmem:[%s4 + $0xf10] sm:$0xff]
  %v1792 = vld [vmem:[%s4 + $0xf18] sm:$0xff]
  %v1793 = vld [vmem:[%s4 + $0xf20] sm:$0xff]
  %v1794 = vld [vmem:[%s4 + $0xf28] sm:$0xff]
  %v1795 = vld [vmem:[%s4 + $0xf30] sm:$0xff]
  %v1796 = vld [vmem:[%s4 + $0xf38] sm:$0xff]
  %v1797 = vld [vmem:[%s4 + $0xf40] sm:$0xff]
  %v1798 = vld [vmem:[%s4 + $0xf48] sm:$0xff]
  %v1799 = vld [vmem:[%s4 + $0xf50] sm:$0xff]
  %v1800 = vld [vmem:[%s4 + $0xf58] sm:$0xff]
  %v1801 = vld [vmem:[%s4 + $0xf60] sm:$0xff]
  %v1802 = vld [vmem:[%s4 + $0xf68] sm:$0xff]
  %v1803 = vld [vmem:[%s4 + $0xf70] sm:$0xff]
  %v1804 = vld [vmem:[%s4 + $0xf78] sm:$0xff]
  %v1805 = vld [vmem:[%s4 + $0xf80] sm:$0xff]
  %v1806 = vld [vmem:[%s4 + $0xf88] sm:$0xff]
  %v1807 = vld [vmem:[%s4 + $0xf90] sm:$0xff]
  %v1808 = vld [vmem:[%s4 + $0xf98] sm:$0xff]
  %v1809 = vld [vmem:[%s4 + $0xfa0] sm:$0xff]
  %v1810 = vld [vmem:[%s4 + $0xfa8] sm:$0xff]
  %v1811 = vld [vmem:[%s4 + $0xfb0] sm:$0xff]
  %v1812 = vld [vmem:[%s4 + $0xfb8] sm:$0xff]
  %v1813 = vld [vmem:[%s4 + $0xfc0] sm:$0xff]
  %v1814 = vld [vmem:[%s4 + $0xfc8] sm:$0xff]
  %v1815 = vld [vmem:[%s4 + $0xfd0] sm:$0xff]
  %v1816 = vld [vmem:[%s4 + $0xfd8] sm:$0xff]
  %v1817 = vld [vmem:[%s4 + $0xfe0] sm:$0xff]
  %v1818 = vld [vmem:[%s4 + $0xfe8] sm:$0xff]
  %v1819 = vld [vmem:[%s4 + $0xff0] sm:$0xff]
  %v1820 = vld [vmem:[%s4 + $0xff8] sm:$0xff]
  %v1821 = vld [vmem:[%s5] sm:$0xff]
  %v1823 = vlaneseq
  %v1824 = vshrl.u32 %v1823, 7
  %v1825 = vsub.s32 0, %v1824
  %v1826 = vrot.slane %v1821, %v1825
  %v1827 = vlaneseq
  %v1828 = vshrl.u32 %v1827, 7
  %v1829 = vsub.s32 1, %v1828
  %v1830 = vrot.slane %v1821, %v1829
  %v1831 = vlaneseq
  %v1832 = vshrl.u32 %v1831, 7
  %v1833 = vsub.s32 2, %v1832
  %v1834 = vrot.slane %v1821, %v1833
  %v1835 = vlaneseq
  %v1836 = vshrl.u32 %v1835, 7
  %v1837 = vsub.s32 3, %v1836
  %v1838 = vrot.slane %v1821, %v1837
  %v1839 = vlaneseq
  %v1840 = vshrl.u32 %v1839, 7
  %v1841 = vsub.s32 4, %v1840
  %v1842 = vrot.slane %v1821, %v1841
  %v1843 = vlaneseq
  %v1844 = vshrl.u32 %v1843, 7
  %v1845 = vsub.s32 5, %v1844
  %v1846 = vrot.slane %v1821, %v1845
  %v1847 = vlaneseq
  %v1848 = vshrl.u32 %v1847, 7
  %v1849 = vsub.s32 6, %v1848
  %v1850 = vrot.slane %v1821, %v1849
  %v1851 = vlaneseq
  %v1852 = vshrl.u32 %v1851, 7
  %v1853 = vsub.s32 7, %v1852
  %v1854 = vrot.slane %v1821, %v1853
  %v2375 = vunpack.c.l.b16 %v1309
  %v2376 = vunpack.c.h.b16 %v1309
  %v2377 = vunpack.c.l.b16 %v1310
  %v2378 = vunpack.c.h.b16 %v1310
  %v2379 = vunpack.c.l.b16 %v1311
  %v2380 = vunpack.c.h.b16 %v1311
  %v2381 = vunpack.c.l.b16 %v1312
  %v2382 = vunpack.c.h.b16 %v1312
  %v2383 = vunpack.c.l.b16 %v1313
  %v2384 = vunpack.c.h.b16 %v1313
  %v2385 = vunpack.c.l.b16 %v1314
  %v2386 = vunpack.c.h.b16 %v1314
  %v2387 = vunpack.c.l.b16 %v1315
  %v2388 = vunpack.c.h.b16 %v1315
  %v2389 = vunpack.c.l.b16 %v1316
  %v2390 = vunpack.c.h.b16 %v1316
  %v2391 = vunpack.c.l.b16 %v1317
  %v2392 = vunpack.c.h.b16 %v1317
  %v2393 = vunpack.c.l.b16 %v1318
  %v2394 = vunpack.c.h.b16 %v1318
  %v2395 = vunpack.c.l.b16 %v1319
  %v2396 = vunpack.c.h.b16 %v1319
  %v2397 = vunpack.c.l.b16 %v1320
  %v2398 = vunpack.c.h.b16 %v1320
  %v2399 = vunpack.c.l.b16 %v1321
  %v2400 = vunpack.c.h.b16 %v1321
  %v2401 = vunpack.c.l.b16 %v1322
  %v2402 = vunpack.c.h.b16 %v1322
  %v2403 = vunpack.c.l.b16 %v1323
  %v2404 = vunpack.c.h.b16 %v1323
  %v2405 = vunpack.c.l.b16 %v1324
  %v2406 = vunpack.c.h.b16 %v1324
  %v2407 = vunpack.c.l.b16 %v1325
  %v2408 = vunpack.c.h.b16 %v1325
  %v2409 = vunpack.c.l.b16 %v1326
  %v2410 = vunpack.c.h.b16 %v1326
  %v2411 = vunpack.c.l.b16 %v1327
  %v2412 = vunpack.c.h.b16 %v1327
  %v2413 = vunpack.c.l.b16 %v1328
  %v2414 = vunpack.c.h.b16 %v1328
  %v2415 = vunpack.c.l.b16 %v1329
  %v2416 = vunpack.c.h.b16 %v1329
  %v2417 = vunpack.c.l.b16 %v1330
  %v2418 = vunpack.c.h.b16 %v1330
  %v2419 = vunpack.c.l.b16 %v1331
  %v2420 = vunpack.c.h.b16 %v1331
  %v2421 = vunpack.c.l.b16 %v1332
  %v2422 = vunpack.c.h.b16 %v1332
  %v2423 = vunpack.c.l.b16 %v1333
  %v2424 = vunpack.c.h.b16 %v1333
  %v2425 = vunpack.c.l.b16 %v1334
  %v2426 = vunpack.c.h.b16 %v1334
  %v2427 = vunpack.c.l.b16 %v1335
  %v2428 = vunpack.c.h.b16 %v1335
  %v2429 = vunpack.c.l.b16 %v1336
  %v2430 = vunpack.c.h.b16 %v1336
  %v2431 = vunpack.c.l.b16 %v1337
  %v2432 = vunpack.c.h.b16 %v1337
  %v2433 = vunpack.c.l.b16 %v1338
  %v2434 = vunpack.c.h.b16 %v1338
  %v2435 = vunpack.c.l.b16 %v1339
  %v2436 = vunpack.c.h.b16 %v1339
  %v2437 = vunpack.c.l.b16 %v1340
  %v2438 = vunpack.c.h.b16 %v1340
  %v2439 = vunpack.c.l.b16 %v1341
  %v2440 = vunpack.c.h.b16 %v1341
  %v2441 = vunpack.c.l.b16 %v1342
  %v2442 = vunpack.c.h.b16 %v1342
  %v2443 = vunpack.c.l.b16 %v1343
  %v2444 = vunpack.c.h.b16 %v1343
  %v2445 = vunpack.c.l.b16 %v1344
  %v2446 = vunpack.c.h.b16 %v1344
  %v2447 = vunpack.c.l.b16 %v1345
  %v2448 = vunpack.c.h.b16 %v1345
  %v2449 = vunpack.c.l.b16 %v1346
  %v2450 = vunpack.c.h.b16 %v1346
  %v2451 = vunpack.c.l.b16 %v1347
  %v2452 = vunpack.c.h.b16 %v1347
  %v2453 = vunpack.c.l.b16 %v1348
  %v2454 = vunpack.c.h.b16 %v1348
  %v2455 = vunpack.c.l.b16 %v1349
  %v2456 = vunpack.c.h.b16 %v1349
  %v2457 = vunpack.c.l.b16 %v1350
  %v2458 = vunpack.c.h.b16 %v1350
  %v2459 = vunpack.c.l.b16 %v1351
  %v2460 = vunpack.c.h.b16 %v1351
  %v2461 = vunpack.c.l.b16 %v1352
  %v2462 = vunpack.c.h.b16 %v1352
  %v2463 = vunpack.c.l.b16 %v1353
  %v2464 = vunpack.c.h.b16 %v1353
  %v2465 = vunpack.c.l.b16 %v1354
  %v2466 = vunpack.c.h.b16 %v1354
  %v2467 = vunpack.c.l.b16 %v1355
  %v2468 = vunpack.c.h.b16 %v1355
  %v2469 = vunpack.c.l.b16 %v1356
  %v2470 = vunpack.c.h.b16 %v1356
  %v2471 = vunpack.c.l.b16 %v1357
  %v2472 = vunpack.c.h.b16 %v1357
  %v2473 = vunpack.c.l.b16 %v1358
  %v2474 = vunpack.c.h.b16 %v1358
  %v2475 = vunpack.c.l.b16 %v1359
  %v2476 = vunpack.c.h.b16 %v1359
  %v2477 = vunpack.c.l.b16 %v1360
  %v2478 = vunpack.c.h.b16 %v1360
  %v2479 = vunpack.c.l.b16 %v1361
  %v2480 = vunpack.c.h.b16 %v1361
  %v2481 = vunpack.c.l.b16 %v1362
  %v2482 = vunpack.c.h.b16 %v1362
  %v2483 = vunpack.c.l.b16 %v1363
  %v2484 = vunpack.c.h.b16 %v1363
  %v2485 = vunpack.c.l.b16 %v1364
  %v2486 = vunpack.c.h.b16 %v1364
  %v2487 = vunpack.c.l.b16 %v1365
  %v2488 = vunpack.c.h.b16 %v1365
  %v2489 = vunpack.c.l.b16 %v1366
  %v2490 = vunpack.c.h.b16 %v1366
  %v2491 = vunpack.c.l.b16 %v1367
  %v2492 = vunpack.c.h.b16 %v1367
  %v2493 = vunpack.c.l.b16 %v1368
  %v2494 = vunpack.c.h.b16 %v1368
  %v2495 = vunpack.c.l.b16 %v1369
  %v2496 = vunpack.c.h.b16 %v1369
  %v2497 = vunpack.c.l.b16 %v1370
  %v2498 = vunpack.c.h.b16 %v1370
  %v2499 = vunpack.c.l.b16 %v1371
  %v2500 = vunpack.c.h.b16 %v1371
  %v2501 = vunpack.c.l.b16 %v1372
  %v2502 = vunpack.c.h.b16 %v1372
  %v2503 = vunpack.c.l.b16 %v1373
  %v2504 = vunpack.c.h.b16 %v1373
  %v2505 = vunpack.c.l.b16 %v1374
  %v2506 = vunpack.c.h.b16 %v1374
  %v2507 = vunpack.c.l.b16 %v1375
  %v2508 = vunpack.c.h.b16 %v1375
  %v2509 = vunpack.c.l.b16 %v1376
  %v2510 = vunpack.c.h.b16 %v1376
  %v2511 = vunpack.c.l.b16 %v1377
  %v2512 = vunpack.c.h.b16 %v1377
  %v2513 = vunpack.c.l.b16 %v1378
  %v2514 = vunpack.c.h.b16 %v1378
  %v2515 = vunpack.c.l.b16 %v1379
  %v2516 = vunpack.c.h.b16 %v1379
  %v2517 = vunpack.c.l.b16 %v1380
  %v2518 = vunpack.c.h.b16 %v1380
  %v2519 = vunpack.c.l.b16 %v1381
  %v2520 = vunpack.c.h.b16 %v1381
  %v2521 = vunpack.c.l.b16 %v1382
  %v2522 = vunpack.c.h.b16 %v1382
  %v2523 = vunpack.c.l.b16 %v1383
  %v2524 = vunpack.c.h.b16 %v1383
  %v2525 = vunpack.c.l.b16 %v1384
  %v2526 = vunpack.c.h.b16 %v1384
  %v2527 = vunpack.c.l.b16 %v1385
  %v2528 = vunpack.c.h.b16 %v1385
  %v2529 = vunpack.c.l.b16 %v1386
  %v2530 = vunpack.c.h.b16 %v1386
  %v2531 = vunpack.c.l.b16 %v1387
  %v2532 = vunpack.c.h.b16 %v1387
  %v2533 = vunpack.c.l.b16 %v1388
  %v2534 = vunpack.c.h.b16 %v1388
  %v2535 = vunpack.c.l.b16 %v1389
  %v2536 = vunpack.c.h.b16 %v1389
  %v2537 = vunpack.c.l.b16 %v1390
  %v2538 = vunpack.c.h.b16 %v1390
  %v2539 = vunpack.c.l.b16 %v1391
  %v2540 = vunpack.c.h.b16 %v1391
  %v2541 = vunpack.c.l.b16 %v1392
  %v2542 = vunpack.c.h.b16 %v1392
  %v2543 = vunpack.c.l.b16 %v1393
  %v2544 = vunpack.c.h.b16 %v1393
  %v2545 = vunpack.c.l.b16 %v1394
  %v2546 = vunpack.c.h.b16 %v1394
  %v2547 = vunpack.c.l.b16 %v1395
  %v2548 = vunpack.c.h.b16 %v1395
  %v2549 = vunpack.c.l.b16 %v1396
  %v2550 = vunpack.c.h.b16 %v1396
  %v2551 = vunpack.c.l.b16 %v1397
  %v2552 = vunpack.c.h.b16 %v1397
  %v2553 = vunpack.c.l.b16 %v1398
  %v2554 = vunpack.c.h.b16 %v1398
  %v2555 = vunpack.c.l.b16 %v1399
  %v2556 = vunpack.c.h.b16 %v1399
  %v2557 = vunpack.c.l.b16 %v1400
  %v2558 = vunpack.c.h.b16 %v1400
  %v2559 = vunpack.c.l.b16 %v1401
  %v2560 = vunpack.c.h.b16 %v1401
  %v2561 = vunpack.c.l.b16 %v1402
  %v2562 = vunpack.c.h.b16 %v1402
  %v2563 = vunpack.c.l.b16 %v1403
  %v2564 = vunpack.c.h.b16 %v1403
  %v2565 = vunpack.c.l.b16 %v1404
  %v2566 = vunpack.c.h.b16 %v1404
  %v2567 = vunpack.c.l.b16 %v1405
  %v2568 = vunpack.c.h.b16 %v1405
  %v2569 = vunpack.c.l.b16 %v1406
  %v2570 = vunpack.c.h.b16 %v1406
  %v2571 = vunpack.c.l.b16 %v1407
  %v2572 = vunpack.c.h.b16 %v1407
  %v2573 = vunpack.c.l.b16 %v1408
  %v2574 = vunpack.c.h.b16 %v1408
  %v2575 = vunpack.c.l.b16 %v1409
  %v2576 = vunpack.c.h.b16 %v1409
  %v2577 = vunpack.c.l.b16 %v1410
  %v2578 = vunpack.c.h.b16 %v1410
  %v2579 = vunpack.c.l.b16 %v1411
  %v2580 = vunpack.c.h.b16 %v1411
  %v2581 = vunpack.c.l.b16 %v1412
  %v2582 = vunpack.c.h.b16 %v1412
  %v2583 = vunpack.c.l.b16 %v1413
  %v2584 = vunpack.c.h.b16 %v1413
  %v2585 = vunpack.c.l.b16 %v1414
  %v2586 = vunpack.c.h.b16 %v1414
  %v2587 = vunpack.c.l.b16 %v1415
  %v2588 = vunpack.c.h.b16 %v1415
  %v2589 = vunpack.c.l.b16 %v1416
  %v2590 = vunpack.c.h.b16 %v1416
  %v2591 = vunpack.c.l.b16 %v1417
  %v2592 = vunpack.c.h.b16 %v1417
  %v2593 = vunpack.c.l.b16 %v1418
  %v2594 = vunpack.c.h.b16 %v1418
  %v2595 = vunpack.c.l.b16 %v1419
  %v2596 = vunpack.c.h.b16 %v1419
  %v2597 = vunpack.c.l.b16 %v1420
  %v2598 = vunpack.c.h.b16 %v1420
  %v2599 = vunpack.c.l.b16 %v1421
  %v2600 = vunpack.c.h.b16 %v1421
  %v2601 = vunpack.c.l.b16 %v1422
  %v2602 = vunpack.c.h.b16 %v1422
  %v2603 = vunpack.c.l.b16 %v1423
  %v2604 = vunpack.c.h.b16 %v1423
  %v2605 = vunpack.c.l.b16 %v1424
  %v2606 = vunpack.c.h.b16 %v1424
  %v2607 = vunpack.c.l.b16 %v1425
  %v2608 = vunpack.c.h.b16 %v1425
  %v2609 = vunpack.c.l.b16 %v1426
  %v2610 = vunpack.c.h.b16 %v1426
  %v2611 = vunpack.c.l.b16 %v1427
  %v2612 = vunpack.c.h.b16 %v1427
  %v2613 = vunpack.c.l.b16 %v1428
  %v2614 = vunpack.c.h.b16 %v1428
  %v2615 = vunpack.c.l.b16 %v1429
  %v2616 = vunpack.c.h.b16 %v1429
  %v2617 = vunpack.c.l.b16 %v1430
  %v2618 = vunpack.c.h.b16 %v1430
  %v2619 = vunpack.c.l.b16 %v1431
  %v2620 = vunpack.c.h.b16 %v1431
  %v2621 = vunpack.c.l.b16 %v1432
  %v2622 = vunpack.c.h.b16 %v1432
  %v2623 = vunpack.c.l.b16 %v1433
  %v2624 = vunpack.c.h.b16 %v1433
  %v2625 = vunpack.c.l.b16 %v1434
  %v2626 = vunpack.c.h.b16 %v1434
  %v2627 = vunpack.c.l.b16 %v1435
  %v2628 = vunpack.c.h.b16 %v1435
  %v2629 = vunpack.c.l.b16 %v1436
  %v2630 = vunpack.c.h.b16 %v1436
  %v2631 = vunpack.c.l.b16 %v1437
  %v2632 = vunpack.c.h.b16 %v1437
  %v2633 = vunpack.c.l.b16 %v1438
  %v2634 = vunpack.c.h.b16 %v1438
  %v2635 = vunpack.c.l.b16 %v1439
  %v2636 = vunpack.c.h.b16 %v1439
  %v2637 = vunpack.c.l.b16 %v1440
  %v2638 = vunpack.c.h.b16 %v1440
  %v2639 = vunpack.c.l.b16 %v1441
  %v2640 = vunpack.c.h.b16 %v1441
  %v2641 = vunpack.c.l.b16 %v1442
  %v2642 = vunpack.c.h.b16 %v1442
  %v2643 = vunpack.c.l.b16 %v1443
  %v2644 = vunpack.c.h.b16 %v1443
  %v2645 = vunpack.c.l.b16 %v1444
  %v2646 = vunpack.c.h.b16 %v1444
  %v2647 = vunpack.c.l.b16 %v1445
  %v2648 = vunpack.c.h.b16 %v1445
  %v2649 = vunpack.c.l.b16 %v1446
  %v2650 = vunpack.c.h.b16 %v1446
  %v2651 = vunpack.c.l.b16 %v1447
  %v2652 = vunpack.c.h.b16 %v1447
  %v2653 = vunpack.c.l.b16 %v1448
  %v2654 = vunpack.c.h.b16 %v1448
  %v2655 = vunpack.c.l.b16 %v1449
  %v2656 = vunpack.c.h.b16 %v1449
  %v2657 = vunpack.c.l.b16 %v1450
  %v2658 = vunpack.c.h.b16 %v1450
  %v2659 = vunpack.c.l.b16 %v1451
  %v2660 = vunpack.c.h.b16 %v1451
  %v2661 = vunpack.c.l.b16 %v1452
  %v2662 = vunpack.c.h.b16 %v1452
  %v2663 = vunpack.c.l.b16 %v1453
  %v2664 = vunpack.c.h.b16 %v1453
  %v2665 = vunpack.c.l.b16 %v1454
  %v2666 = vunpack.c.h.b16 %v1454
  %v2667 = vunpack.c.l.b16 %v1455
  %v2668 = vunpack.c.h.b16 %v1455
  %v2669 = vunpack.c.l.b16 %v1456
  %v2670 = vunpack.c.h.b16 %v1456
  %v2671 = vunpack.c.l.b16 %v1457
  %v2672 = vunpack.c.h.b16 %v1457
  %v2673 = vunpack.c.l.b16 %v1458
  %v2674 = vunpack.c.h.b16 %v1458
  %v2675 = vunpack.c.l.b16 %v1459
  %v2676 = vunpack.c.h.b16 %v1459
  %v2677 = vunpack.c.l.b16 %v1460
  %v2678 = vunpack.c.h.b16 %v1460
  %v2679 = vunpack.c.l.b16 %v1461
  %v2680 = vunpack.c.h.b16 %v1461
  %v2681 = vunpack.c.l.b16 %v1462
  %v2682 = vunpack.c.h.b16 %v1462
  %v2683 = vunpack.c.l.b16 %v1463
  %v2684 = vunpack.c.h.b16 %v1463
  %v2685 = vunpack.c.l.b16 %v1464
  %v2686 = vunpack.c.h.b16 %v1464
  %v2687 = vunpack.c.l.b16 %v1465
  %v2688 = vunpack.c.h.b16 %v1465
  %v2689 = vunpack.c.l.b16 %v1466
  %v2690 = vunpack.c.h.b16 %v1466
  %v2691 = vunpack.c.l.b16 %v1467
  %v2692 = vunpack.c.h.b16 %v1467
  %v2693 = vunpack.c.l.b16 %v1468
  %v2694 = vunpack.c.h.b16 %v1468
  %v2695 = vunpack.c.l.b16 %v1469
  %v2696 = vunpack.c.h.b16 %v1469
  %v2697 = vunpack.c.l.b16 %v1470
  %v2698 = vunpack.c.h.b16 %v1470
  %v2699 = vunpack.c.l.b16 %v1471
  %v2700 = vunpack.c.h.b16 %v1471
  %v2701 = vunpack.c.l.b16 %v1472
  %v2702 = vunpack.c.h.b16 %v1472
  %v2703 = vunpack.c.l.b16 %v1473
  %v2704 = vunpack.c.h.b16 %v1473
  %v2705 = vunpack.c.l.b16 %v1474
  %v2706 = vunpack.c.h.b16 %v1474
  %v2707 = vunpack.c.l.b16 %v1475
  %v2708 = vunpack.c.h.b16 %v1475
  %v2709 = vunpack.c.l.b16 %v1476
  %v2710 = vunpack.c.h.b16 %v1476
  %v2711 = vunpack.c.l.b16 %v1477
  %v2712 = vunpack.c.h.b16 %v1477
  %v2713 = vunpack.c.l.b16 %v1478
  %v2714 = vunpack.c.h.b16 %v1478
  %v2715 = vunpack.c.l.b16 %v1479
  %v2716 = vunpack.c.h.b16 %v1479
  %v2717 = vunpack.c.l.b16 %v1480
  %v2718 = vunpack.c.h.b16 %v1480
  %v2719 = vunpack.c.l.b16 %v1481
  %v2720 = vunpack.c.h.b16 %v1481
  %v2721 = vunpack.c.l.b16 %v1482
  %v2722 = vunpack.c.h.b16 %v1482
  %v2723 = vunpack.c.l.b16 %v1483
  %v2724 = vunpack.c.h.b16 %v1483
  %v2725 = vunpack.c.l.b16 %v1484
  %v2726 = vunpack.c.h.b16 %v1484
  %v2727 = vunpack.c.l.b16 %v1485
  %v2728 = vunpack.c.h.b16 %v1485
  %v2729 = vunpack.c.l.b16 %v1486
  %v2730 = vunpack.c.h.b16 %v1486
  %v2731 = vunpack.c.l.b16 %v1487
  %v2732 = vunpack.c.h.b16 %v1487
  %v2733 = vunpack.c.l.b16 %v1488
  %v2734 = vunpack.c.h.b16 %v1488
  %v2735 = vunpack.c.l.b16 %v1489
  %v2736 = vunpack.c.h.b16 %v1489
  %v2737 = vunpack.c.l.b16 %v1490
  %v2738 = vunpack.c.h.b16 %v1490
  %v2739 = vunpack.c.l.b16 %v1491
  %v2740 = vunpack.c.h.b16 %v1491
  %v2741 = vunpack.c.l.b16 %v1492
  %v2742 = vunpack.c.h.b16 %v1492
  %v2743 = vunpack.c.l.b16 %v1493
  %v2744 = vunpack.c.h.b16 %v1493
  %v2745 = vunpack.c.l.b16 %v1494
  %v2746 = vunpack.c.h.b16 %v1494
  %v2747 = vunpack.c.l.b16 %v1495
  %v2748 = vunpack.c.h.b16 %v1495
  %v2749 = vunpack.c.l.b16 %v1496
  %v2750 = vunpack.c.h.b16 %v1496
  %v2751 = vunpack.c.l.b16 %v1497
  %v2752 = vunpack.c.h.b16 %v1497
  %v2753 = vunpack.c.l.b16 %v1498
  %v2754 = vunpack.c.h.b16 %v1498
  %v2755 = vunpack.c.l.b16 %v1499
  %v2756 = vunpack.c.h.b16 %v1499
  %v2757 = vunpack.c.l.b16 %v1500
  %v2758 = vunpack.c.h.b16 %v1500
  %v2759 = vunpack.c.l.b16 %v1501
  %v2760 = vunpack.c.h.b16 %v1501
  %v2761 = vunpack.c.l.b16 %v1502
  %v2762 = vunpack.c.h.b16 %v1502
  %v2763 = vunpack.c.l.b16 %v1503
  %v2764 = vunpack.c.h.b16 %v1503
  %v2765 = vunpack.c.l.b16 %v1504
  %v2766 = vunpack.c.h.b16 %v1504
  %v2767 = vunpack.c.l.b16 %v1505
  %v2768 = vunpack.c.h.b16 %v1505
  %v2769 = vunpack.c.l.b16 %v1506
  %v2770 = vunpack.c.h.b16 %v1506
  %v2771 = vunpack.c.l.b16 %v1507
  %v2772 = vunpack.c.h.b16 %v1507
  %v2773 = vunpack.c.l.b16 %v1508
  %v2774 = vunpack.c.h.b16 %v1508
  %v2775 = vunpack.c.l.b16 %v1509
  %v2776 = vunpack.c.h.b16 %v1509
  %v2777 = vunpack.c.l.b16 %v1510
  %v2778 = vunpack.c.h.b16 %v1510
  %v2779 = vunpack.c.l.b16 %v1511
  %v2780 = vunpack.c.h.b16 %v1511
  %v2781 = vunpack.c.l.b16 %v1512
  %v2782 = vunpack.c.h.b16 %v1512
  %v2783 = vunpack.c.l.b16 %v1513
  %v2784 = vunpack.c.h.b16 %v1513
  %v2785 = vunpack.c.l.b16 %v1514
  %v2786 = vunpack.c.h.b16 %v1514
  %v2787 = vunpack.c.l.b16 %v1515
  %v2788 = vunpack.c.h.b16 %v1515
  %v2789 = vunpack.c.l.b16 %v1516
  %v2790 = vunpack.c.h.b16 %v1516
  %v2791 = vunpack.c.l.b16 %v1517
  %v2792 = vunpack.c.h.b16 %v1517
  %v2793 = vunpack.c.l.b16 %v1518
  %v2794 = vunpack.c.h.b16 %v1518
  %v2795 = vunpack.c.l.b16 %v1519
  %v2796 = vunpack.c.h.b16 %v1519
  %v2797 = vunpack.c.l.b16 %v1520
  %v2798 = vunpack.c.h.b16 %v1520
  %v2799 = vunpack.c.l.b16 %v1521
  %v2800 = vunpack.c.h.b16 %v1521
  %v2801 = vunpack.c.l.b16 %v1522
  %v2802 = vunpack.c.h.b16 %v1522
  %v2803 = vunpack.c.l.b16 %v1523
  %v2804 = vunpack.c.h.b16 %v1523
  %v2805 = vunpack.c.l.b16 %v1524
  %v2806 = vunpack.c.h.b16 %v1524
  %v2807 = vunpack.c.l.b16 %v1525
  %v2808 = vunpack.c.h.b16 %v1525
  %v2809 = vunpack.c.l.b16 %v1526
  %v2810 = vunpack.c.h.b16 %v1526
  %v2811 = vunpack.c.l.b16 %v1527
  %v2812 = vunpack.c.h.b16 %v1527
  %v2813 = vunpack.c.l.b16 %v1528
  %v2814 = vunpack.c.h.b16 %v1528
  %v2815 = vunpack.c.l.b16 %v1529
  %v2816 = vunpack.c.h.b16 %v1529
  %v2817 = vunpack.c.l.b16 %v1530
  %v2818 = vunpack.c.h.b16 %v1530
  %v2819 = vunpack.c.l.b16 %v1531
  %v2820 = vunpack.c.h.b16 %v1531
  %v2821 = vunpack.c.l.b16 %v1532
  %v2822 = vunpack.c.h.b16 %v1532
  %v2823 = vunpack.c.l.b16 %v1533
  %v2824 = vunpack.c.h.b16 %v1533
  %v2825 = vunpack.c.l.b16 %v1534
  %v2826 = vunpack.c.h.b16 %v1534
  %v2827 = vunpack.c.l.b16 %v1535
  %v2828 = vunpack.c.h.b16 %v1535
  %v2829 = vunpack.c.l.b16 %v1536
  %v2830 = vunpack.c.h.b16 %v1536
  %v2831 = vunpack.c.l.b16 %v1537
  %v2832 = vunpack.c.h.b16 %v1537
  %v2833 = vunpack.c.l.b16 %v1538
  %v2834 = vunpack.c.h.b16 %v1538
  %v2835 = vunpack.c.l.b16 %v1539
  %v2836 = vunpack.c.h.b16 %v1539
  %v2837 = vunpack.c.l.b16 %v1540
  %v2838 = vunpack.c.h.b16 %v1540
  %v2839 = vunpack.c.l.b16 %v1541
  %v2840 = vunpack.c.h.b16 %v1541
  %v2841 = vunpack.c.l.b16 %v1542
  %v2842 = vunpack.c.h.b16 %v1542
  %v2843 = vunpack.c.l.b16 %v1543
  %v2844 = vunpack.c.h.b16 %v1543
  %v2845 = vunpack.c.l.b16 %v1544
  %v2846 = vunpack.c.h.b16 %v1544
  %v2847 = vunpack.c.l.b16 %v1545
  %v2848 = vunpack.c.h.b16 %v1545
  %v2849 = vunpack.c.l.b16 %v1546
  %v2850 = vunpack.c.h.b16 %v1546
  %v2851 = vunpack.c.l.b16 %v1547
  %v2852 = vunpack.c.h.b16 %v1547
  %v2853 = vunpack.c.l.b16 %v1548
  %v2854 = vunpack.c.h.b16 %v1548
  %v2855 = vunpack.c.l.b16 %v1549
  %v2856 = vunpack.c.h.b16 %v1549
  %v2857 = vunpack.c.l.b16 %v1550
  %v2858 = vunpack.c.h.b16 %v1550
  %v2859 = vunpack.c.l.b16 %v1551
  %v2860 = vunpack.c.h.b16 %v1551
  %v2861 = vunpack.c.l.b16 %v1552
  %v2862 = vunpack.c.h.b16 %v1552
  %v2863 = vunpack.c.l.b16 %v1553
  %v2864 = vunpack.c.h.b16 %v1553
  %v2865 = vunpack.c.l.b16 %v1554
  %v2866 = vunpack.c.h.b16 %v1554
  %v2867 = vunpack.c.l.b16 %v1555
  %v2868 = vunpack.c.h.b16 %v1555
  %v2869 = vunpack.c.l.b16 %v1556
  %v2870 = vunpack.c.h.b16 %v1556
  %v2871 = vunpack.c.l.b16 %v1557
  %v2872 = vunpack.c.h.b16 %v1557
  %v2873 = vunpack.c.l.b16 %v1558
  %v2874 = vunpack.c.h.b16 %v1558
  %v2875 = vunpack.c.l.b16 %v1559
  %v2876 = vunpack.c.h.b16 %v1559
  %v2877 = vunpack.c.l.b16 %v1560
  %v2878 = vunpack.c.h.b16 %v1560
  %v2879 = vunpack.c.l.b16 %v1561
  %v2880 = vunpack.c.h.b16 %v1561
  %v2881 = vunpack.c.l.b16 %v1562
  %v2882 = vunpack.c.h.b16 %v1562
  %v2883 = vunpack.c.l.b16 %v1563
  %v2884 = vunpack.c.h.b16 %v1563
  %v2885 = vunpack.c.l.b16 %v1564
  %v2886 = vunpack.c.h.b16 %v1564
  %v2887 = vunpack.c.l.b16 %v1565
  %v2888 = vunpack.c.h.b16 %v1565
  %v2889 = vunpack.c.l.b16 %v1566
  %v2890 = vunpack.c.h.b16 %v1566
  %v2891 = vunpack.c.l.b16 %v1567
  %v2892 = vunpack.c.h.b16 %v1567
  %v2893 = vunpack.c.l.b16 %v1568
  %v2894 = vunpack.c.h.b16 %v1568
  %v2895 = vunpack.c.l.b16 %v1569
  %v2896 = vunpack.c.h.b16 %v1569
  %v2897 = vunpack.c.l.b16 %v1570
  %v2898 = vunpack.c.h.b16 %v1570
  %v2899 = vunpack.c.l.b16 %v1571
  %v2900 = vunpack.c.h.b16 %v1571
  %v2901 = vunpack.c.l.b16 %v1572
  %v2902 = vunpack.c.h.b16 %v1572
  %v2903 = vunpack.c.l.b16 %v1573
  %v2904 = vunpack.c.h.b16 %v1573
  %v2905 = vunpack.c.l.b16 %v1574
  %v2906 = vunpack.c.h.b16 %v1574
  %v2907 = vunpack.c.l.b16 %v1575
  %v2908 = vunpack.c.h.b16 %v1575
  %v2909 = vunpack.c.l.b16 %v1576
  %v2910 = vunpack.c.h.b16 %v1576
  %v2911 = vunpack.c.l.b16 %v1577
  %v2912 = vunpack.c.h.b16 %v1577
  %v2913 = vunpack.c.l.b16 %v1578
  %v2914 = vunpack.c.h.b16 %v1578
  %v2915 = vunpack.c.l.b16 %v1579
  %v2916 = vunpack.c.h.b16 %v1579
  %v2917 = vunpack.c.l.b16 %v1580
  %v2918 = vunpack.c.h.b16 %v1580
  %v2919 = vunpack.c.l.b16 %v1581
  %v2920 = vunpack.c.h.b16 %v1581
  %v2921 = vunpack.c.l.b16 %v1582
  %v2922 = vunpack.c.h.b16 %v1582
  %v2923 = vunpack.c.l.b16 %v1583
  %v2924 = vunpack.c.h.b16 %v1583
  %v2925 = vunpack.c.l.b16 %v1584
  %v2926 = vunpack.c.h.b16 %v1584
  %v2927 = vunpack.c.l.b16 %v1585
  %v2928 = vunpack.c.h.b16 %v1585
  %v2929 = vunpack.c.l.b16 %v1586
  %v2930 = vunpack.c.h.b16 %v1586
  %v2931 = vunpack.c.l.b16 %v1587
  %v2932 = vunpack.c.h.b16 %v1587
  %v2933 = vunpack.c.l.b16 %v1588
  %v2934 = vunpack.c.h.b16 %v1588
  %v2935 = vunpack.c.l.b16 %v1589
  %v2936 = vunpack.c.h.b16 %v1589
  %v2937 = vunpack.c.l.b16 %v1590
  %v2938 = vunpack.c.h.b16 %v1590
  %v2939 = vunpack.c.l.b16 %v1591
  %v2940 = vunpack.c.h.b16 %v1591
  %v2941 = vunpack.c.l.b16 %v1592
  %v2942 = vunpack.c.h.b16 %v1592
  %v2943 = vunpack.c.l.b16 %v1593
  %v2944 = vunpack.c.h.b16 %v1593
  %v2945 = vunpack.c.l.b16 %v1594
  %v2946 = vunpack.c.h.b16 %v1594
  %v2947 = vunpack.c.l.b16 %v1595
  %v2948 = vunpack.c.h.b16 %v1595
  %v2949 = vunpack.c.l.b16 %v1596
  %v2950 = vunpack.c.h.b16 %v1596
  %v2951 = vunpack.c.l.b16 %v1597
  %v2952 = vunpack.c.h.b16 %v1597
  %v2953 = vunpack.c.l.b16 %v1598
  %v2954 = vunpack.c.h.b16 %v1598
  %v2955 = vunpack.c.l.b16 %v1599
  %v2956 = vunpack.c.h.b16 %v1599
  %v2957 = vunpack.c.l.b16 %v1600
  %v2958 = vunpack.c.h.b16 %v1600
  %v2959 = vunpack.c.l.b16 %v1601
  %v2960 = vunpack.c.h.b16 %v1601
  %v2961 = vunpack.c.l.b16 %v1602
  %v2962 = vunpack.c.h.b16 %v1602
  %v2963 = vunpack.c.l.b16 %v1603
  %v2964 = vunpack.c.h.b16 %v1603
  %v2965 = vunpack.c.l.b16 %v1604
  %v2966 = vunpack.c.h.b16 %v1604
  %v2967 = vunpack.c.l.b16 %v1605
  %v2968 = vunpack.c.h.b16 %v1605
  %v2969 = vunpack.c.l.b16 %v1606
  %v2970 = vunpack.c.h.b16 %v1606
  %v2971 = vunpack.c.l.b16 %v1607
  %v2972 = vunpack.c.h.b16 %v1607
  %v2973 = vunpack.c.l.b16 %v1608
  %v2974 = vunpack.c.h.b16 %v1608
  %v2975 = vunpack.c.l.b16 %v1609
  %v2976 = vunpack.c.h.b16 %v1609
  %v2977 = vunpack.c.l.b16 %v1610
  %v2978 = vunpack.c.h.b16 %v1610
  %v2979 = vunpack.c.l.b16 %v1611
  %v2980 = vunpack.c.h.b16 %v1611
  %v2981 = vunpack.c.l.b16 %v1612
  %v2982 = vunpack.c.h.b16 %v1612
  %v2983 = vunpack.c.l.b16 %v1613
  %v2984 = vunpack.c.h.b16 %v1613
  %v2985 = vunpack.c.l.b16 %v1614
  %v2986 = vunpack.c.h.b16 %v1614
  %v2987 = vunpack.c.l.b16 %v1615
  %v2988 = vunpack.c.h.b16 %v1615
  %v2989 = vunpack.c.l.b16 %v1616
  %v2990 = vunpack.c.h.b16 %v1616
  %v2991 = vunpack.c.l.b16 %v1617
  %v2992 = vunpack.c.h.b16 %v1617
  %v2993 = vunpack.c.l.b16 %v1618
  %v2994 = vunpack.c.h.b16 %v1618
  %v2995 = vunpack.c.l.b16 %v1619
  %v2996 = vunpack.c.h.b16 %v1619
  %v2997 = vunpack.c.l.b16 %v1620
  %v2998 = vunpack.c.h.b16 %v1620
  %v2999 = vunpack.c.l.b16 %v1621
  %v3000 = vunpack.c.h.b16 %v1621
  %v3001 = vunpack.c.l.b16 %v1622
  %v3002 = vunpack.c.h.b16 %v1622
  %v3003 = vunpack.c.l.b16 %v1623
  %v3004 = vunpack.c.h.b16 %v1623
  %v3005 = vunpack.c.l.b16 %v1624
  %v3006 = vunpack.c.h.b16 %v1624
  %v3007 = vunpack.c.l.b16 %v1625
  %v3008 = vunpack.c.h.b16 %v1625
  %v3009 = vunpack.c.l.b16 %v1626
  %v3010 = vunpack.c.h.b16 %v1626
  %v3011 = vunpack.c.l.b16 %v1627
  %v3012 = vunpack.c.h.b16 %v1627
  %v3013 = vunpack.c.l.b16 %v1628
  %v3014 = vunpack.c.h.b16 %v1628
  %v3015 = vunpack.c.l.b16 %v1629
  %v3016 = vunpack.c.h.b16 %v1629
  %v3017 = vunpack.c.l.b16 %v1630
  %v3018 = vunpack.c.h.b16 %v1630
  %v3019 = vunpack.c.l.b16 %v1631
  %v3020 = vunpack.c.h.b16 %v1631
  %v3021 = vunpack.c.l.b16 %v1632
  %v3022 = vunpack.c.h.b16 %v1632
  %v3023 = vunpack.c.l.b16 %v1633
  %v3024 = vunpack.c.h.b16 %v1633
  %v3025 = vunpack.c.l.b16 %v1634
  %v3026 = vunpack.c.h.b16 %v1634
  %v3027 = vunpack.c.l.b16 %v1635
  %v3028 = vunpack.c.h.b16 %v1635
  %v3029 = vunpack.c.l.b16 %v1636
  %v3030 = vunpack.c.h.b16 %v1636
  %v3031 = vunpack.c.l.b16 %v1637
  %v3032 = vunpack.c.h.b16 %v1637
  %v3033 = vunpack.c.l.b16 %v1638
  %v3034 = vunpack.c.h.b16 %v1638
  %v3035 = vunpack.c.l.b16 %v1639
  %v3036 = vunpack.c.h.b16 %v1639
  %v3037 = vunpack.c.l.b16 %v1640
  %v3038 = vunpack.c.h.b16 %v1640
  %v3039 = vunpack.c.l.b16 %v1641
  %v3040 = vunpack.c.h.b16 %v1641
  %v3041 = vunpack.c.l.b16 %v1642
  %v3042 = vunpack.c.h.b16 %v1642
  %v3043 = vunpack.c.l.b16 %v1643
  %v3044 = vunpack.c.h.b16 %v1643
  %v3045 = vunpack.c.l.b16 %v1644
  %v3046 = vunpack.c.h.b16 %v1644
  %v3047 = vunpack.c.l.b16 %v1645
  %v3048 = vunpack.c.h.b16 %v1645
  %v3049 = vunpack.c.l.b16 %v1646
  %v3050 = vunpack.c.h.b16 %v1646
  %v3051 = vunpack.c.l.b16 %v1647
  %v3052 = vunpack.c.h.b16 %v1647
  %v3053 = vunpack.c.l.b16 %v1648
  %v3054 = vunpack.c.h.b16 %v1648
  %v3055 = vunpack.c.l.b16 %v1649
  %v3056 = vunpack.c.h.b16 %v1649
  %v3057 = vunpack.c.l.b16 %v1650
  %v3058 = vunpack.c.h.b16 %v1650
  %v3059 = vunpack.c.l.b16 %v1651
  %v3060 = vunpack.c.h.b16 %v1651
  %v3061 = vunpack.c.l.b16 %v1652
  %v3062 = vunpack.c.h.b16 %v1652
  %v3063 = vunpack.c.l.b16 %v1653
  %v3064 = vunpack.c.h.b16 %v1653
  %v3065 = vunpack.c.l.b16 %v1654
  %v3066 = vunpack.c.h.b16 %v1654
  %v3067 = vunpack.c.l.b16 %v1655
  %v3068 = vunpack.c.h.b16 %v1655
  %v3069 = vunpack.c.l.b16 %v1656
  %v3070 = vunpack.c.h.b16 %v1656
  %v3071 = vunpack.c.l.b16 %v1657
  %v3072 = vunpack.c.h.b16 %v1657
  %v3073 = vunpack.c.l.b16 %v1658
  %v3074 = vunpack.c.h.b16 %v1658
  %v3075 = vunpack.c.l.b16 %v1659
  %v3076 = vunpack.c.h.b16 %v1659
  %v3077 = vunpack.c.l.b16 %v1660
  %v3078 = vunpack.c.h.b16 %v1660
  %v3079 = vunpack.c.l.b16 %v1661
  %v3080 = vunpack.c.h.b16 %v1661
  %v3081 = vunpack.c.l.b16 %v1662
  %v3082 = vunpack.c.h.b16 %v1662
  %v3083 = vunpack.c.l.b16 %v1663
  %v3084 = vunpack.c.h.b16 %v1663
  %v3085 = vunpack.c.l.b16 %v1664
  %v3086 = vunpack.c.h.b16 %v1664
  %v3087 = vunpack.c.l.b16 %v1665
  %v3088 = vunpack.c.h.b16 %v1665
  %v3089 = vunpack.c.l.b16 %v1666
  %v3090 = vunpack.c.h.b16 %v1666
  %v3091 = vunpack.c.l.b16 %v1667
  %v3092 = vunpack.c.h.b16 %v1667
  %v3093 = vunpack.c.l.b16 %v1668
  %v3094 = vunpack.c.h.b16 %v1668
  %v3095 = vunpack.c.l.b16 %v1669
  %v3096 = vunpack.c.h.b16 %v1669
  %v3097 = vunpack.c.l.b16 %v1670
  %v3098 = vunpack.c.h.b16 %v1670
  %v3099 = vunpack.c.l.b16 %v1671
  %v3100 = vunpack.c.h.b16 %v1671
  %v3101 = vunpack.c.l.b16 %v1672
  %v3102 = vunpack.c.h.b16 %v1672
  %v3103 = vunpack.c.l.b16 %v1673
  %v3104 = vunpack.c.h.b16 %v1673
  %v3105 = vunpack.c.l.b16 %v1674
  %v3106 = vunpack.c.h.b16 %v1674
  %v3107 = vunpack.c.l.b16 %v1675
  %v3108 = vunpack.c.h.b16 %v1675
  %v3109 = vunpack.c.l.b16 %v1676
  %v3110 = vunpack.c.h.b16 %v1676
  %v3111 = vunpack.c.l.b16 %v1677
  %v3112 = vunpack.c.h.b16 %v1677
  %v3113 = vunpack.c.l.b16 %v1678
  %v3114 = vunpack.c.h.b16 %v1678
  %v3115 = vunpack.c.l.b16 %v1679
  %v3116 = vunpack.c.h.b16 %v1679
  %v3117 = vunpack.c.l.b16 %v1680
  %v3118 = vunpack.c.h.b16 %v1680
  %v3119 = vunpack.c.l.b16 %v1681
  %v3120 = vunpack.c.h.b16 %v1681
  %v3121 = vunpack.c.l.b16 %v1682
  %v3122 = vunpack.c.h.b16 %v1682
  %v3123 = vunpack.c.l.b16 %v1683
  %v3124 = vunpack.c.h.b16 %v1683
  %v3125 = vunpack.c.l.b16 %v1684
  %v3126 = vunpack.c.h.b16 %v1684
  %v3127 = vunpack.c.l.b16 %v1685
  %v3128 = vunpack.c.h.b16 %v1685
  %v3129 = vunpack.c.l.b16 %v1686
  %v3130 = vunpack.c.h.b16 %v1686
  %v3131 = vunpack.c.l.b16 %v1687
  %v3132 = vunpack.c.h.b16 %v1687
  %v3133 = vunpack.c.l.b16 %v1688
  %v3134 = vunpack.c.h.b16 %v1688
  %v3135 = vunpack.c.l.b16 %v1689
  %v3136 = vunpack.c.h.b16 %v1689
  %v3137 = vunpack.c.l.b16 %v1690
  %v3138 = vunpack.c.h.b16 %v1690
  %v3139 = vunpack.c.l.b16 %v1691
  %v3140 = vunpack.c.h.b16 %v1691
  %v3141 = vunpack.c.l.b16 %v1692
  %v3142 = vunpack.c.h.b16 %v1692
  %v3143 = vunpack.c.l.b16 %v1693
  %v3144 = vunpack.c.h.b16 %v1693
  %v3145 = vunpack.c.l.b16 %v1694
  %v3146 = vunpack.c.h.b16 %v1694
  %v3147 = vunpack.c.l.b16 %v1695
  %v3148 = vunpack.c.h.b16 %v1695
  %v3149 = vunpack.c.l.b16 %v1696
  %v3150 = vunpack.c.h.b16 %v1696
  %v3151 = vunpack.c.l.b16 %v1697
  %v3152 = vunpack.c.h.b16 %v1697
  %v3153 = vunpack.c.l.b16 %v1698
  %v3154 = vunpack.c.h.b16 %v1698
  %v3155 = vunpack.c.l.b16 %v1699
  %v3156 = vunpack.c.h.b16 %v1699
  %v3157 = vunpack.c.l.b16 %v1700
  %v3158 = vunpack.c.h.b16 %v1700
  %v3159 = vunpack.c.l.b16 %v1701
  %v3160 = vunpack.c.h.b16 %v1701
  %v3161 = vunpack.c.l.b16 %v1702
  %v3162 = vunpack.c.h.b16 %v1702
  %v3163 = vunpack.c.l.b16 %v1703
  %v3164 = vunpack.c.h.b16 %v1703
  %v3165 = vunpack.c.l.b16 %v1704
  %v3166 = vunpack.c.h.b16 %v1704
  %v3167 = vunpack.c.l.b16 %v1705
  %v3168 = vunpack.c.h.b16 %v1705
  %v3169 = vunpack.c.l.b16 %v1706
  %v3170 = vunpack.c.h.b16 %v1706
  %v3171 = vunpack.c.l.b16 %v1707
  %v3172 = vunpack.c.h.b16 %v1707
  %v3173 = vunpack.c.l.b16 %v1708
  %v3174 = vunpack.c.h.b16 %v1708
  %v3175 = vunpack.c.l.b16 %v1709
  %v3176 = vunpack.c.h.b16 %v1709
  %v3177 = vunpack.c.l.b16 %v1710
  %v3178 = vunpack.c.h.b16 %v1710
  %v3179 = vunpack.c.l.b16 %v1711
  %v3180 = vunpack.c.h.b16 %v1711
  %v3181 = vunpack.c.l.b16 %v1712
  %v3182 = vunpack.c.h.b16 %v1712
  %v3183 = vunpack.c.l.b16 %v1713
  %v3184 = vunpack.c.h.b16 %v1713
  %v3185 = vunpack.c.l.b16 %v1714
  %v3186 = vunpack.c.h.b16 %v1714
  %v3187 = vunpack.c.l.b16 %v1715
  %v3188 = vunpack.c.h.b16 %v1715
  %v3189 = vunpack.c.l.b16 %v1716
  %v3190 = vunpack.c.h.b16 %v1716
  %v3191 = vunpack.c.l.b16 %v1717
  %v3192 = vunpack.c.h.b16 %v1717
  %v3193 = vunpack.c.l.b16 %v1718
  %v3194 = vunpack.c.h.b16 %v1718
  %v3195 = vunpack.c.l.b16 %v1719
  %v3196 = vunpack.c.h.b16 %v1719
  %v3197 = vunpack.c.l.b16 %v1720
  %v3198 = vunpack.c.h.b16 %v1720
  %v3199 = vunpack.c.l.b16 %v1721
  %v3200 = vunpack.c.h.b16 %v1721
  %v3201 = vunpack.c.l.b16 %v1722
  %v3202 = vunpack.c.h.b16 %v1722
  %v3203 = vunpack.c.l.b16 %v1723
  %v3204 = vunpack.c.h.b16 %v1723
  %v3205 = vunpack.c.l.b16 %v1724
  %v3206 = vunpack.c.h.b16 %v1724
  %v3207 = vunpack.c.l.b16 %v1725
  %v3208 = vunpack.c.h.b16 %v1725
  %v3209 = vunpack.c.l.b16 %v1726
  %v3210 = vunpack.c.h.b16 %v1726
  %v3211 = vunpack.c.l.b16 %v1727
  %v3212 = vunpack.c.h.b16 %v1727
  %v3213 = vunpack.c.l.b16 %v1728
  %v3214 = vunpack.c.h.b16 %v1728
  %v3215 = vunpack.c.l.b16 %v1729
  %v3216 = vunpack.c.h.b16 %v1729
  %v3217 = vunpack.c.l.b16 %v1730
  %v3218 = vunpack.c.h.b16 %v1730
  %v3219 = vunpack.c.l.b16 %v1731
  %v3220 = vunpack.c.h.b16 %v1731
  %v3221 = vunpack.c.l.b16 %v1732
  %v3222 = vunpack.c.h.b16 %v1732
  %v3223 = vunpack.c.l.b16 %v1733
  %v3224 = vunpack.c.h.b16 %v1733
  %v3225 = vunpack.c.l.b16 %v1734
  %v3226 = vunpack.c.h.b16 %v1734
  %v3227 = vunpack.c.l.b16 %v1735
  %v3228 = vunpack.c.h.b16 %v1735
  %v3229 = vunpack.c.l.b16 %v1736
  %v3230 = vunpack.c.h.b16 %v1736
  %v3231 = vunpack.c.l.b16 %v1737
  %v3232 = vunpack.c.h.b16 %v1737
  %v3233 = vunpack.c.l.b16 %v1738
  %v3234 = vunpack.c.h.b16 %v1738
  %v3235 = vunpack.c.l.b16 %v1739
  %v3236 = vunpack.c.h.b16 %v1739
  %v3237 = vunpack.c.l.b16 %v1740
  %v3238 = vunpack.c.h.b16 %v1740
  %v3239 = vunpack.c.l.b16 %v1741
  %v3240 = vunpack.c.h.b16 %v1741
  %v3241 = vunpack.c.l.b16 %v1742
  %v3242 = vunpack.c.h.b16 %v1742
  %v3243 = vunpack.c.l.b16 %v1743
  %v3244 = vunpack.c.h.b16 %v1743
  %v3245 = vunpack.c.l.b16 %v1744
  %v3246 = vunpack.c.h.b16 %v1744
  %v3247 = vunpack.c.l.b16 %v1745
  %v3248 = vunpack.c.h.b16 %v1745
  %v3249 = vunpack.c.l.b16 %v1746
  %v3250 = vunpack.c.h.b16 %v1746
  %v3251 = vunpack.c.l.b16 %v1747
  %v3252 = vunpack.c.h.b16 %v1747
  %v3253 = vunpack.c.l.b16 %v1748
  %v3254 = vunpack.c.h.b16 %v1748
  %v3255 = vunpack.c.l.b16 %v1749
  %v3256 = vunpack.c.h.b16 %v1749
  %v3257 = vunpack.c.l.b16 %v1750
  %v3258 = vunpack.c.h.b16 %v1750
  %v3259 = vunpack.c.l.b16 %v1751
  %v3260 = vunpack.c.h.b16 %v1751
  %v3261 = vunpack.c.l.b16 %v1752
  %v3262 = vunpack.c.h.b16 %v1752
  %v3263 = vunpack.c.l.b16 %v1753
  %v3264 = vunpack.c.h.b16 %v1753
  %v3265 = vunpack.c.l.b16 %v1754
  %v3266 = vunpack.c.h.b16 %v1754
  %v3267 = vunpack.c.l.b16 %v1755
  %v3268 = vunpack.c.h.b16 %v1755
  %v3269 = vunpack.c.l.b16 %v1756
  %v3270 = vunpack.c.h.b16 %v1756
  %v3271 = vunpack.c.l.b16 %v1757
  %v3272 = vunpack.c.h.b16 %v1757
  %v3273 = vunpack.c.l.b16 %v1758
  %v3274 = vunpack.c.h.b16 %v1758
  %v3275 = vunpack.c.l.b16 %v1759
  %v3276 = vunpack.c.h.b16 %v1759
  %v3277 = vunpack.c.l.b16 %v1760
  %v3278 = vunpack.c.h.b16 %v1760
  %v3279 = vunpack.c.l.b16 %v1761
  %v3280 = vunpack.c.h.b16 %v1761
  %v3281 = vunpack.c.l.b16 %v1762
  %v3282 = vunpack.c.h.b16 %v1762
  %v3283 = vunpack.c.l.b16 %v1763
  %v3284 = vunpack.c.h.b16 %v1763
  %v3285 = vunpack.c.l.b16 %v1764
  %v3286 = vunpack.c.h.b16 %v1764
  %v3287 = vunpack.c.l.b16 %v1765
  %v3288 = vunpack.c.h.b16 %v1765
  %v3289 = vunpack.c.l.b16 %v1766
  %v3290 = vunpack.c.h.b16 %v1766
  %v3291 = vunpack.c.l.b16 %v1767
  %v3292 = vunpack.c.h.b16 %v1767
  %v3293 = vunpack.c.l.b16 %v1768
  %v3294 = vunpack.c.h.b16 %v1768
  %v3295 = vunpack.c.l.b16 %v1769
  %v3296 = vunpack.c.h.b16 %v1769
  %v3297 = vunpack.c.l.b16 %v1770
  %v3298 = vunpack.c.h.b16 %v1770
  %v3299 = vunpack.c.l.b16 %v1771
  %v3300 = vunpack.c.h.b16 %v1771
  %v3301 = vunpack.c.l.b16 %v1772
  %v3302 = vunpack.c.h.b16 %v1772
  %v3303 = vunpack.c.l.b16 %v1773
  %v3304 = vunpack.c.h.b16 %v1773
  %v3305 = vunpack.c.l.b16 %v1774
  %v3306 = vunpack.c.h.b16 %v1774
  %v3307 = vunpack.c.l.b16 %v1775
  %v3308 = vunpack.c.h.b16 %v1775
  %v3309 = vunpack.c.l.b16 %v1776
  %v3310 = vunpack.c.h.b16 %v1776
  %v3311 = vunpack.c.l.b16 %v1777
  %v3312 = vunpack.c.h.b16 %v1777
  %v3313 = vunpack.c.l.b16 %v1778
  %v3314 = vunpack.c.h.b16 %v1778
  %v3315 = vunpack.c.l.b16 %v1779
  %v3316 = vunpack.c.h.b16 %v1779
  %v3317 = vunpack.c.l.b16 %v1780
  %v3318 = vunpack.c.h.b16 %v1780
  %v3319 = vunpack.c.l.b16 %v1781
  %v3320 = vunpack.c.h.b16 %v1781
  %v3321 = vunpack.c.l.b16 %v1782
  %v3322 = vunpack.c.h.b16 %v1782
  %v3323 = vunpack.c.l.b16 %v1783
  %v3324 = vunpack.c.h.b16 %v1783
  %v3325 = vunpack.c.l.b16 %v1784
  %v3326 = vunpack.c.h.b16 %v1784
  %v3327 = vunpack.c.l.b16 %v1785
  %v3328 = vunpack.c.h.b16 %v1785
  %v3329 = vunpack.c.l.b16 %v1786
  %v3330 = vunpack.c.h.b16 %v1786
  %v3331 = vunpack.c.l.b16 %v1787
  %v3332 = vunpack.c.h.b16 %v1787
  %v3333 = vunpack.c.l.b16 %v1788
  %v3334 = vunpack.c.h.b16 %v1788
  %v3335 = vunpack.c.l.b16 %v1789
  %v3336 = vunpack.c.h.b16 %v1789
  %v3337 = vunpack.c.l.b16 %v1790
  %v3338 = vunpack.c.h.b16 %v1790
  %v3339 = vunpack.c.l.b16 %v1791
  %v3340 = vunpack.c.h.b16 %v1791
  %v3341 = vunpack.c.l.b16 %v1792
  %v3342 = vunpack.c.h.b16 %v1792
  %v3343 = vunpack.c.l.b16 %v1793
  %v3344 = vunpack.c.h.b16 %v1793
  %v3345 = vunpack.c.l.b16 %v1794
  %v3346 = vunpack.c.h.b16 %v1794
  %v3347 = vunpack.c.l.b16 %v1795
  %v3348 = vunpack.c.h.b16 %v1795
  %v3349 = vunpack.c.l.b16 %v1796
  %v3350 = vunpack.c.h.b16 %v1796
  %v3351 = vunpack.c.l.b16 %v1797
  %v3352 = vunpack.c.h.b16 %v1797
  %v3353 = vunpack.c.l.b16 %v1798
  %v3354 = vunpack.c.h.b16 %v1798
  %v3355 = vunpack.c.l.b16 %v1799
  %v3356 = vunpack.c.h.b16 %v1799
  %v3357 = vunpack.c.l.b16 %v1800
  %v3358 = vunpack.c.h.b16 %v1800
  %v3359 = vunpack.c.l.b16 %v1801
  %v3360 = vunpack.c.h.b16 %v1801
  %v3361 = vunpack.c.l.b16 %v1802
  %v3362 = vunpack.c.h.b16 %v1802
  %v3363 = vunpack.c.l.b16 %v1803
  %v3364 = vunpack.c.h.b16 %v1803
  %v3365 = vunpack.c.l.b16 %v1804
  %v3366 = vunpack.c.h.b16 %v1804
  %v3367 = vunpack.c.l.b16 %v1805
  %v3368 = vunpack.c.h.b16 %v1805
  %v3369 = vunpack.c.l.b16 %v1806
  %v3370 = vunpack.c.h.b16 %v1806
  %v3371 = vunpack.c.l.b16 %v1807
  %v3372 = vunpack.c.h.b16 %v1807
  %v3373 = vunpack.c.l.b16 %v1808
  %v3374 = vunpack.c.h.b16 %v1808
  %v3375 = vunpack.c.l.b16 %v1809
  %v3376 = vunpack.c.h.b16 %v1809
  %v3377 = vunpack.c.l.b16 %v1810
  %v3378 = vunpack.c.h.b16 %v1810
  %v3379 = vunpack.c.l.b16 %v1811
  %v3380 = vunpack.c.h.b16 %v1811
  %v3381 = vunpack.c.l.b16 %v1812
  %v3382 = vunpack.c.h.b16 %v1812
  %v3383 = vunpack.c.l.b16 %v1813
  %v3384 = vunpack.c.h.b16 %v1813
  %v3385 = vunpack.c.l.b16 %v1814
  %v3386 = vunpack.c.h.b16 %v1814
  %v3387 = vunpack.c.l.b16 %v1815
  %v3388 = vunpack.c.h.b16 %v1815
  %v3389 = vunpack.c.l.b16 %v1816
  %v3390 = vunpack.c.h.b16 %v1816
  %v3391 = vunpack.c.l.b16 %v1817
  %v3392 = vunpack.c.h.b16 %v1817
  %v3393 = vunpack.c.l.b16 %v1818
  %v3394 = vunpack.c.h.b16 %v1818
  %v3395 = vunpack.c.l.b16 %v1819
  %v3396 = vunpack.c.h.b16 %v1819
  %v3397 = vunpack.c.l.b16 %v1820
  %v3398 = vunpack.c.h.b16 %v1820
  %v3399 = vpack.c.b16 %v2383, %v2375
  %v3400 = vpack.c.b16 %v2384, %v2376
  %v3401 = vpack.c.b16 %v2385, %v2377
  %v3402 = vpack.c.b16 %v2386, %v2378
  %v3403 = vpack.c.b16 %v2387, %v2379
  %v3404 = vpack.c.b16 %v2388, %v2380
  %v3405 = vpack.c.b16 %v2389, %v2381
  %v3406 = vpack.c.b16 %v2390, %v2382
  %v3407 = vpack.c.b16 %v2399, %v2391
  %v3408 = vpack.c.b16 %v2400, %v2392
  %v3409 = vpack.c.b16 %v2401, %v2393
  %v3410 = vpack.c.b16 %v2402, %v2394
  %v3411 = vpack.c.b16 %v2403, %v2395
  %v3412 = vpack.c.b16 %v2404, %v2396
  %v3413 = vpack.c.b16 %v2405, %v2397
  %v3414 = vpack.c.b16 %v2406, %v2398
  %v3415 = vpack.c.b16 %v2415, %v2407
  %v3416 = vpack.c.b16 %v2416, %v2408
  %v3417 = vpack.c.b16 %v2417, %v2409
  %v3418 = vpack.c.b16 %v2418, %v2410
  %v3419 = vpack.c.b16 %v2419, %v2411
  %v3420 = vpack.c.b16 %v2420, %v2412
  %v3421 = vpack.c.b16 %v2421, %v2413
  %v3422 = vpack.c.b16 %v2422, %v2414
  %v3423 = vpack.c.b16 %v2431, %v2423
  %v3424 = vpack.c.b16 %v2432, %v2424
  %v3425 = vpack.c.b16 %v2433, %v2425
  %v3426 = vpack.c.b16 %v2434, %v2426
  %v3427 = vpack.c.b16 %v2435, %v2427
  %v3428 = vpack.c.b16 %v2436, %v2428
  %v3429 = vpack.c.b16 %v2437, %v2429
  %v3430 = vpack.c.b16 %v2438, %v2430
  %v3431 = vpack.c.b16 %v2447, %v2439
  %v3432 = vpack.c.b16 %v2448, %v2440
  %v3433 = vpack.c.b16 %v2449, %v2441
  %v3434 = vpack.c.b16 %v2450, %v2442
  %v3435 = vpack.c.b16 %v2451, %v2443
  %v3436 = vpack.c.b16 %v2452, %v2444
  %v3437 = vpack.c.b16 %v2453, %v2445
  %v3438 = vpack.c.b16 %v2454, %v2446
  %v3439 = vpack.c.b16 %v2463, %v2455
  %v3440 = vpack.c.b16 %v2464, %v2456
  %v3441 = vpack.c.b16 %v2465, %v2457
  %v3442 = vpack.c.b16 %v2466, %v2458
  %v3443 = vpack.c.b16 %v2467, %v2459
  %v3444 = vpack.c.b16 %v2468, %v2460
  %v3445 = vpack.c.b16 %v2469, %v2461
  %v3446 = vpack.c.b16 %v2470, %v2462
  %v3447 = vpack.c.b16 %v2479, %v2471
  %v3448 = vpack.c.b16 %v2480, %v2472
  %v3449 = vpack.c.b16 %v2481, %v2473
  %v3450 = vpack.c.b16 %v2482, %v2474
  %v3451 = vpack.c.b16 %v2483, %v2475
  %v3452 = vpack.c.b16 %v2484, %v2476
  %v3453 = vpack.c.b16 %v2485, %v2477
  %v3454 = vpack.c.b16 %v2486, %v2478
  %v3455 = vpack.c.b16 %v2495, %v2487
  %v3456 = vpack.c.b16 %v2496, %v2488
  %v3457 = vpack.c.b16 %v2497, %v2489
  %v3458 = vpack.c.b16 %v2498, %v2490
  %v3459 = vpack.c.b16 %v2499, %v2491
  %v3460 = vpack.c.b16 %v2500, %v2492
  %v3461 = vpack.c.b16 %v2501, %v2493
  %v3462 = vpack.c.b16 %v2502, %v2494
  %v3463 = vpack.c.b16 %v2511, %v2503
  %v3464 = vpack.c.b16 %v2512, %v2504
  %v3465 = vpack.c.b16 %v2513, %v2505
  %v3466 = vpack.c.b16 %v2514, %v2506
  %v3467 = vpack.c.b16 %v2515, %v2507
  %v3468 = vpack.c.b16 %v2516, %v2508
  %v3469 = vpack.c.b16 %v2517, %v2509
  %v3470 = vpack.c.b16 %v2518, %v2510
  %v3471 = vpack.c.b16 %v2527, %v2519
  %v3472 = vpack.c.b16 %v2528, %v2520
  %v3473 = vpack.c.b16 %v2529, %v2521
  %v3474 = vpack.c.b16 %v2530, %v2522
  %v3475 = vpack.c.b16 %v2531, %v2523
  %v3476 = vpack.c.b16 %v2532, %v2524
  %v3477 = vpack.c.b16 %v2533, %v2525
  %v3478 = vpack.c.b16 %v2534, %v2526
  %v3479 = vpack.c.b16 %v2543, %v2535
  %v3480 = vpack.c.b16 %v2544, %v2536
  %v3481 = vpack.c.b16 %v2545, %v2537
  %v3482 = vpack.c.b16 %v2546, %v2538
  %v3483 = vpack.c.b16 %v2547, %v2539
  %v3484 = vpack.c.b16 %v2548, %v2540
  %v3485 = vpack.c.b16 %v2549, %v2541
  %v3486 = vpack.c.b16 %v2550, %v2542
  %v3487 = vpack.c.b16 %v2559, %v2551
  %v3488 = vpack.c.b16 %v2560, %v2552
  %v3489 = vpack.c.b16 %v2561, %v2553
  %v3490 = vpack.c.b16 %v2562, %v2554
  %v3491 = vpack.c.b16 %v2563, %v2555
  %v3492 = vpack.c.b16 %v2564, %v2556
  %v3493 = vpack.c.b16 %v2565, %v2557
  %v3494 = vpack.c.b16 %v2566, %v2558
  %v3495 = vpack.c.b16 %v2575, %v2567
  %v3496 = vpack.c.b16 %v2576, %v2568
  %v3497 = vpack.c.b16 %v2577, %v2569
  %v3498 = vpack.c.b16 %v2578, %v2570
  %v3499 = vpack.c.b16 %v2579, %v2571
  %v3500 = vpack.c.b16 %v2580, %v2572
  %v3501 = vpack.c.b16 %v2581, %v2573
  %v3502 = vpack.c.b16 %v2582, %v2574
  %v3503 = vpack.c.b16 %v2591, %v2583
  %v3504 = vpack.c.b16 %v2592, %v2584
  %v3505 = vpack.c.b16 %v2593, %v2585
  %v3506 = vpack.c.b16 %v2594, %v2586
  %v3507 = vpack.c.b16 %v2595, %v2587
  %v3508 = vpack.c.b16 %v2596, %v2588
  %v3509 = vpack.c.b16 %v2597, %v2589
  %v3510 = vpack.c.b16 %v2598, %v2590
  %v3511 = vpack.c.b16 %v2607, %v2599
  %v3512 = vpack.c.b16 %v2608, %v2600
  %v3513 = vpack.c.b16 %v2609, %v2601
  %v3514 = vpack.c.b16 %v2610, %v2602
  %v3515 = vpack.c.b16 %v2611, %v2603
  %v3516 = vpack.c.b16 %v2612, %v2604
  %v3517 = vpack.c.b16 %v2613, %v2605
  %v3518 = vpack.c.b16 %v2614, %v2606
  %v3519 = vpack.c.b16 %v2623, %v2615
  %v3520 = vpack.c.b16 %v2624, %v2616
  %v3521 = vpack.c.b16 %v2625, %v2617
  %v3522 = vpack.c.b16 %v2626, %v2618
  %v3523 = vpack.c.b16 %v2627, %v2619
  %v3524 = vpack.c.b16 %v2628, %v2620
  %v3525 = vpack.c.b16 %v2629, %v2621
  %v3526 = vpack.c.b16 %v2630, %v2622
  %v3527 = vpack.c.b16 %v2639, %v2631
  %v3528 = vpack.c.b16 %v2640, %v2632
  %v3529 = vpack.c.b16 %v2641, %v2633
  %v3530 = vpack.c.b16 %v2642, %v2634
  %v3531 = vpack.c.b16 %v2643, %v2635
  %v3532 = vpack.c.b16 %v2644, %v2636
  %v3533 = vpack.c.b16 %v2645, %v2637
  %v3534 = vpack.c.b16 %v2646, %v2638
  %v3535 = vpack.c.b16 %v2655, %v2647
  %v3536 = vpack.c.b16 %v2656, %v2648
  %v3537 = vpack.c.b16 %v2657, %v2649
  %v3538 = vpack.c.b16 %v2658, %v2650
  %v3539 = vpack.c.b16 %v2659, %v2651
  %v3540 = vpack.c.b16 %v2660, %v2652
  %v3541 = vpack.c.b16 %v2661, %v2653
  %v3542 = vpack.c.b16 %v2662, %v2654
  %v3543 = vpack.c.b16 %v2671, %v2663
  %v3544 = vpack.c.b16 %v2672, %v2664
  %v3545 = vpack.c.b16 %v2673, %v2665
  %v3546 = vpack.c.b16 %v2674, %v2666
  %v3547 = vpack.c.b16 %v2675, %v2667
  %v3548 = vpack.c.b16 %v2676, %v2668
  %v3549 = vpack.c.b16 %v2677, %v2669
  %v3550 = vpack.c.b16 %v2678, %v2670
  %v3551 = vpack.c.b16 %v2687, %v2679
  %v3552 = vpack.c.b16 %v2688, %v2680
  %v3553 = vpack.c.b16 %v2689, %v2681
  %v3554 = vpack.c.b16 %v2690, %v2682
  %v3555 = vpack.c.b16 %v2691, %v2683
  %v3556 = vpack.c.b16 %v2692, %v2684
  %v3557 = vpack.c.b16 %v2693, %v2685
  %v3558 = vpack.c.b16 %v2694, %v2686
  %v3559 = vpack.c.b16 %v2703, %v2695
  %v3560 = vpack.c.b16 %v2704, %v2696
  %v3561 = vpack.c.b16 %v2705, %v2697
  %v3562 = vpack.c.b16 %v2706, %v2698
  %v3563 = vpack.c.b16 %v2707, %v2699
  %v3564 = vpack.c.b16 %v2708, %v2700
  %v3565 = vpack.c.b16 %v2709, %v2701
  %v3566 = vpack.c.b16 %v2710, %v2702
  %v3567 = vpack.c.b16 %v2719, %v2711
  %v3568 = vpack.c.b16 %v2720, %v2712
  %v3569 = vpack.c.b16 %v2721, %v2713
  %v3570 = vpack.c.b16 %v2722, %v2714
  %v3571 = vpack.c.b16 %v2723, %v2715
  %v3572 = vpack.c.b16 %v2724, %v2716
  %v3573 = vpack.c.b16 %v2725, %v2717
  %v3574 = vpack.c.b16 %v2726, %v2718
  %v3575 = vpack.c.b16 %v2735, %v2727
  %v3576 = vpack.c.b16 %v2736, %v2728
  %v3577 = vpack.c.b16 %v2737, %v2729
  %v3578 = vpack.c.b16 %v2738, %v2730
  %v3579 = vpack.c.b16 %v2739, %v2731
  %v3580 = vpack.c.b16 %v2740, %v2732
  %v3581 = vpack.c.b16 %v2741, %v2733
  %v3582 = vpack.c.b16 %v2742, %v2734
  %v3583 = vpack.c.b16 %v2751, %v2743
  %v3584 = vpack.c.b16 %v2752, %v2744
  %v3585 = vpack.c.b16 %v2753, %v2745
  %v3586 = vpack.c.b16 %v2754, %v2746
  %v3587 = vpack.c.b16 %v2755, %v2747
  %v3588 = vpack.c.b16 %v2756, %v2748
  %v3589 = vpack.c.b16 %v2757, %v2749
  %v3590 = vpack.c.b16 %v2758, %v2750
  %v3591 = vpack.c.b16 %v2767, %v2759
  %v3592 = vpack.c.b16 %v2768, %v2760
  %v3593 = vpack.c.b16 %v2769, %v2761
  %v3594 = vpack.c.b16 %v2770, %v2762
  %v3595 = vpack.c.b16 %v2771, %v2763
  %v3596 = vpack.c.b16 %v2772, %v2764
  %v3597 = vpack.c.b16 %v2773, %v2765
  %v3598 = vpack.c.b16 %v2774, %v2766
  %v3599 = vpack.c.b16 %v2783, %v2775
  %v3600 = vpack.c.b16 %v2784, %v2776
  %v3601 = vpack.c.b16 %v2785, %v2777
  %v3602 = vpack.c.b16 %v2786, %v2778
  %v3603 = vpack.c.b16 %v2787, %v2779
  %v3604 = vpack.c.b16 %v2788, %v2780
  %v3605 = vpack.c.b16 %v2789, %v2781
  %v3606 = vpack.c.b16 %v2790, %v2782
  %v3607 = vpack.c.b16 %v2799, %v2791
  %v3608 = vpack.c.b16 %v2800, %v2792
  %v3609 = vpack.c.b16 %v2801, %v2793
  %v3610 = vpack.c.b16 %v2802, %v2794
  %v3611 = vpack.c.b16 %v2803, %v2795
  %v3612 = vpack.c.b16 %v2804, %v2796
  %v3613 = vpack.c.b16 %v2805, %v2797
  %v3614 = vpack.c.b16 %v2806, %v2798
  %v3615 = vpack.c.b16 %v2815, %v2807
  %v3616 = vpack.c.b16 %v2816, %v2808
  %v3617 = vpack.c.b16 %v2817, %v2809
  %v3618 = vpack.c.b16 %v2818, %v2810
  %v3619 = vpack.c.b16 %v2819, %v2811
  %v3620 = vpack.c.b16 %v2820, %v2812
  %v3621 = vpack.c.b16 %v2821, %v2813
  %v3622 = vpack.c.b16 %v2822, %v2814
  %v3623 = vpack.c.b16 %v2831, %v2823
  %v3624 = vpack.c.b16 %v2832, %v2824
  %v3625 = vpack.c.b16 %v2833, %v2825
  %v3626 = vpack.c.b16 %v2834, %v2826
  %v3627 = vpack.c.b16 %v2835, %v2827
  %v3628 = vpack.c.b16 %v2836, %v2828
  %v3629 = vpack.c.b16 %v2837, %v2829
  %v3630 = vpack.c.b16 %v2838, %v2830
  %v3631 = vpack.c.b16 %v2847, %v2839
  %v3632 = vpack.c.b16 %v2848, %v2840
  %v3633 = vpack.c.b16 %v2849, %v2841
  %v3634 = vpack.c.b16 %v2850, %v2842
  %v3635 = vpack.c.b16 %v2851, %v2843
  %v3636 = vpack.c.b16 %v2852, %v2844
  %v3637 = vpack.c.b16 %v2853, %v2845
  %v3638 = vpack.c.b16 %v2854, %v2846
  %v3639 = vpack.c.b16 %v2863, %v2855
  %v3640 = vpack.c.b16 %v2864, %v2856
  %v3641 = vpack.c.b16 %v2865, %v2857
  %v3642 = vpack.c.b16 %v2866, %v2858
  %v3643 = vpack.c.b16 %v2867, %v2859
  %v3644 = vpack.c.b16 %v2868, %v2860
  %v3645 = vpack.c.b16 %v2869, %v2861
  %v3646 = vpack.c.b16 %v2870, %v2862
  %v3647 = vpack.c.b16 %v2879, %v2871
  %v3648 = vpack.c.b16 %v2880, %v2872
  %v3649 = vpack.c.b16 %v2881, %v2873
  %v3650 = vpack.c.b16 %v2882, %v2874
  %v3651 = vpack.c.b16 %v2883, %v2875
  %v3652 = vpack.c.b16 %v2884, %v2876
  %v3653 = vpack.c.b16 %v2885, %v2877
  %v3654 = vpack.c.b16 %v2886, %v2878
  %v3655 = vpack.c.b16 %v2895, %v2887
  %v3656 = vpack.c.b16 %v2896, %v2888
  %v3657 = vpack.c.b16 %v2897, %v2889
  %v3658 = vpack.c.b16 %v2898, %v2890
  %v3659 = vpack.c.b16 %v2899, %v2891
  %v3660 = vpack.c.b16 %v2900, %v2892
  %v3661 = vpack.c.b16 %v2901, %v2893
  %v3662 = vpack.c.b16 %v2902, %v2894
  %v3663 = vpack.c.b16 %v2911, %v2903
  %v3664 = vpack.c.b16 %v2912, %v2904
  %v3665 = vpack.c.b16 %v2913, %v2905
  %v3666 = vpack.c.b16 %v2914, %v2906
  %v3667 = vpack.c.b16 %v2915, %v2907
  %v3668 = vpack.c.b16 %v2916, %v2908
  %v3669 = vpack.c.b16 %v2917, %v2909
  %v3670 = vpack.c.b16 %v2918, %v2910
  %v3671 = vpack.c.b16 %v2927, %v2919
  %v3672 = vpack.c.b16 %v2928, %v2920
  %v3673 = vpack.c.b16 %v2929, %v2921
  %v3674 = vpack.c.b16 %v2930, %v2922
  %v3675 = vpack.c.b16 %v2931, %v2923
  %v3676 = vpack.c.b16 %v2932, %v2924
  %v3677 = vpack.c.b16 %v2933, %v2925
  %v3678 = vpack.c.b16 %v2934, %v2926
  %v3679 = vpack.c.b16 %v2943, %v2935
  %v3680 = vpack.c.b16 %v2944, %v2936
  %v3681 = vpack.c.b16 %v2945, %v2937
  %v3682 = vpack.c.b16 %v2946, %v2938
  %v3683 = vpack.c.b16 %v2947, %v2939
  %v3684 = vpack.c.b16 %v2948, %v2940
  %v3685 = vpack.c.b16 %v2949, %v2941
  %v3686 = vpack.c.b16 %v2950, %v2942
  %v3687 = vpack.c.b16 %v2959, %v2951
  %v3688 = vpack.c.b16 %v2960, %v2952
  %v3689 = vpack.c.b16 %v2961, %v2953
  %v3690 = vpack.c.b16 %v2962, %v2954
  %v3691 = vpack.c.b16 %v2963, %v2955
  %v3692 = vpack.c.b16 %v2964, %v2956
  %v3693 = vpack.c.b16 %v2965, %v2957
  %v3694 = vpack.c.b16 %v2966, %v2958
  %v3695 = vpack.c.b16 %v2975, %v2967
  %v3696 = vpack.c.b16 %v2976, %v2968
  %v3697 = vpack.c.b16 %v2977, %v2969
  %v3698 = vpack.c.b16 %v2978, %v2970
  %v3699 = vpack.c.b16 %v2979, %v2971
  %v3700 = vpack.c.b16 %v2980, %v2972
  %v3701 = vpack.c.b16 %v2981, %v2973
  %v3702 = vpack.c.b16 %v2982, %v2974
  %v3703 = vpack.c.b16 %v2991, %v2983
  %v3704 = vpack.c.b16 %v2992, %v2984
  %v3705 = vpack.c.b16 %v2993, %v2985
  %v3706 = vpack.c.b16 %v2994, %v2986
  %v3707 = vpack.c.b16 %v2995, %v2987
  %v3708 = vpack.c.b16 %v2996, %v2988
  %v3709 = vpack.c.b16 %v2997, %v2989
  %v3710 = vpack.c.b16 %v2998, %v2990
  %v3711 = vpack.c.b16 %v3007, %v2999
  %v3712 = vpack.c.b16 %v3008, %v3000
  %v3713 = vpack.c.b16 %v3009, %v3001
  %v3714 = vpack.c.b16 %v3010, %v3002
  %v3715 = vpack.c.b16 %v3011, %v3003
  %v3716 = vpack.c.b16 %v3012, %v3004
  %v3717 = vpack.c.b16 %v3013, %v3005
  %v3718 = vpack.c.b16 %v3014, %v3006
  %v3719 = vpack.c.b16 %v3023, %v3015
  %v3720 = vpack.c.b16 %v3024, %v3016
  %v3721 = vpack.c.b16 %v3025, %v3017
  %v3722 = vpack.c.b16 %v3026, %v3018
  %v3723 = vpack.c.b16 %v3027, %v3019
  %v3724 = vpack.c.b16 %v3028, %v3020
  %v3725 = vpack.c.b16 %v3029, %v3021
  %v3726 = vpack.c.b16 %v3030, %v3022
  %v3727 = vpack.c.b16 %v3039, %v3031
  %v3728 = vpack.c.b16 %v3040, %v3032
  %v3729 = vpack.c.b16 %v3041, %v3033
  %v3730 = vpack.c.b16 %v3042, %v3034
  %v3731 = vpack.c.b16 %v3043, %v3035
  %v3732 = vpack.c.b16 %v3044, %v3036
  %v3733 = vpack.c.b16 %v3045, %v3037
  %v3734 = vpack.c.b16 %v3046, %v3038
  %v3735 = vpack.c.b16 %v3055, %v3047
  %v3736 = vpack.c.b16 %v3056, %v3048
  %v3737 = vpack.c.b16 %v3057, %v3049
  %v3738 = vpack.c.b16 %v3058, %v3050
  %v3739 = vpack.c.b16 %v3059, %v3051
  %v3740 = vpack.c.b16 %v3060, %v3052
  %v3741 = vpack.c.b16 %v3061, %v3053
  %v3742 = vpack.c.b16 %v3062, %v3054
  %v3743 = vpack.c.b16 %v3071, %v3063
  %v3744 = vpack.c.b16 %v3072, %v3064
  %v3745 = vpack.c.b16 %v3073, %v3065
  %v3746 = vpack.c.b16 %v3074, %v3066
  %v3747 = vpack.c.b16 %v3075, %v3067
  %v3748 = vpack.c.b16 %v3076, %v3068
  %v3749 = vpack.c.b16 %v3077, %v3069
  %v3750 = vpack.c.b16 %v3078, %v3070
  %v3751 = vpack.c.b16 %v3087, %v3079
  %v3752 = vpack.c.b16 %v3088, %v3080
  %v3753 = vpack.c.b16 %v3089, %v3081
  %v3754 = vpack.c.b16 %v3090, %v3082
  %v3755 = vpack.c.b16 %v3091, %v3083
  %v3756 = vpack.c.b16 %v3092, %v3084
  %v3757 = vpack.c.b16 %v3093, %v3085
  %v3758 = vpack.c.b16 %v3094, %v3086
  %v3759 = vpack.c.b16 %v3103, %v3095
  %v3760 = vpack.c.b16 %v3104, %v3096
  %v3761 = vpack.c.b16 %v3105, %v3097
  %v3762 = vpack.c.b16 %v3106, %v3098
  %v3763 = vpack.c.b16 %v3107, %v3099
  %v3764 = vpack.c.b16 %v3108, %v3100
  %v3765 = vpack.c.b16 %v3109, %v3101
  %v3766 = vpack.c.b16 %v3110, %v3102
  %v3767 = vpack.c.b16 %v3119, %v3111
  %v3768 = vpack.c.b16 %v3120, %v3112
  %v3769 = vpack.c.b16 %v3121, %v3113
  %v3770 = vpack.c.b16 %v3122, %v3114
  %v3771 = vpack.c.b16 %v3123, %v3115
  %v3772 = vpack.c.b16 %v3124, %v3116
  %v3773 = vpack.c.b16 %v3125, %v3117
  %v3774 = vpack.c.b16 %v3126, %v3118
  %v3775 = vpack.c.b16 %v3135, %v3127
  %v3776 = vpack.c.b16 %v3136, %v3128
  %v3777 = vpack.c.b16 %v3137, %v3129
  %v3778 = vpack.c.b16 %v3138, %v3130
  %v3779 = vpack.c.b16 %v3139, %v3131
  %v3780 = vpack.c.b16 %v3140, %v3132
  %v3781 = vpack.c.b16 %v3141, %v3133
  %v3782 = vpack.c.b16 %v3142, %v3134
  %v3783 = vpack.c.b16 %v3151, %v3143
  %v3784 = vpack.c.b16 %v3152, %v3144
  %v3785 = vpack.c.b16 %v3153, %v3145
  %v3786 = vpack.c.b16 %v3154, %v3146
  %v3787 = vpack.c.b16 %v3155, %v3147
  %v3788 = vpack.c.b16 %v3156, %v3148
  %v3789 = vpack.c.b16 %v3157, %v3149
  %v3790 = vpack.c.b16 %v3158, %v3150
  %v3791 = vpack.c.b16 %v3167, %v3159
  %v3792 = vpack.c.b16 %v3168, %v3160
  %v3793 = vpack.c.b16 %v3169, %v3161
  %v3794 = vpack.c.b16 %v3170, %v3162
  %v3795 = vpack.c.b16 %v3171, %v3163
  %v3796 = vpack.c.b16 %v3172, %v3164
  %v3797 = vpack.c.b16 %v3173, %v3165
  %v3798 = vpack.c.b16 %v3174, %v3166
  %v3799 = vpack.c.b16 %v3183, %v3175
  %v3800 = vpack.c.b16 %v3184, %v3176
  %v3801 = vpack.c.b16 %v3185, %v3177
  %v3802 = vpack.c.b16 %v3186, %v3178
  %v3803 = vpack.c.b16 %v3187, %v3179
  %v3804 = vpack.c.b16 %v3188, %v3180
  %v3805 = vpack.c.b16 %v3189, %v3181
  %v3806 = vpack.c.b16 %v3190, %v3182
  %v3807 = vpack.c.b16 %v3199, %v3191
  %v3808 = vpack.c.b16 %v3200, %v3192
  %v3809 = vpack.c.b16 %v3201, %v3193
  %v3810 = vpack.c.b16 %v3202, %v3194
  %v3811 = vpack.c.b16 %v3203, %v3195
  %v3812 = vpack.c.b16 %v3204, %v3196
  %v3813 = vpack.c.b16 %v3205, %v3197
  %v3814 = vpack.c.b16 %v3206, %v3198
  %v3815 = vpack.c.b16 %v3215, %v3207
  %v3816 = vpack.c.b16 %v3216, %v3208
  %v3817 = vpack.c.b16 %v3217, %v3209
  %v3818 = vpack.c.b16 %v3218, %v3210
  %v3819 = vpack.c.b16 %v3219, %v3211
  %v3820 = vpack.c.b16 %v3220, %v3212
  %v3821 = vpack.c.b16 %v3221, %v3213
  %v3822 = vpack.c.b16 %v3222, %v3214
  %v3823 = vpack.c.b16 %v3231, %v3223
  %v3824 = vpack.c.b16 %v3232, %v3224
  %v3825 = vpack.c.b16 %v3233, %v3225
  %v3826 = vpack.c.b16 %v3234, %v3226
  %v3827 = vpack.c.b16 %v3235, %v3227
  %v3828 = vpack.c.b16 %v3236, %v3228
  %v3829 = vpack.c.b16 %v3237, %v3229
  %v3830 = vpack.c.b16 %v3238, %v3230
  %v3831 = vpack.c.b16 %v3247, %v3239
  %v3832 = vpack.c.b16 %v3248, %v3240
  %v3833 = vpack.c.b16 %v3249, %v3241
  %v3834 = vpack.c.b16 %v3250, %v3242
  %v3835 = vpack.c.b16 %v3251, %v3243
  %v3836 = vpack.c.b16 %v3252, %v3244
  %v3837 = vpack.c.b16 %v3253, %v3245
  %v3838 = vpack.c.b16 %v3254, %v3246
  %v3839 = vpack.c.b16 %v3263, %v3255
  %v3840 = vpack.c.b16 %v3264, %v3256
  %v3841 = vpack.c.b16 %v3265, %v3257
  %v3842 = vpack.c.b16 %v3266, %v3258
  %v3843 = vpack.c.b16 %v3267, %v3259
  %v3844 = vpack.c.b16 %v3268, %v3260
  %v3845 = vpack.c.b16 %v3269, %v3261
  %v3846 = vpack.c.b16 %v3270, %v3262
  %v3847 = vpack.c.b16 %v3279, %v3271
  %v3848 = vpack.c.b16 %v3280, %v3272
  %v3849 = vpack.c.b16 %v3281, %v3273
  %v3850 = vpack.c.b16 %v3282, %v3274
  %v3851 = vpack.c.b16 %v3283, %v3275
  %v3852 = vpack.c.b16 %v3284, %v3276
  %v3853 = vpack.c.b16 %v3285, %v3277
  %v3854 = vpack.c.b16 %v3286, %v3278
  %v3855 = vpack.c.b16 %v3295, %v3287
  %v3856 = vpack.c.b16 %v3296, %v3288
  %v3857 = vpack.c.b16 %v3297, %v3289
  %v3858 = vpack.c.b16 %v3298, %v3290
  %v3859 = vpack.c.b16 %v3299, %v3291
  %v3860 = vpack.c.b16 %v3300, %v3292
  %v3861 = vpack.c.b16 %v3301, %v3293
  %v3862 = vpack.c.b16 %v3302, %v3294
  %v3863 = vpack.c.b16 %v3311, %v3303
  %v3864 = vpack.c.b16 %v3312, %v3304
  %v3865 = vpack.c.b16 %v3313, %v3305
  %v3866 = vpack.c.b16 %v3314, %v3306
  %v3867 = vpack.c.b16 %v3315, %v3307
  %v3868 = vpack.c.b16 %v3316, %v3308
  %v3869 = vpack.c.b16 %v3317, %v3309
  %v3870 = vpack.c.b16 %v3318, %v3310
  %v3871 = vpack.c.b16 %v3327, %v3319
  %v3872 = vpack.c.b16 %v3328, %v3320
  %v3873 = vpack.c.b16 %v3329, %v3321
  %v3874 = vpack.c.b16 %v3330, %v3322
  %v3875 = vpack.c.b16 %v3331, %v3323
  %v3876 = vpack.c.b16 %v3332, %v3324
  %v3877 = vpack.c.b16 %v3333, %v3325
  %v3878 = vpack.c.b16 %v3334, %v3326
  %v3879 = vpack.c.b16 %v3343, %v3335
  %v3880 = vpack.c.b16 %v3344, %v3336
  %v3881 = vpack.c.b16 %v3345, %v3337
  %v3882 = vpack.c.b16 %v3346, %v3338
  %v3883 = vpack.c.b16 %v3347, %v3339
  %v3884 = vpack.c.b16 %v3348, %v3340
  %v3885 = vpack.c.b16 %v3349, %v3341
  %v3886 = vpack.c.b16 %v3350, %v3342
  %v3887 = vpack.c.b16 %v3359, %v3351
  %v3888 = vpack.c.b16 %v3360, %v3352
  %v3889 = vpack.c.b16 %v3361, %v3353
  %v3890 = vpack.c.b16 %v3362, %v3354
  %v3891 = vpack.c.b16 %v3363, %v3355
  %v3892 = vpack.c.b16 %v3364, %v3356
  %v3893 = vpack.c.b16 %v3365, %v3357
  %v3894 = vpack.c.b16 %v3366, %v3358
  %v3895 = vpack.c.b16 %v3375, %v3367
  %v3896 = vpack.c.b16 %v3376, %v3368
  %v3897 = vpack.c.b16 %v3377, %v3369
  %v3898 = vpack.c.b16 %v3378, %v3370
  %v3899 = vpack.c.b16 %v3379, %v3371
  %v3900 = vpack.c.b16 %v3380, %v3372
  %v3901 = vpack.c.b16 %v3381, %v3373
  %v3902 = vpack.c.b16 %v3382, %v3374
  %v3903 = vpack.c.b16 %v3391, %v3383
  %v3904 = vpack.c.b16 %v3392, %v3384
  %v3905 = vpack.c.b16 %v3393, %v3385
  %v3906 = vpack.c.b16 %v3394, %v3386
  %v3907 = vpack.c.b16 %v3395, %v3387
  %v3908 = vpack.c.b16 %v3396, %v3388
  %v3909 = vpack.c.b16 %v3397, %v3389
  %v3910 = vpack.c.b16 %v3398, %v3390
  %4423 = vmatprep.subr.bf16.mxu0 %v3400
  %4424 = vmatpush1.bf16.msra.mxu0 %v3399
  %4425 = vmatprep.subr.bf16.mxu0 %v3408
  %4426 = vmatpush1.bf16.msra.mxu0 %v3407
  %4427 = vmatprep.subr.bf16.mxu0 %v3416
  %4428 = vmatpush1.bf16.msra.mxu0 %v3415
  %4429 = vmatprep.subr.bf16.mxu0 %v3424
  %4430 = vmatpush1.bf16.msra.mxu0 %v3423
  %4431 = vmatprep.subr.bf16.mxu0 %v3432
  %4432 = vmatpush1.bf16.msra.mxu0 %v3431
  %4433 = vmatprep.subr.bf16.mxu0 %v3440
  %4434 = vmatpush1.bf16.msra.mxu0 %v3439
  %4435 = vmatprep.subr.bf16.mxu0 %v3448
  %4436 = vmatpush1.bf16.msra.mxu0 %v3447
  %4437 = vmatprep.subr.bf16.mxu0 %v3456
  %4438 = vmatpush1.bf16.msra.mxu0 %v3455
  %4439 = vmatprep.subr.bf16.mxu0 %v3464
  %4440 = vmatpush1.bf16.msra.mxu0 %v3463
  %4441 = vmatprep.subr.bf16.mxu0 %v3472
  %4442 = vmatpush1.bf16.msra.mxu0 %v3471
  %4443 = vmatprep.subr.bf16.mxu0 %v3480
  %4444 = vmatpush1.bf16.msra.mxu0 %v3479
  %4445 = vmatprep.subr.bf16.mxu0 %v3488
  %4446 = vmatpush1.bf16.msra.mxu0 %v3487
  %4447 = vmatprep.subr.bf16.mxu0 %v3496
  %4448 = vmatpush1.bf16.msra.mxu0 %v3495
  %4449 = vmatprep.subr.bf16.mxu0 %v3504
  %4450 = vmatpush1.bf16.msra.mxu0 %v3503
  %4451 = vmatprep.subr.bf16.mxu0 %v3512
  %4452 = vmatpush1.bf16.msra.mxu0 %v3511
  %4453 = vmatprep.subr.bf16.mxu0 %v3520
  %4454 = vmatpush1.bf16.msra.mxu0 %v3519
  %4455 = vmatprep.mubr.bf16.mxu0 %v1302
  %4456 = vmatmul.mubr.bf16.gmra.mrb[0].mxu0 %v1301
  %v4457 = vpop.f32.mrb[0].mxu0
  %v4458 = vadd.f32 %v1826, %v4457
  %v4459 = vpop.f32.mrb[0].mxu0
  %v4460 = vadd.f32 %v1830, %v4459
  %v4461 = vpop.f32.mrb[0].mxu0
  %v4462 = vpop.f32.mrb[0].mxu0
  %4463 = vdwg.mxu0
  %4464 = vmatprep.subr.bf16.mxu0 %v3528
  %4465 = vmatpush1.bf16.msra.mxu0 %v3527
  %4466 = vmatprep.subr.bf16.mxu0 %v3536
  %4467 = vmatpush1.bf16.msra.mxu0 %v3535
  %4468 = vmatprep.subr.bf16.mxu0 %v3544
  %4469 = vmatpush1.bf16.msra.mxu0 %v3543
  %4470 = vmatprep.subr.bf16.mxu0 %v3552
  %4471 = vmatpush1.bf16.msra.mxu0 %v3551
  %4472 = vmatprep.subr.bf16.mxu0 %v3560
  %4473 = vmatpush1.bf16.msra.mxu0 %v3559
  %4474 = vmatprep.subr.bf16.mxu0 %v3568
  %4475 = vmatpush1.bf16.msra.mxu0 %v3567
  %4476 = vmatprep.subr.bf16.mxu0 %v3576
  %4477 = vmatpush1.bf16.msra.mxu0 %v3575
  %4478 = vmatprep.subr.bf16.mxu0 %v3584
  %4479 = vmatpush1.bf16.msra.mxu0 %v3583
  %4480 = vmatprep.subr.bf16.mxu0 %v3592
  %4481 = vmatpush1.bf16.msra.mxu0 %v3591
  %4482 = vmatprep.subr.bf16.mxu0 %v3600
  %4483 = vmatpush1.bf16.msra.mxu0 %v3599
  %4484 = vmatprep.subr.bf16.mxu0 %v3608
  %4485 = vmatpush1.bf16.msra.mxu0 %v3607
  %4486 = vmatprep.subr.bf16.mxu0 %v3616
  %4487 = vmatpush1.bf16.msra.mxu0 %v3615
  %4488 = vmatprep.subr.bf16.mxu0 %v3624
  %4489 = vmatpush1.bf16.msra.mxu0 %v3623
  %4490 = vmatprep.subr.bf16.mxu0 %v3632
  %4491 = vmatpush1.bf16.msra.mxu0 %v3631
  %4492 = vmatprep.subr.bf16.mxu0 %v3640
  %4493 = vmatpush1.bf16.msra.mxu0 %v3639
  %4494 = vmatprep.subr.bf16.mxu0 %v3648
  %4495 = vmatpush1.bf16.msra.mxu0 %v3647
  %4496 = vmatprep.mubr.bf16.mxu0 %v1304
  %4497 = vmatmul.mubr.bf16.gmra.mrb[0].mxu0 %v1303
  %v4498 = vpop.f32.mrb[0].mxu0
  %v4499 = vadd.f32 %v4458, %v4498
  %v4500 = vpop.f32.mrb[0].mxu0
  %v4501 = vadd.f32 %v4460, %v4500
  %v4502 = vpop.f32.mrb[0].mxu0
  %v4503 = vpop.f32.mrb[0].mxu0
  %4504 = vdwg.mxu0
  %4505 = vmatprep.subr.bf16.mxu0 %v3656
  %4506 = vmatpush1.bf16.msra.mxu0 %v3655
  %4507 = vmatprep.subr.bf16.mxu0 %v3664
  %4508 = vmatpush1.bf16.msra.mxu0 %v3663
  %4509 = vmatprep.subr.bf16.mxu0 %v3672
  %4510 = vmatpush1.bf16.msra.mxu0 %v3671
  %4511 = vmatprep.subr.bf16.mxu0 %v3680
  %4512 = vmatpush1.bf16.msra.mxu0 %v3679
  %4513 = vmatprep.subr.bf16.mxu0 %v3688
  %4514 = vmatpush1.bf16.msra.mxu0 %v3687
  %4515 = vmatprep.subr.bf16.mxu0 %v3696
  %4516 = vmatpush1.bf16.msra.mxu0 %v3695
  %4517 = vmatprep.subr.bf16.mxu0 %v3704
  %4518 = vmatpush1.bf16.msra.mxu0 %v3703
  %4519 = vmatprep.subr.bf16.mxu0 %v3712
  %4520 = vmatpush1.bf16.msra.mxu0 %v3711
  %4521 = vmatprep.subr.bf16.mxu0 %v3720
  %4522 = vmatpush1.bf16.msra.mxu0 %v3719
  %4523 = vmatprep.subr.bf16.mxu0 %v3728
  %4524 = vmatpush1.bf16.msra.mxu0 %v3727
  %4525 = vmatprep.subr.bf16.mxu0 %v3736
  %4526 = vmatpush1.bf16.msra.mxu0 %v3735
  %4527 = vmatprep.subr.bf16.mxu0 %v3744
  %4528 = vmatpush1.bf16.msra.mxu0 %v3743
  %4529 = vmatprep.subr.bf16.mxu0 %v3752
  %4530 = vmatpush1.bf16.msra.mxu0 %v3751
  %4531 = vmatprep.subr.bf16.mxu0 %v3760
  %4532 = vmatpush1.bf16.msra.mxu0 %v3759
  %4533 = vmatprep.subr.bf16.mxu0 %v3768
  %4534 = vmatpush1.bf16.msra.mxu0 %v3767
  %4535 = vmatprep.subr.bf16.mxu0 %v3776
  %4536 = vmatpush1.bf16.msra.mxu0 %v3775
  %4537 = vmatprep.mubr.bf16.mxu0 %v1306
  %4538 = vmatmul.mubr.bf16.gmra.mrb[0].mxu0 %v1305
  %v4539 = vpop.f32.mrb[0].mxu0
  %v4540 = vadd.f32 %v4499, %v4539
  %v4541 = vpop.f32.mrb[0].mxu0
  %v4542 = vadd.f32 %v4501, %v4541
  %v4543 = vpop.f32.mrb[0].mxu0
  %v4544 = vpop.f32.mrb[0].mxu0
  %4545 = vdwg.mxu0
  %4546 = vmatprep.subr.bf16.mxu0 %v3784
  %4547 = vmatpush1.bf16.msra.mxu0 %v3783
  %4548 = vmatprep.subr.bf16.mxu0 %v3792
  %4549 = vmatpush1.bf16.msra.mxu0 %v3791
  %4550 = vmatprep.subr.bf16.mxu0 %v3800
  %4551 = vmatpush1.bf16.msra.mxu0 %v3799
  %4552 = vmatprep.subr.bf16.mxu0 %v3808
  %4553 = vmatpush1.bf16.msra.mxu0 %v3807
  %4554 = vmatprep.subr.bf16.mxu0 %v3816
  %4555 = vmatpush1.bf16.msra.mxu0 %v3815
  %4556 = vmatprep.subr.bf16.mxu0 %v3824
  %4557 = vmatpush1.bf16.msra.mxu0 %v3823
  %4558 = vmatprep.subr.bf16.mxu0 %v3832
  %4559 = vmatpush1.bf16.msra.mxu0 %v3831
  %4560 = vmatprep.subr.bf16.mxu0 %v3840
  %4561 = vmatpush1.bf16.msra.mxu0 %v3839
  %4562 = vmatprep.subr.bf16.mxu0 %v3848
  %4563 = vmatpush1.bf16.msra.mxu0 %v3847
  %4564 = vmatprep.subr.bf16.mxu0 %v3856
  %4565 = vmatpush1.bf16.msra.mxu0 %v3855
  %4566 = vmatprep.subr.bf16.mxu0 %v3864
  %4567 = vmatpush1.bf16.msra.mxu0 %v3863
  %4568 = vmatprep.subr.bf16.mxu0 %v3872
  %4569 = vmatpush1.bf16.msra.mxu0 %v3871
  %4570 = vmatprep.subr.bf16.mxu0 %v3880
  %4571 = vmatpush1.bf16.msra.mxu0 %v3879
  %4572 = vmatprep.subr.bf16.mxu0 %v3888
  %4573 = vmatpush1.bf16.msra.mxu0 %v3887
  %4574 = vmatprep.subr.bf16.mxu0 %v3896
  %4575 = vmatpush1.bf16.msra.mxu0 %v3895
  %4576 = vmatprep.subr.bf16.mxu0 %v3904
  %4577 = vmatpush1.bf16.msra.mxu0 %v3903
  %4578 = vmatprep.mubr.bf16.mxu0 %v1308
  %4579 = vmatmul.mubr.bf16.gmra.mrb[0].mxu0 %v1307
  %v4580 = vpop.f32.mrb[0].mxu0
  %v4581 = vadd.f32 %v4540, %v4580
  %v4582 = vpop.f32.mrb[0].mxu0
  %v4583 = vadd.f32 %v4542, %v4582
  %v4584 = vpop.f32.mrb[0].mxu0
  %v4585 = vpop.f32.mrb[0].mxu0
  %4586 = vdwg.mxu0
  %4587 = vmatprep.subr.bf16.mxu0 %v3402
  %4588 = vmatpush1.bf16.msra.mxu0 %v3401
  %4589 = vmatprep.subr.bf16.mxu0 %v3410
  %4590 = vmatpush1.bf16.msra.mxu0 %v3409
  %4591 = vmatprep.subr.bf16.mxu0 %v3418
  %4592 = vmatpush1.bf16.msra.mxu0 %v3417
  %4593 = vmatprep.subr.bf16.mxu0 %v3426
  %4594 = vmatpush1.bf16.msra.mxu0 %v3425
  %4595 = vmatprep.subr.bf16.mxu0 %v3434
  %4596 = vmatpush1.bf16.msra.mxu0 %v3433
  %4597 = vmatprep.subr.bf16.mxu0 %v3442
  %4598 = vmatpush1.bf16.msra.mxu0 %v3441
  %4599 = vmatprep.subr.bf16.mxu0 %v3450
  %4600 = vmatpush1.bf16.msra.mxu0 %v3449
  %4601 = vmatprep.subr.bf16.mxu0 %v3458
  %4602 = vmatpush1.bf16.msra.mxu0 %v3457
  %4603 = vmatprep.subr.bf16.mxu0 %v3466
  %4604 = vmatpush1.bf16.msra.mxu0 %v3465
  %4605 = vmatprep.subr.bf16.mxu0 %v3474
  %4606 = vmatpush1.bf16.msra.mxu0 %v3473
  %4607 = vmatprep.subr.bf16.mxu0 %v3482
  %4608 = vmatpush1.bf16.msra.mxu0 %v3481
  %4609 = vmatprep.subr.bf16.mxu0 %v3490
  %4610 = vmatpush1.bf16.msra.mxu0 %v3489
  %4611 = vmatprep.subr.bf16.mxu0 %v3498
  %4612 = vmatpush1.bf16.msra.mxu0 %v3497
  %4613 = vmatprep.subr.bf16.mxu0 %v3506
  %4614 = vmatpush1.bf16.msra.mxu0 %v3505
  %4615 = vmatprep.subr.bf16.mxu0 %v3514
  %4616 = vmatpush1.bf16.msra.mxu0 %v3513
  %4617 = vmatprep.subr.bf16.mxu0 %v3522
  %4618 = vmatpush1.bf16.msra.mxu0 %v3521
  %4619 = vmatprep.mubr.bf16.mxu0 %v1302
  %4620 = vmatmul.mubr.bf16.gmra.mrb[0].mxu0 %v1301
  %v4621 = vpop.f32.mrb[0].mxu0
  %v4622 = vadd.f32 %v1834, %v4621
  %v4623 = vpop.f32.mrb[0].mxu0
  %v4624 = vadd.f32 %v1838, %v4623
  %v4625 = vpop.f32.mrb[0].mxu0
  %v4626 = vpop.f32.mrb[0].mxu0
  %4627 = vdwg.mxu0
  %4628 = vmatprep.subr.bf16.mxu0 %v3530
  %4629 = vmatpush1.bf16.msra.mxu0 %v3529
  %4630 = vmatprep.subr.bf16.mxu0 %v3538
  %4631 = vmatpush1.bf16.msra.mxu0 %v3537
  %4632 = vmatprep.subr.bf16.mxu0 %v3546
  %4633 = vmatpush1.bf16.msra.mxu0 %v3545
  %4634 = vmatprep.subr.bf16.mxu0 %v3554
  %4635 = vmatpush1.bf16.msra.mxu0 %v3553
  %4636 = vmatprep.subr.bf16.mxu0 %v3562
  %4637 = vmatpush1.bf16.msra.mxu0 %v3561
  %4638 = vmatprep.subr.bf16.mxu0 %v3570
  %4639 = vmatpush1.bf16.msra.mxu0 %v3569
  %4640 = vmatprep.subr.bf16.mxu0 %v3578
  %4641 = vmatpush1.bf16.msra.mxu0 %v3577
  %4642 = vmatprep.subr.bf16.mxu0 %v3586
  %4643 = vmatpush1.bf16.msra.mxu0 %v3585
  %4644 = vmatprep.subr.bf16.mxu0 %v3594
  %4645 = vmatpush1.bf16.msra.mxu0 %v3593
  %4646 = vmatprep.subr.bf16.mxu0 %v3602
  %4647 = vmatpush1.bf16.msra.mxu0 %v3601
  %4648 = vmatprep.subr.bf16.mxu0 %v3610
  %4649 = vmatpush1.bf16.msra.mxu0 %v3609
  %4650 = vmatprep.subr.bf16.mxu0 %v3618
  %4651 = vmatpush1.bf16.msra.mxu0 %v3617
  %4652 = vmatprep.subr.bf16.mxu0 %v3626
  %4653 = vmatpush1.bf16.msra.mxu0 %v3625
  %4654 = vmatprep.subr.bf16.mxu0 %v3634
  %4655 = vmatpush1.bf16.msra.mxu0 %v3633
  %4656 = vmatprep.subr.bf16.mxu0 %v3642
  %4657 = vmatpush1.bf16.msra.mxu0 %v3641
  %4658 = vmatprep.subr.bf16.mxu0 %v3650
  %4659 = vmatpush1.bf16.msra.mxu0 %v3649
  %4660 = vmatprep.mubr.bf16.mxu0 %v1304
  %4661 = vmatmul.mubr.bf16.gmra.mrb[0].mxu0 %v1303
  %v4662 = vpop.f32.mrb[0].mxu0
  %v4663 = vadd.f32 %v4622, %v4662
  %v4664 = vpop.f32.mrb[0].mxu0
  %v4665 = vadd.f32 %v4624, %v4664
  %v4666 = vpop.f32.mrb[0].mxu0
  %v4667 = vpop.f32.mrb[0].mxu0
  %4668 = vdwg.mxu0
  %4669 = vmatprep.subr.bf16.mxu0 %v3658
  %4670 = vmatpush1.bf16.msra.mxu0 %v3657
  %4671 = vmatprep.subr.bf16.mxu0 %v3666
  %4672 = vmatpush1.bf16.msra.mxu0 %v3665
  %4673 = vmatprep.subr.bf16.mxu0 %v3674
  %4674 = vmatpush1.bf16.msra.mxu0 %v3673
  %4675 = vmatprep.subr.bf16.mxu0 %v3682
  %4676 = vmatpush1.bf16.msra.mxu0 %v3681
  %4677 = vmatprep.subr.bf16.mxu0 %v3690
  %4678 = vmatpush1.bf16.msra.mxu0 %v3689
  %4679 = vmatprep.subr.bf16.mxu0 %v3698
  %4680 = vmatpush1.bf16.msra.mxu0 %v3697
  %4681 = vmatprep.subr.bf16.mxu0 %v3706
  %4682 = vmatpush1.bf16.msra.mxu0 %v3705
  %4683 = vmatprep.subr.bf16.mxu0 %v3714
  %4684 = vmatpush1.bf16.msra.mxu0 %v3713
  %4685 = vmatprep.subr.bf16.mxu0 %v3722
  %4686 = vmatpush1.bf16.msra.mxu0 %v3721
  %4687 = vmatprep.subr.bf16.mxu0 %v3730
  %4688 = vmatpush1.bf16.msra.mxu0 %v3729
  %4689 = vmatprep.subr.bf16.mxu0 %v3738
  %4690 = vmatpush1.bf16.msra.mxu0 %v3737
  %4691 = vmatprep.subr.bf16.mxu0 %v3746
  %4692 = vmatpush1.bf16.msra.mxu0 %v3745
  %4693 = vmatprep.subr.bf16.mxu0 %v3754
  %4694 = vmatpush1.bf16.msra.mxu0 %v3753
  %4695 = vmatprep.subr.bf16.mxu0 %v3762
  %4696 = vmatpush1.bf16.msra.mxu0 %v3761
  %4697 = vmatprep.subr.bf16.mxu0 %v3770
  %4698 = vmatpush1.bf16.msra.mxu0 %v3769
  %4699 = vmatprep.subr.bf16.mxu0 %v3778
  %4700 = vmatpush1.bf16.msra.mxu0 %v3777
  %4701 = vmatprep.mubr.bf16.mxu0 %v1306
  %4702 = vmatmul.mubr.bf16.gmra.mrb[0].mxu0 %v1305
  %v4703 = vpop.f32.mrb[0].mxu0
  %v4704 = vadd.f32 %v4663, %v4703
  %v4705 = vpop.f32.mrb[0].mxu0
  %v4706 = vadd.f32 %v4665, %v4705
  %v4707 = vpop.f32.mrb[0].mxu0
  %v4708 = vpop.f32.mrb[0].mxu0
  %4709 = vdwg.mxu0
  %4710 = vmatprep.subr.bf16.mxu0 %v3786
  %4711 = vmatpush1.bf16.msra.mxu0 %v3785
  %4712 = vmatprep.subr.bf16.mxu0 %v3794
  %4713 = vmatpush1.bf16.msra.mxu0 %v3793
  %4714 = vmatprep.subr.bf16.mxu0 %v3802
  %4715 = vmatpush1.bf16.msra.mxu0 %v3801
  %4716 = vmatprep.subr.bf16.mxu0 %v3810
  %4717 = vmatpush1.bf16.msra.mxu0 %v3809
  %4718 = vmatprep.subr.bf16.mxu0 %v3818
  %4719 = vmatpush1.bf16.msra.mxu0 %v3817
  %4720 = vmatprep.subr.bf16.mxu0 %v3826
  %4721 = vmatpush1.bf16.msra.mxu0 %v3825
  %4722 = vmatprep.subr.bf16.mxu0 %v3834
  %4723 = vmatpush1.bf16.msra.mxu0 %v3833
  %4724 = vmatprep.subr.bf16.mxu0 %v3842
  %4725 = vmatpush1.bf16.msra.mxu0 %v3841
  %4726 = vmatprep.subr.bf16.mxu0 %v3850
  %4727 = vmatpush1.bf16.msra.mxu0 %v3849
  %4728 = vmatprep.subr.bf16.mxu0 %v3858
  %4729 = vmatpush1.bf16.msra.mxu0 %v3857
  %4730 = vmatprep.subr.bf16.mxu0 %v3866
  %4731 = vmatpush1.bf16.msra.mxu0 %v3865
  %4732 = vmatprep.subr.bf16.mxu0 %v3874
  %4733 = vmatpush1.bf16.msra.mxu0 %v3873
  %4734 = vmatprep.subr.bf16.mxu0 %v3882
  %4735 = vmatpush1.bf16.msra.mxu0 %v3881
  %4736 = vmatprep.subr.bf16.mxu0 %v3890
  %4737 = vmatpush1.bf16.msra.mxu0 %v3889
  %4738 = vmatprep.subr.bf16.mxu0 %v3898
  %4739 = vmatpush1.bf16.msra.mxu0 %v3897
  %4740 = vmatprep.subr.bf16.mxu0 %v3906
  %4741 = vmatpush1.bf16.msra.mxu0 %v3905
  %4742 = vmatprep.mubr.bf16.mxu0 %v1308
  %4743 = vmatmul.mubr.bf16.gmra.mrb[0].mxu0 %v1307
  %v4744 = vpop.f32.mrb[0].mxu0
  %v4745 = vadd.f32 %v4704, %v4744
  %v4746 = vpop.f32.mrb[0].mxu0
  %v4747 = vadd.f32 %v4706, %v4746
  %v4748 = vpop.f32.mrb[0].mxu0
  %v4749 = vpop.f32.mrb[0].mxu0
  %4750 = vdwg.mxu0
  %4751 = vmatprep.subr.bf16.mxu0 %v3404
  %4752 = vmatpush1.bf16.msra.mxu0 %v3403
  %4753 = vmatprep.subr.bf16.mxu0 %v3412
  %4754 = vmatpush1.bf16.msra.mxu0 %v3411
  %4755 = vmatprep.subr.bf16.mxu0 %v3420
  %4756 = vmatpush1.bf16.msra.mxu0 %v3419
  %4757 = vmatprep.subr.bf16.mxu0 %v3428
  %4758 = vmatpush1.bf16.msra.mxu0 %v3427
  %4759 = vmatprep.subr.bf16.mxu0 %v3436
  %4760 = vmatpush1.bf16.msra.mxu0 %v3435
  %4761 = vmatprep.subr.bf16.mxu0 %v3444
  %4762 = vmatpush1.bf16.msra.mxu0 %v3443
  %4763 = vmatprep.subr.bf16.mxu0 %v3452
  %4764 = vmatpush1.bf16.msra.mxu0 %v3451
  %4765 = vmatprep.subr.bf16.mxu0 %v3460
  %4766 = vmatpush1.bf16.msra.mxu0 %v3459
  %4767 = vmatprep.subr.bf16.mxu0 %v3468
  %4768 = vmatpush1.bf16.msra.mxu0 %v3467
  %4769 = vmatprep.subr.bf16.mxu0 %v3476
  %4770 = vmatpush1.bf16.msra.mxu0 %v3475
  %4771 = vmatprep.subr.bf16.mxu0 %v3484
  %4772 = vmatpush1.bf16.msra.mxu0 %v3483
  %4773 = vmatprep.subr.bf16.mxu0 %v3492
  %4774 = vmatpush1.bf16.msra.mxu0 %v3491
  %4775 = vmatprep.subr.bf16.mxu0 %v3500
  %4776 = vmatpush1.bf16.msra.mxu0 %v3499
  %4777 = vmatprep.subr.bf16.mxu0 %v3508
  %4778 = vmatpush1.bf16.msra.mxu0 %v3507
  %4779 = vmatprep.subr.bf16.mxu0 %v3516
  %4780 = vmatpush1.bf16.msra.mxu0 %v3515
  %4781 = vmatprep.subr.bf16.mxu0 %v3524
  %4782 = vmatpush1.bf16.msra.mxu0 %v3523
  %4783 = vmatprep.mubr.bf16.mxu0 %v1302
  %4784 = vmatmul.mubr.bf16.gmra.mrb[0].mxu0 %v1301
  %v4785 = vpop.f32.mrb[0].mxu0
  %v4786 = vadd.f32 %v1842, %v4785
  %v4787 = vpop.f32.mrb[0].mxu0
  %v4788 = vadd.f32 %v1846, %v4787
  %v4789 = vpop.f32.mrb[0].mxu0
  %v4790 = vpop.f32.mrb[0].mxu0
  %4791 = vdwg.mxu0
  %4792 = vmatprep.subr.bf16.mxu0 %v3532
  %4793 = vmatpush1.bf16.msra.mxu0 %v3531
  %4794 = vmatprep.subr.bf16.mxu0 %v3540
  %4795 = vmatpush1.bf16.msra.mxu0 %v3539
  %4796 = vmatprep.subr.bf16.mxu0 %v3548
  %4797 = vmatpush1.bf16.msra.mxu0 %v3547
  %4798 = vmatprep.subr.bf16.mxu0 %v3556
  %4799 = vmatpush1.bf16.msra.mxu0 %v3555
  %4800 = vmatprep.subr.bf16.mxu0 %v3564
  %4801 = vmatpush1.bf16.msra.mxu0 %v3563
  %4802 = vmatprep.subr.bf16.mxu0 %v3572
  %4803 = vmatpush1.bf16.msra.mxu0 %v3571
  %4804 = vmatprep.subr.bf16.mxu0 %v3580
  %4805 = vmatpush1.bf16.msra.mxu0 %v3579
  %4806 = vmatprep.subr.bf16.mxu0 %v3588
  %4807 = vmatpush1.bf16.msra.mxu0 %v3587
  %4808 = vmatprep.subr.bf16.mxu0 %v3596
  %4809 = vmatpush1.bf16.msra.mxu0 %v3595
  %4810 = vmatprep.subr.bf16.mxu0 %v3604
  %4811 = vmatpush1.bf16.msra.mxu0 %v3603
  %4812 = vmatprep.subr.bf16.mxu0 %v3612
  %4813 = vmatpush1.bf16.msra.mxu0 %v3611
  %4814 = vmatprep.subr.bf16.mxu0 %v3620
  %4815 = vmatpush1.bf16.msra.mxu0 %v3619
  %4816 = vmatprep.subr.bf16.mxu0 %v3628
  %4817 = vmatpush1.bf16.msra.mxu0 %v3627
  %4818 = vmatprep.subr.bf16.mxu0 %v3636
  %4819 = vmatpush1.bf16.msra.mxu0 %v3635
  %4820 = vmatprep.subr.bf16.mxu0 %v3644
  %4821 = vmatpush1.bf16.msra.mxu0 %v3643
  %4822 = vmatprep.subr.bf16.mxu0 %v3652
  %4823 = vmatpush1.bf16.msra.mxu0 %v3651
  %4824 = vmatprep.mubr.bf16.mxu0 %v1304
  %4825 = vmatmul.mubr.bf16.gmra.mrb[0].mxu0 %v1303
  %v4826 = vpop.f32.mrb[0].mxu0
  %v4827 = vadd.f32 %v4786, %v4826
  %v4828 = vpop.f32.mrb[0].mxu0
  %v4829 = vadd.f32 %v4788, %v4828
  %v4830 = vpop.f32.mrb[0].mxu0
  %v4831 = vpop.f32.mrb[0].mxu0
  %4832 = vdwg.mxu0
  %4833 = vmatprep.subr.bf16.mxu0 %v3660
  %4834 = vmatpush1.bf16.msra.mxu0 %v3659
  %4835 = vmatprep.subr.bf16.mxu0 %v3668
  %4836 = vmatpush1.bf16.msra.mxu0 %v3667
  %4837 = vmatprep.subr.bf16.mxu0 %v3676
  %4838 = vmatpush1.bf16.msra.mxu0 %v3675
  %4839 = vmatprep.subr.bf16.mxu0 %v3684
  %4840 = vmatpush1.bf16.msra.mxu0 %v3683
  %4841 = vmatprep.subr.bf16.mxu0 %v3692
  %4842 = vmatpush1.bf16.msra.mxu0 %v3691
  %4843 = vmatprep.subr.bf16.mxu0 %v3700
  %4844 = vmatpush1.bf16.msra.mxu0 %v3699
  %4845 = vmatprep.subr.bf16.mxu0 %v3708
  %4846 = vmatpush1.bf16.msra.mxu0 %v3707
  %4847 = vmatprep.subr.bf16.mxu0 %v3716
  %4848 = vmatpush1.bf16.msra.mxu0 %v3715
  %4849 = vmatprep.subr.bf16.mxu0 %v3724
  %4850 = vmatpush1.bf16.msra.mxu0 %v3723
  %4851 = vmatprep.subr.bf16.mxu0 %v3732
  %4852 = vmatpush1.bf16.msra.mxu0 %v3731
  %4853 = vmatprep.subr.bf16.mxu0 %v3740
  %4854 = vmatpush1.bf16.msra.mxu0 %v3739
  %4855 = vmatprep.subr.bf16.mxu0 %v3748
  %4856 = vmatpush1.bf16.msra.mxu0 %v3747
  %4857 = vmatprep.subr.bf16.mxu0 %v3756
  %4858 = vmatpush1.bf16.msra.mxu0 %v3755
  %4859 = vmatprep.subr.bf16.mxu0 %v3764
  %4860 = vmatpush1.bf16.msra.mxu0 %v3763
  %4861 = vmatprep.subr.bf16.mxu0 %v3772
  %4862 = vmatpush1.bf16.msra.mxu0 %v3771
  %4863 = vmatprep.subr.bf16.mxu0 %v3780
  %4864 = vmatpush1.bf16.msra.mxu0 %v3779
  %4865 = vmatprep.mubr.bf16.mxu0 %v1306
  %4866 = vmatmul.mubr.bf16.gmra.mrb[0].mxu0 %v1305
  %v4867 = vpop.f32.mrb[0].mxu0
  %v4868 = vadd.f32 %v4827, %v4867
  %v4869 = vpop.f32.mrb[0].mxu0
  %v4870 = vadd.f32 %v4829, %v4869
  %v4871 = vpop.f32.mrb[0].mxu0
  %v4872 = vpop.f32.mrb[0].mxu0
  %4873 = vdwg.mxu0
  %4874 = vmatprep.subr.bf16.mxu0 %v3788
  %4875 = vmatpush1.bf16.msra.mxu0 %v3787
  %4876 = vmatprep.subr.bf16.mxu0 %v3796
  %4877 = vmatpush1.bf16.msra.mxu0 %v3795
  %4878 = vmatprep.subr.bf16.mxu0 %v3804
  %4879 = vmatpush1.bf16.msra.mxu0 %v3803
  %4880 = vmatprep.subr.bf16.mxu0 %v3812
  %4881 = vmatpush1.bf16.msra.mxu0 %v3811
  %4882 = vmatprep.subr.bf16.mxu0 %v3820
  %4883 = vmatpush1.bf16.msra.mxu0 %v3819
  %4884 = vmatprep.subr.bf16.mxu0 %v3828
  %4885 = vmatpush1.bf16.msra.mxu0 %v3827
  %4886 = vmatprep.subr.bf16.mxu0 %v3836
  %4887 = vmatpush1.bf16.msra.mxu0 %v3835
  %4888 = vmatprep.subr.bf16.mxu0 %v3844
  %4889 = vmatpush1.bf16.msra.mxu0 %v3843
  %4890 = vmatprep.subr.bf16.mxu0 %v3852
  %4891 = vmatpush1.bf16.msra.mxu0 %v3851
  %4892 = vmatprep.subr.bf16.mxu0 %v3860
  %4893 = vmatpush1.bf16.msra.mxu0 %v3859
  %4894 = vmatprep.subr.bf16.mxu0 %v3868
  %4895 = vmatpush1.bf16.msra.mxu0 %v3867
  %4896 = vmatprep.subr.bf16.mxu0 %v3876
  %4897 = vmatpush1.bf16.msra.mxu0 %v3875
  %4898 = vmatprep.subr.bf16.mxu0 %v3884
  %4899 = vmatpush1.bf16.msra.mxu0 %v3883
  %4900 = vmatprep.subr.bf16.mxu0 %v3892
  %4901 = vmatpush1.bf16.msra.mxu0 %v3891
  %4902 = vmatprep.subr.bf16.mxu0 %v3900
  %4903 = vmatpush1.bf16.msra.mxu0 %v3899
  %4904 = vmatprep.subr.bf16.mxu0 %v3908
  %4905 = vmatpush1.bf16.msra.mxu0 %v3907
  %4906 = vmatprep.mubr.bf16.mxu0 %v1308
  %4907 = vmatmul.mubr.bf16.gmra.mrb[0].mxu0 %v1307
  %v4908 = vpop.f32.mrb[0].mxu0
  %v4909 = vadd.f32 %v4868, %v4908
  %v4910 = vpop.f32.mrb[0].mxu0
  %v4911 = vadd.f32 %v4870, %v4910
  %v4912 = vpop.f32.mrb[0].mxu0
  %v4913 = vpop.f32.mrb[0].mxu0
  %4914 = vdwg.mxu0
  %4915 = vmatprep.subr.bf16.mxu0 %v3406
  %4916 = vmatpush1.bf16.msra.mxu0 %v3405
  %4917 = vmatprep.subr.bf16.mxu0 %v3414
  %4918 = vmatpush1.bf16.msra.mxu0 %v3413
  %4919 = vmatprep.subr.bf16.mxu0 %v3422
  %4920 = vmatpush1.bf16.msra.mxu0 %v3421
  %4921 = vmatprep.subr.bf16.mxu0 %v3430
  %4922 = vmatpush1.bf16.msra.mxu0 %v3429
  %4923 = vmatprep.subr.bf16.mxu0 %v3438
  %4924 = vmatpush1.bf16.msra.mxu0 %v3437
  %4925 = vmatprep.subr.bf16.mxu0 %v3446
  %4926 = vmatpush1.bf16.msra.mxu0 %v3445
  %4927 = vmatprep.subr.bf16.mxu0 %v3454
  %4928 = vmatpush1.bf16.msra.mxu0 %v3453
  %4929 = vmatprep.subr.bf16.mxu0 %v3462
  %4930 = vmatpush1.bf16.msra.mxu0 %v3461
  %4931 = vmatprep.subr.bf16.mxu0 %v3470
  %4932 = vmatpush1.bf16.msra.mxu0 %v3469
  %4933 = vmatprep.subr.bf16.mxu0 %v3478
  %4934 = vmatpush1.bf16.msra.mxu0 %v3477
  %4935 = vmatprep.subr.bf16.mxu0 %v3486
  %4936 = vmatpush1.bf16.msra.mxu0 %v3485
  %4937 = vmatprep.subr.bf16.mxu0 %v3494
  %4938 = vmatpush1.bf16.msra.mxu0 %v3493
  %4939 = vmatprep.subr.bf16.mxu0 %v3502
  %4940 = vmatpush1.bf16.msra.mxu0 %v3501
  %4941 = vmatprep.subr.bf16.mxu0 %v3510
  %4942 = vmatpush1.bf16.msra.mxu0 %v3509
  %4943 = vmatprep.subr.bf16.mxu0 %v3518
  %4944 = vmatpush1.bf16.msra.mxu0 %v3517
  %4945 = vmatprep.subr.bf16.mxu0 %v3526
  %4946 = vmatpush1.bf16.msra.mxu0 %v3525
  %4947 = vmatprep.mubr.bf16.mxu0 %v1302
  %4948 = vmatmul.mubr.bf16.gmra.mrb[0].mxu0 %v1301
  %v4949 = vpop.f32.mrb[0].mxu0
  %v4950 = vadd.f32 %v1850, %v4949
  %v4951 = vpop.f32.mrb[0].mxu0
  %v4952 = vadd.f32 %v1854, %v4951
  %v4953 = vpop.f32.mrb[0].mxu0
  %v4954 = vpop.f32.mrb[0].mxu0
  %4955 = vdwg.mxu0
  %4956 = vmatprep.subr.bf16.mxu0 %v3534
  %4957 = vmatpush1.bf16.msra.mxu0 %v3533
  %4958 = vmatprep.subr.bf16.mxu0 %v3542
  %4959 = vmatpush1.bf16.msra.mxu0 %v3541
  %4960 = vmatprep.subr.bf16.mxu0 %v3550
  %4961 = vmatpush1.bf16.msra.mxu0 %v3549
  %4962 = vmatprep.subr.bf16.mxu0 %v3558
  %4963 = vmatpush1.bf16.msra.mxu0 %v3557
  %4964 = vmatprep.subr.bf16.mxu0 %v3566
  %4965 = vmatpush1.bf16.msra.mxu0 %v3565
  %4966 = vmatprep.subr.bf16.mxu0 %v3574
  %4967 = vmatpush1.bf16.msra.mxu0 %v3573
  %4968 = vmatprep.subr.bf16.mxu0 %v3582
  %4969 = vmatpush1.bf16.msra.mxu0 %v3581
  %4970 = vmatprep.subr.bf16.mxu0 %v3590
  %4971 = vmatpush1.bf16.msra.mxu0 %v3589
  %4972 = vmatprep.subr.bf16.mxu0 %v3598
  %4973 = vmatpush1.bf16.msra.mxu0 %v3597
  %4974 = vmatprep.subr.bf16.mxu0 %v3606
  %4975 = vmatpush1.bf16.msra.mxu0 %v3605
  %4976 = vmatprep.subr.bf16.mxu0 %v3614
  %4977 = vmatpush1.bf16.msra.mxu0 %v3613
  %4978 = vmatprep.subr.bf16.mxu0 %v3622
  %4979 = vmatpush1.bf16.msra.mxu0 %v3621
  %4980 = vmatprep.subr.bf16.mxu0 %v3630
  %4981 = vmatpush1.bf16.msra.mxu0 %v3629
  %4982 = vmatprep.subr.bf16.mxu0 %v3638
  %4983 = vmatpush1.bf16.msra.mxu0 %v3637
  %4984 = vmatprep.subr.bf16.mxu0 %v3646
  %4985 = vmatpush1.bf16.msra.mxu0 %v3645
  %4986 = vmatprep.subr.bf16.mxu0 %v3654
  %4987 = vmatpush1.bf16.msra.mxu0 %v3653
  %4988 = vmatprep.mubr.bf16.mxu0 %v1304
  %4989 = vmatmul.mubr.bf16.gmra.mrb[0].mxu0 %v1303
  %v4990 = vpop.f32.mrb[0].mxu0
  %v4991 = vadd.f32 %v4950, %v4990
  %v4992 = vpop.f32.mrb[0].mxu0
  %v4993 = vadd.f32 %v4952, %v4992
  %v4994 = vpop.f32.mrb[0].mxu0
  %v4995 = vpop.f32.mrb[0].mxu0
  %4996 = vdwg.mxu0
  %4997 = vmatprep.subr.bf16.mxu0 %v3662
  %4998 = vmatpush1.bf16.msra.mxu0 %v3661
  %4999 = vmatprep.subr.bf16.mxu0 %v3670
  %5000 = vmatpush1.bf16.msra.mxu0 %v3669
  %5001 = vmatprep.subr.bf16.mxu0 %v3678
  %5002 = vmatpush1.bf16.msra.mxu0 %v3677
  %5003 = vmatprep.subr.bf16.mxu0 %v3686
  %5004 = vmatpush1.bf16.msra.mxu0 %v3685
  %5005 = vmatprep.subr.bf16.mxu0 %v3694
  %5006 = vmatpush1.bf16.msra.mxu0 %v3693
  %5007 = vmatprep.subr.bf16.mxu0 %v3702
  %5008 = vmatpush1.bf16.msra.mxu0 %v3701
  %5009 = vmatprep.subr.bf16.mxu0 %v3710
  %5010 = vmatpush1.bf16.msra.mxu0 %v3709
  %5011 = vmatprep.subr.bf16.mxu0 %v3718
  %5012 = vmatpush1.bf16.msra.mxu0 %v3717
  %5013 = vmatprep.subr.bf16.mxu0 %v3726
  %5014 = vmatpush1.bf16.msra.mxu0 %v3725
  %5015 = vmatprep.subr.bf16.mxu0 %v3734
  %5016 = vmatpush1.bf16.msra.mxu0 %v3733
  %5017 = vmatprep.subr.bf16.mxu0 %v3742
  %5018 = vmatpush1.bf16.msra.mxu0 %v3741
  %5019 = vmatprep.subr.bf16.mxu0 %v3750
  %5020 = vmatpush1.bf16.msra.mxu0 %v3749
  %5021 = vmatprep.subr.bf16.mxu0 %v3758
  %5022 = vmatpush1.bf16.msra.mxu0 %v3757
  %5023 = vmatprep.subr.bf16.mxu0 %v3766
  %5024 = vmatpush1.bf16.msra.mxu0 %v3765
  %5025 = vmatprep.subr.bf16.mxu0 %v3774
  %5026 = vmatpush1.bf16.msra.mxu0 %v3773
  %5027 = vmatprep.subr.bf16.mxu0 %v3782
  %5028 = vmatpush1.bf16.msra.mxu0 %v3781
  %5029 = vmatprep.mubr.bf16.mxu0 %v1306
  %5030 = vmatmul.mubr.bf16.gmra.mrb[0].mxu0 %v1305
  %v5031 = vpop.f32.mrb[0].mxu0
  %v5032 = vadd.f32 %v4991, %v5031
  %v5033 = vpop.f32.mrb[0].mxu0
  %v5034 = vadd.f32 %v4993, %v5033
  %v5035 = vpop.f32.mrb[0].mxu0
  %v5036 = vpop.f32.mrb[0].mxu0
  %5037 = vdwg.mxu0
  %5038 = vmatprep.subr.bf16.mxu0 %v3790
  %5039 = vmatpush1.bf16.msra.mxu0 %v3789
  %5040 = vmatprep.subr.bf16.mxu0 %v3798
  %5041 = vmatpush1.bf16.msra.mxu0 %v3797
  %5042 = vmatprep.subr.bf16.mxu0 %v3806
  %5043 = vmatpush1.bf16.msra.mxu0 %v3805
  %5044 = vmatprep.subr.bf16.mxu0 %v3814
  %5045 = vmatpush1.bf16.msra.mxu0 %v3813
  %5046 = vmatprep.subr.bf16.mxu0 %v3822
  %5047 = vmatpush1.bf16.msra.mxu0 %v3821
  %5048 = vmatprep.subr.bf16.mxu0 %v3830
  %5049 = vmatpush1.bf16.msra.mxu0 %v3829
  %5050 = vmatprep.subr.bf16.mxu0 %v3838
  %5051 = vmatpush1.bf16.msra.mxu0 %v3837
  %5052 = vmatprep.subr.bf16.mxu0 %v3846
  %5053 = vmatpush1.bf16.msra.mxu0 %v3845
  %5054 = vmatprep.subr.bf16.mxu0 %v3854
  %5055 = vmatpush1.bf16.msra.mxu0 %v3853
  %5056 = vmatprep.subr.bf16.mxu0 %v3862
  %5057 = vmatpush1.bf16.msra.mxu0 %v3861
  %5058 = vmatprep.subr.bf16.mxu0 %v3870
  %5059 = vmatpush1.bf16.msra.mxu0 %v3869
  %5060 = vmatprep.subr.bf16.mxu0 %v3878
  %5061 = vmatpush1.bf16.msra.mxu0 %v3877
  %5062 = vmatprep.subr.bf16.mxu0 %v3886
  %5063 = vmatpush1.bf16.msra.mxu0 %v3885
  %5064 = vmatprep.subr.bf16.mxu0 %v3894
  %5065 = vmatpush1.bf16.msra.mxu0 %v3893
  %5066 = vmatprep.subr.bf16.mxu0 %v3902
  %5067 = vmatpush1.bf16.msra.mxu0 %v3901
  %5068 = vmatprep.subr.bf16.mxu0 %v3910
  %5069 = vmatpush1.bf16.msra.mxu0 %v3909
  %5070 = vmatprep.mubr.bf16.mxu0 %v1308
  %5071 = vmatmul.mubr.bf16.gmra.mrb[0].mxu0 %v1307
  %v5072 = vpop.f32.mrb[0].mxu0
  %v5073 = vadd.f32 %v5032, %v5072
  %v5074 = vpop.f32.mrb[0].mxu0
  %v5075 = vadd.f32 %v5034, %v5074
  %v5076 = vpop.f32.mrb[0].mxu0
  %v5077 = vpop.f32.mrb[0].mxu0
  %5078 = vdwg.mxu0
  %v5079 = vmax.f32 %v4581, 0.0
  %v5080 = vmax.f32 %v4583, 0.0
  %v5081 = vmax.f32 %v4745, 0.0
  %v5082 = vmax.f32 %v4747, 0.0
  %v5083 = vmax.f32 %v4909, 0.0
  %v5084 = vmax.f32 %v4911, 0.0
  %v5085 = vmax.f32 %v5073, 0.0
  %v5086 = vmax.f32 %v5075, 0.0
  %v5087 = vpack.c.bf16 %v5079, %v5079
  %v5088 = vpack.c.bf16 %v5080, %v5080
  %v5089 = vpack.c.bf16 %v5081, %v5081
  %v5090 = vpack.c.bf16 %v5082, %v5082
  %v5091 = vpack.c.bf16 %v5083, %v5083
  %v5092 = vpack.c.bf16 %v5084, %v5084
  %v5093 = vpack.c.bf16 %v5085, %v5085
  %v5094 = vpack.c.bf16 %v5086, %v5086
  %v5095 = vld [vmem:[%s6] sm:$0xf]
  %v5096 = vld [vmem:[%s6 + $0x4] sm:$0xf]
  %v5097 = vld [vmem:[%s6 + $0x8] sm:$0xf]
  %v5098 = vld [vmem:[%s6 + $0xc] sm:$0xf]
  %v5099 = vld [vmem:[%s6 + $0x10] sm:$0xf]
  %v5100 = vld [vmem:[%s6 + $0x14] sm:$0xf]
  %v5101 = vld [vmem:[%s6 + $0x18] sm:$0xf]
  %v5102 = vld [vmem:[%s6 + $0x1c] sm:$0xf]
  %v5103 = vld [vmem:[%s6 + $0x20] sm:$0xf]
  %v5104 = vld [vmem:[%s6 + $0x24] sm:$0xf]
  %v5105 = vld [vmem:[%s6 + $0x28] sm:$0xf]
  %v5106 = vld [vmem:[%s6 + $0x2c] sm:$0xf]
  %v5107 = vld [vmem:[%s6 + $0x30] sm:$0xf]
  %v5108 = vld [vmem:[%s6 + $0x34] sm:$0xf]
  %v5109 = vld [vmem:[%s6 + $0x38] sm:$0xf]
  %v5110 = vld [vmem:[%s6 + $0x3c] sm:$0xf]
  %v5111 = vld [vmem:[%s6 + $0x40] sm:$0xf]
  %v5112 = vld [vmem:[%s6 + $0x44] sm:$0xf]
  %v5113 = vld [vmem:[%s6 + $0x48] sm:$0xf]
  %v5114 = vld [vmem:[%s6 + $0x4c] sm:$0xf]
  %v5115 = vld [vmem:[%s6 + $0x50] sm:$0xf]
  %v5116 = vld [vmem:[%s6 + $0x54] sm:$0xf]
  %v5117 = vld [vmem:[%s6 + $0x58] sm:$0xf]
  %v5118 = vld [vmem:[%s6 + $0x5c] sm:$0xf]
  %v5119 = vld [vmem:[%s6 + $0x60] sm:$0xf]
  %v5120 = vld [vmem:[%s6 + $0x64] sm:$0xf]
  %v5121 = vld [vmem:[%s6 + $0x68] sm:$0xf]
  %v5122 = vld [vmem:[%s6 + $0x6c] sm:$0xf]
  %v5123 = vld [vmem:[%s6 + $0x70] sm:$0xf]
  %v5124 = vld [vmem:[%s6 + $0x74] sm:$0xf]
  %v5125 = vld [vmem:[%s6 + $0x78] sm:$0xf]
  %v5126 = vld [vmem:[%s6 + $0x7c] sm:$0xf]
  %v5127 = vld [vmem:[%s6 + $0x80] sm:$0xf]
  %v5128 = vld [vmem:[%s6 + $0x84] sm:$0xf]
  %v5129 = vld [vmem:[%s6 + $0x88] sm:$0xf]
  %v5130 = vld [vmem:[%s6 + $0x8c] sm:$0xf]
  %v5131 = vld [vmem:[%s6 + $0x90] sm:$0xf]
  %v5132 = vld [vmem:[%s6 + $0x94] sm:$0xf]
  %v5133 = vld [vmem:[%s6 + $0x98] sm:$0xf]
  %v5134 = vld [vmem:[%s6 + $0x9c] sm:$0xf]
  %v5135 = vld [vmem:[%s6 + $0xa0] sm:$0xf]
  %v5136 = vld [vmem:[%s6 + $0xa4] sm:$0xf]
  %v5137 = vld [vmem:[%s6 + $0xa8] sm:$0xf]
  %v5138 = vld [vmem:[%s6 + $0xac] sm:$0xf]
  %v5139 = vld [vmem:[%s6 + $0xb0] sm:$0xf]
  %v5140 = vld [vmem:[%s6 + $0xb4] sm:$0xf]
  %v5141 = vld [vmem:[%s6 + $0xb8] sm:$0xf]
  %v5142 = vld [vmem:[%s6 + $0xbc] sm:$0xf]
  %v5143 = vld [vmem:[%s6 + $0xc0] sm:$0xf]
  %v5144 = vld [vmem:[%s6 + $0xc4] sm:$0xf]
  %v5145 = vld [vmem:[%s6 + $0xc8] sm:$0xf]
  %v5146 = vld [vmem:[%s6 + $0xcc] sm:$0xf]
  %v5147 = vld [vmem:[%s6 + $0xd0] sm:$0xf]
  %v5148 = vld [vmem:[%s6 + $0xd4] sm:$0xf]
  %v5149 = vld [vmem:[%s6 + $0xd8] sm:$0xf]
  %v5150 = vld [vmem:[%s6 + $0xdc] sm:$0xf]
  %v5151 = vld [vmem:[%s6 + $0xe0] sm:$0xf]
  %v5152 = vld [vmem:[%s6 + $0xe4] sm:$0xf]
  %v5153 = vld [vmem:[%s6 + $0xe8] sm:$0xf]
  %v5154 = vld [vmem:[%s6 + $0xec] sm:$0xf]
  %v5155 = vld [vmem:[%s6 + $0xf0] sm:$0xf]
  %v5156 = vld [vmem:[%s6 + $0xf4] sm:$0xf]
  %v5157 = vld [vmem:[%s6 + $0xf8] sm:$0xf]
  %v5158 = vld [vmem:[%s6 + $0xfc] sm:$0xf]
  %v5159 = vld [vmem:[%s6 + $0x100] sm:$0xf]
  %v5160 = vld [vmem:[%s6 + $0x104] sm:$0xf]
  %v5161 = vld [vmem:[%s6 + $0x108] sm:$0xf]
  %v5162 = vld [vmem:[%s6 + $0x10c] sm:$0xf]
  %v5163 = vld [vmem:[%s6 + $0x110] sm:$0xf]
  %v5164 = vld [vmem:[%s6 + $0x114] sm:$0xf]
  %v5165 = vld [vmem:[%s6 + $0x118] sm:$0xf]
  %v5166 = vld [vmem:[%s6 + $0x11c] sm:$0xf]
  %v5167 = vld [vmem:[%s6 + $0x120] sm:$0xf]
  %v5168 = vld [vmem:[%s6 + $0x124] sm:$0xf]
  %v5169 = vld [vmem:[%s6 + $0x128] sm:$0xf]
  %v5170 = vld [vmem:[%s6 + $0x12c] sm:$0xf]
  %v5171 = vld [vmem:[%s6 + $0x130] sm:$0xf]
  %v5172 = vld [vmem:[%s6 + $0x134] sm:$0xf]
  %v5173 = vld [vmem:[%s6 + $0x138] sm:$0xf]
  %v5174 = vld [vmem:[%s6 + $0x13c] sm:$0xf]
  %v5175 = vld [vmem:[%s6 + $0x140] sm:$0xf]
  %v5176 = vld [vmem:[%s6 + $0x144] sm:$0xf]
  %v5177 = vld [vmem:[%s6 + $0x148] sm:$0xf]
  %v5178 = vld [vmem:[%s6 + $0x14c] sm:$0xf]
  %v5179 = vld [vmem:[%s6 + $0x150] sm:$0xf]
  %v5180 = vld [vmem:[%s6 + $0x154] sm:$0xf]
  %v5181 = vld [vmem:[%s6 + $0x158] sm:$0xf]
  %v5182 = vld [vmem:[%s6 + $0x15c] sm:$0xf]
  %v5183 = vld [vmem:[%s6 + $0x160] sm:$0xf]
  %v5184 = vld [vmem:[%s6 + $0x164] sm:$0xf]
  %v5185 = vld [vmem:[%s6 + $0x168] sm:$0xf]
  %v5186 = vld [vmem:[%s6 + $0x16c] sm:$0xf]
  %v5187 = vld [vmem:[%s6 + $0x170] sm:$0xf]
  %v5188 = vld [vmem:[%s6 + $0x174] sm:$0xf]
  %v5189 = vld [vmem:[%s6 + $0x178] sm:$0xf]
  %v5190 = vld [vmem:[%s6 + $0x17c] sm:$0xf]
  %v5191 = vld [vmem:[%s6 + $0x180] sm:$0xf]
  %v5192 = vld [vmem:[%s6 + $0x184] sm:$0xf]
  %v5193 = vld [vmem:[%s6 + $0x188] sm:$0xf]
  %v5194 = vld [vmem:[%s6 + $0x18c] sm:$0xf]
  %v5195 = vld [vmem:[%s6 + $0x190] sm:$0xf]
  %v5196 = vld [vmem:[%s6 + $0x194] sm:$0xf]
  %v5197 = vld [vmem:[%s6 + $0x198] sm:$0xf]
  %v5198 = vld [vmem:[%s6 + $0x19c] sm:$0xf]
  %v5199 = vld [vmem:[%s6 + $0x1a0] sm:$0xf]
  %v5200 = vld [vmem:[%s6 + $0x1a4] sm:$0xf]
  %v5201 = vld [vmem:[%s6 + $0x1a8] sm:$0xf]
  %v5202 = vld [vmem:[%s6 + $0x1ac] sm:$0xf]
  %v5203 = vld [vmem:[%s6 + $0x1b0] sm:$0xf]
  %v5204 = vld [vmem:[%s6 + $0x1b4] sm:$0xf]
  %v5205 = vld [vmem:[%s6 + $0x1b8] sm:$0xf]
  %v5206 = vld [vmem:[%s6 + $0x1bc] sm:$0xf]
  %v5207 = vld [vmem:[%s6 + $0x1c0] sm:$0xf]
  %v5208 = vld [vmem:[%s6 + $0x1c4] sm:$0xf]
  %v5209 = vld [vmem:[%s6 + $0x1c8] sm:$0xf]
  %v5210 = vld [vmem:[%s6 + $0x1cc] sm:$0xf]
  %v5211 = vld [vmem:[%s6 + $0x1d0] sm:$0xf]
  %v5212 = vld [vmem:[%s6 + $0x1d4] sm:$0xf]
  %v5213 = vld [vmem:[%s6 + $0x1d8] sm:$0xf]
  %v5214 = vld [vmem:[%s6 + $0x1dc] sm:$0xf]
  %v5215 = vld [vmem:[%s6 + $0x1e0] sm:$0xf]
  %v5216 = vld [vmem:[%s6 + $0x1e4] sm:$0xf]
  %v5217 = vld [vmem:[%s6 + $0x1e8] sm:$0xf]
  %v5218 = vld [vmem:[%s6 + $0x1ec] sm:$0xf]
  %v5219 = vld [vmem:[%s6 + $0x1f0] sm:$0xf]
  %v5220 = vld [vmem:[%s6 + $0x1f4] sm:$0xf]
  %v5221 = vld [vmem:[%s6 + $0x1f8] sm:$0xf]
  %v5222 = vld [vmem:[%s6 + $0x1fc] sm:$0xf]
  %v5223 = vld [vmem:[%s7] sm:$0x1]
  %v5225 = vlaneseq
  %v5226 = vshrl.u32 %v5225, 7
  %v5227 = vsub.s32 0, %v5226
  %v5228 = vrot.slane %v5223, %v5227
  %v5358 = vunpack.c.l.b16 %v5095
  %v5359 = vunpack.c.l.b16 %v5096
  %v5360 = vunpack.c.l.b16 %v5097
  %v5361 = vunpack.c.l.b16 %v5098
  %v5362 = vunpack.c.l.b16 %v5099
  %v5363 = vunpack.c.l.b16 %v5100
  %v5364 = vunpack.c.l.b16 %v5101
  %v5365 = vunpack.c.l.b16 %v5102
  %v5366 = vunpack.c.l.b16 %v5103
  %v5367 = vunpack.c.l.b16 %v5104
  %v5368 = vunpack.c.l.b16 %v5105
  %v5369 = vunpack.c.l.b16 %v5106
  %v5370 = vunpack.c.l.b16 %v5107
  %v5371 = vunpack.c.l.b16 %v5108
  %v5372 = vunpack.c.l.b16 %v5109
  %v5373 = vunpack.c.l.b16 %v5110
  %v5374 = vunpack.c.l.b16 %v5111
  %v5375 = vunpack.c.l.b16 %v5112
  %v5376 = vunpack.c.l.b16 %v5113
  %v5377 = vunpack.c.l.b16 %v5114
  %v5378 = vunpack.c.l.b16 %v5115
  %v5379 = vunpack.c.l.b16 %v5116
  %v5380 = vunpack.c.l.b16 %v5117
  %v5381 = vunpack.c.l.b16 %v5118
  %v5382 = vunpack.c.l.b16 %v5119
  %v5383 = vunpack.c.l.b16 %v5120
  %v5384 = vunpack.c.l.b16 %v5121
  %v5385 = vunpack.c.l.b16 %v5122
  %v5386 = vunpack.c.l.b16 %v5123
  %v5387 = vunpack.c.l.b16 %v5124
  %v5388 = vunpack.c.l.b16 %v5125
  %v5389 = vunpack.c.l.b16 %v5126
  %v5390 = vunpack.c.l.b16 %v5127
  %v5391 = vunpack.c.l.b16 %v5128
  %v5392 = vunpack.c.l.b16 %v5129
  %v5393 = vunpack.c.l.b16 %v5130
  %v5394 = vunpack.c.l.b16 %v5131
  %v5395 = vunpack.c.l.b16 %v5132
  %v5396 = vunpack.c.l.b16 %v5133
  %v5397 = vunpack.c.l.b16 %v5134
  %v5398 = vunpack.c.l.b16 %v5135
  %v5399 = vunpack.c.l.b16 %v5136
  %v5400 = vunpack.c.l.b16 %v5137
  %v5401 = vunpack.c.l.b16 %v5138
  %v5402 = vunpack.c.l.b16 %v5139
  %v5403 = vunpack.c.l.b16 %v5140
  %v5404 = vunpack.c.l.b16 %v5141
  %v5405 = vunpack.c.l.b16 %v5142
  %v5406 = vunpack.c.l.b16 %v5143
  %v5407 = vunpack.c.l.b16 %v5144
  %v5408 = vunpack.c.l.b16 %v5145
  %v5409 = vunpack.c.l.b16 %v5146
  %v5410 = vunpack.c.l.b16 %v5147
  %v5411 = vunpack.c.l.b16 %v5148
  %v5412 = vunpack.c.l.b16 %v5149
  %v5413 = vunpack.c.l.b16 %v5150
  %v5414 = vunpack.c.l.b16 %v5151
  %v5415 = vunpack.c.l.b16 %v5152
  %v5416 = vunpack.c.l.b16 %v5153
  %v5417 = vunpack.c.l.b16 %v5154
  %v5418 = vunpack.c.l.b16 %v5155
  %v5419 = vunpack.c.l.b16 %v5156
  %v5420 = vunpack.c.l.b16 %v5157
  %v5421 = vunpack.c.l.b16 %v5158
  %v5422 = vunpack.c.l.b16 %v5159
  %v5423 = vunpack.c.l.b16 %v5160
  %v5424 = vunpack.c.l.b16 %v5161
  %v5425 = vunpack.c.l.b16 %v5162
  %v5426 = vunpack.c.l.b16 %v5163
  %v5427 = vunpack.c.l.b16 %v5164
  %v5428 = vunpack.c.l.b16 %v5165
  %v5429 = vunpack.c.l.b16 %v5166
  %v5430 = vunpack.c.l.b16 %v5167
  %v5431 = vunpack.c.l.b16 %v5168
  %v5432 = vunpack.c.l.b16 %v5169
  %v5433 = vunpack.c.l.b16 %v5170
  %v5434 = vunpack.c.l.b16 %v5171
  %v5435 = vunpack.c.l.b16 %v5172
  %v5436 = vunpack.c.l.b16 %v5173
  %v5437 = vunpack.c.l.b16 %v5174
  %v5438 = vunpack.c.l.b16 %v5175
  %v5439 = vunpack.c.l.b16 %v5176
  %v5440 = vunpack.c.l.b16 %v5177
  %v5441 = vunpack.c.l.b16 %v5178
  %v5442 = vunpack.c.l.b16 %v5179
  %v5443 = vunpack.c.l.b16 %v5180
  %v5444 = vunpack.c.l.b16 %v5181
  %v5445 = vunpack.c.l.b16 %v5182
  %v5446 = vunpack.c.l.b16 %v5183
  %v5447 = vunpack.c.l.b16 %v5184
  %v5448 = vunpack.c.l.b16 %v5185
  %v5449 = vunpack.c.l.b16 %v5186
  %v5450 = vunpack.c.l.b16 %v5187
  %v5451 = vunpack.c.l.b16 %v5188
  %v5452 = vunpack.c.l.b16 %v5189
  %v5453 = vunpack.c.l.b16 %v5190
  %v5454 = vunpack.c.l.b16 %v5191
  %v5455 = vunpack.c.l.b16 %v5192
  %v5456 = vunpack.c.l.b16 %v5193
  %v5457 = vunpack.c.l.b16 %v5194
  %v5458 = vunpack.c.l.b16 %v5195
  %v5459 = vunpack.c.l.b16 %v5196
  %v5460 = vunpack.c.l.b16 %v5197
  %v5461 = vunpack.c.l.b16 %v5198
  %v5462 = vunpack.c.l.b16 %v5199
  %v5463 = vunpack.c.l.b16 %v5200
  %v5464 = vunpack.c.l.b16 %v5201
  %v5465 = vunpack.c.l.b16 %v5202
  %v5466 = vunpack.c.l.b16 %v5203
  %v5467 = vunpack.c.l.b16 %v5204
  %v5468 = vunpack.c.l.b16 %v5205
  %v5469 = vunpack.c.l.b16 %v5206
  %v5470 = vunpack.c.l.b16 %v5207
  %v5471 = vunpack.c.l.b16 %v5208
  %v5472 = vunpack.c.l.b16 %v5209
  %v5473 = vunpack.c.l.b16 %v5210
  %v5474 = vunpack.c.l.b16 %v5211
  %v5475 = vunpack.c.l.b16 %v5212
  %v5476 = vunpack.c.l.b16 %v5213
  %v5477 = vunpack.c.l.b16 %v5214
  %v5478 = vunpack.c.l.b16 %v5215
  %v5479 = vunpack.c.l.b16 %v5216
  %v5480 = vunpack.c.l.b16 %v5217
  %v5481 = vunpack.c.l.b16 %v5218
  %v5482 = vunpack.c.l.b16 %v5219
  %v5483 = vunpack.c.l.b16 %v5220
  %v5484 = vunpack.c.l.b16 %v5221
  %v5485 = vunpack.c.l.b16 %v5222
  %v5486 = vpack.c.b16 %v5359, %v5358
  %v5487 = vpack.c.b16 %v5361, %v5360
  %v5488 = vpack.c.b16 %v5363, %v5362
  %v5489 = vpack.c.b16 %v5365, %v5364
  %v5490 = vpack.c.b16 %v5367, %v5366
  %v5491 = vpack.c.b16 %v5369, %v5368
  %v5492 = vpack.c.b16 %v5371, %v5370
  %v5493 = vpack.c.b16 %v5373, %v5372
  %v5494 = vpack.c.b16 %v5375, %v5374
  %v5495 = vpack.c.b16 %v5377, %v5376
  %v5496 = vpack.c.b16 %v5379, %v5378
  %v5497 = vpack.c.b16 %v5381, %v5380
  %v5498 = vpack.c.b16 %v5383, %v5382
  %v5499 = vpack.c.b16 %v5385, %v5384
  %v5500 = vpack.c.b16 %v5387, %v5386
  %v5501 = vpack.c.b16 %v5389, %v5388
  %v5502 = vpack.c.b16 %v5391, %v5390
  %v5503 = vpack.c.b16 %v5393, %v5392
  %v5504 = vpack.c.b16 %v5395, %v5394
  %v5505 = vpack.c.b16 %v5397, %v5396
  %v5506 = vpack.c.b16 %v5399, %v5398
  %v5507 = vpack.c.b16 %v5401, %v5400
  %v5508 = vpack.c.b16 %v5403, %v5402
  %v5509 = vpack.c.b16 %v5405, %v5404
  %v5510 = vpack.c.b16 %v5407, %v5406
  %v5511 = vpack.c.b16 %v5409, %v5408
  %v5512 = vpack.c.b16 %v5411, %v5410
  %v5513 = vpack.c.b16 %v5413, %v5412
  %v5514 = vpack.c.b16 %v5415, %v5414
  %v5515 = vpack.c.b16 %v5417, %v5416
  %v5516 = vpack.c.b16 %v5419, %v5418
  %v5517 = vpack.c.b16 %v5421, %v5420
  %v5518 = vpack.c.b16 %v5423, %v5422
  %v5519 = vpack.c.b16 %v5425, %v5424
  %v5520 = vpack.c.b16 %v5427, %v5426
  %v5521 = vpack.c.b16 %v5429, %v5428
  %v5522 = vpack.c.b16 %v5431, %v5430
  %v5523 = vpack.c.b16 %v5433, %v5432
  %v5524 = vpack.c.b16 %v5435, %v5434
  %v5525 = vpack.c.b16 %v5437, %v5436
  %v5526 = vpack.c.b16 %v5439, %v5438
  %v5527 = vpack.c.b16 %v5441, %v5440
  %v5528 = vpack.c.b16 %v5443, %v5442
  %v5529 = vpack.c.b16 %v5445, %v5444
  %v5530 = vpack.c.b16 %v5447, %v5446
  %v5531 = vpack.c.b16 %v5449, %v5448
  %v5532 = vpack.c.b16 %v5451, %v5450
  %v5533 = vpack.c.b16 %v5453, %v5452
  %v5534 = vpack.c.b16 %v5455, %v5454
  %v5535 = vpack.c.b16 %v5457, %v5456
  %v5536 = vpack.c.b16 %v5459, %v5458
  %v5537 = vpack.c.b16 %v5461, %v5460
  %v5538 = vpack.c.b16 %v5463, %v5462
  %v5539 = vpack.c.b16 %v5465, %v5464
  %v5540 = vpack.c.b16 %v5467, %v5466
  %v5541 = vpack.c.b16 %v5469, %v5468
  %v5542 = vpack.c.b16 %v5471, %v5470
  %v5543 = vpack.c.b16 %v5473, %v5472
  %v5544 = vpack.c.b16 %v5475, %v5474
  %v5545 = vpack.c.b16 %v5477, %v5476
  %v5546 = vpack.c.b16 %v5479, %v5478
  %v5547 = vpack.c.b16 %v5481, %v5480
  %v5548 = vpack.c.b16 %v5483, %v5482
  %v5549 = vpack.c.b16 %v5485, %v5484
  %5614 = vmatprep.subr.bf16.mxu0 0
  %5615 = vmatpush1.bf16.msra.mxu0 %v5486
  %5616 = vmatprep.subr.bf16.mxu0 0
  %5617 = vmatpush1.bf16.msra.mxu0 %v5487
  %5618 = vmatprep.subr.bf16.mxu0 0
  %5619 = vmatpush1.bf16.msra.mxu0 %v5488
  %5620 = vmatprep.subr.bf16.mxu0 0
  %5621 = vmatpush1.bf16.msra.mxu0 %v5489
  %5622 = vmatprep.subr.bf16.mxu0 0
  %5623 = vmatpush1.bf16.msra.mxu0 %v5490
  %5624 = vmatprep.subr.bf16.mxu0 0
  %5625 = vmatpush1.bf16.msra.mxu0 %v5491
  %5626 = vmatprep.subr.bf16.mxu0 0
  %5627 = vmatpush1.bf16.msra.mxu0 %v5492
  %5628 = vmatprep.subr.bf16.mxu0 0
  %5629 = vmatpush1.bf16.msra.mxu0 %v5493
  %5630 = vmatprep.subr.bf16.mxu0 0
  %5631 = vmatpush1.bf16.msra.mxu0 %v5494
  %5632 = vmatprep.subr.bf16.mxu0 0
  %5633 = vmatpush1.bf16.msra.mxu0 %v5495
  %5634 = vmatprep.subr.bf16.mxu0 0
  %5635 = vmatpush1.bf16.msra.mxu0 %v5496
  %5636 = vmatprep.subr.bf16.mxu0 0
  %5637 = vmatpush1.bf16.msra.mxu0 %v5497
  %5638 = vmatprep.subr.bf16.mxu0 0
  %5639 = vmatpush1.bf16.msra.mxu0 %v5498
  %5640 = vmatprep.subr.bf16.mxu0 0
  %5641 = vmatpush1.bf16.msra.mxu0 %v5499
  %5642 = vmatprep.subr.bf16.mxu0 0
  %5643 = vmatpush1.bf16.msra.mxu0 %v5500
  %5644 = vmatprep.subr.bf16.mxu0 0
  %5645 = vmatpush1.bf16.msra.mxu0 %v5501
  %5646 = vmatprep.mubr.bf16.mxu0 %v5088
  %5647 = vmatmul.mubr.bf16.gmra.mrb[0].mxu0 %v5087
  %v5648 = vpop.f32.mrb[0].mxu0
  %v5649 = vadd.f32 %v5228, %v5648
  %v5650 = vpop.f32.mrb[0].mxu0
  %v5651 = vpop.f32.mrb[0].mxu0
  %v5652 = vpop.f32.mrb[0].mxu0
  %5653 = vdwg.mxu0
  %5654 = vmatprep.subr.bf16.mxu0 0
  %5655 = vmatpush1.bf16.msra.mxu0 %v5502
  %5656 = vmatprep.subr.bf16.mxu0 0
  %5657 = vmatpush1.bf16.msra.mxu0 %v5503
  %5658 = vmatprep.subr.bf16.mxu0 0
  %5659 = vmatpush1.bf16.msra.mxu0 %v5504
  %5660 = vmatprep.subr.bf16.mxu0 0
  %5661 = vmatpush1.bf16.msra.mxu0 %v5505
  %5662 = vmatprep.subr.bf16.mxu0 0
  %5663 = vmatpush1.bf16.msra.mxu0 %v5506
  %5664 = vmatprep.subr.bf16.mxu0 0
  %5665 = vmatpush1.bf16.msra.mxu0 %v5507
  %5666 = vmatprep.subr.bf16.mxu0 0
  %5667 = vmatpush1.bf16.msra.mxu0 %v5508
  %5668 = vmatprep.subr.bf16.mxu0 0
  %5669 = vmatpush1.bf16.msra.mxu0 %v5509
  %5670 = vmatprep.subr.bf16.mxu0 0
  %5671 = vmatpush1.bf16.msra.mxu0 %v5510
  %5672 = vmatprep.subr.bf16.mxu0 0
  %5673 = vmatpush1.bf16.msra.mxu0 %v5511
  %5674 = vmatprep.subr.bf16.mxu0 0
  %5675 = vmatpush1.bf16.msra.mxu0 %v5512
  %5676 = vmatprep.subr.bf16.mxu0 0
  %5677 = vmatpush1.bf16.msra.mxu0 %v5513
  %5678 = vmatprep.subr.bf16.mxu0 0
  %5679 = vmatpush1.bf16.msra.mxu0 %v5514
  %5680 = vmatprep.subr.bf16.mxu0 0
  %5681 = vmatpush1.bf16.msra.mxu0 %v5515
  %5682 = vmatprep.subr.bf16.mxu0 0
  %5683 = vmatpush1.bf16.msra.mxu0 %v5516
  %5684 = vmatprep.subr.bf16.mxu0 0
  %5685 = vmatpush1.bf16.msra.mxu0 %v5517
  %5686 = vmatprep.mubr.bf16.mxu0 %v5090
  %5687 = vmatmul.mubr.bf16.gmra.mrb[0].mxu0 %v5089
  %v5688 = vpop.f32.mrb[0].mxu0
  %v5689 = vadd.f32 %v5649, %v5688
  %v5690 = vpop.f32.mrb[0].mxu0
  %v5691 = vpop.f32.mrb[0].mxu0
  %v5692 = vpop.f32.mrb[0].mxu0
  %5693 = vdwg.mxu0
  %5694 = vmatprep.subr.bf16.mxu0 0
  %5695 = vmatpush1.bf16.msra.mxu0 %v5518
  %5696 = vmatprep.subr.bf16.mxu0 0
  %5697 = vmatpush1.bf16.msra.mxu0 %v5519
  %5698 = vmatprep.subr.bf16.mxu0 0
  %5699 = vmatpush1.bf16.msra.mxu0 %v5520
  %5700 = vmatprep.subr.bf16.mxu0 0
  %5701 = vmatpush1.bf16.msra.mxu0 %v5521
  %5702 = vmatprep.subr.bf16.mxu0 0
  %5703 = vmatpush1.bf16.msra.mxu0 %v5522
  %5704 = vmatprep.subr.bf16.mxu0 0
  %5705 = vmatpush1.bf16.msra.mxu0 %v5523
  %5706 = vmatprep.subr.bf16.mxu0 0
  %5707 = vmatpush1.bf16.msra.mxu0 %v5524
  %5708 = vmatprep.subr.bf16.mxu0 0
  %5709 = vmatpush1.bf16.msra.mxu0 %v5525
  %5710 = vmatprep.subr.bf16.mxu0 0
  %5711 = vmatpush1.bf16.msra.mxu0 %v5526
  %5712 = vmatprep.subr.bf16.mxu0 0
  %5713 = vmatpush1.bf16.msra.mxu0 %v5527
  %5714 = vmatprep.subr.bf16.mxu0 0
  %5715 = vmatpush1.bf16.msra.mxu0 %v5528
  %5716 = vmatprep.subr.bf16.mxu0 0
  %5717 = vmatpush1.bf16.msra.mxu0 %v5529
  %5718 = vmatprep.subr.bf16.mxu0 0
  %5719 = vmatpush1.bf16.msra.mxu0 %v5530
  %5720 = vmatprep.subr.bf16.mxu0 0
  %5721 = vmatpush1.bf16.msra.mxu0 %v5531
  %5722 = vmatprep.subr.bf16.mxu0 0
  %5723 = vmatpush1.bf16.msra.mxu0 %v5532
  %5724 = vmatprep.subr.bf16.mxu0 0
  %5725 = vmatpush1.bf16.msra.mxu0 %v5533
  %5726 = vmatprep.mubr.bf16.mxu0 %v5092
  %5727 = vmatmul.mubr.bf16.gmra.mrb[0].mxu0 %v5091
  %v5728 = vpop.f32.mrb[0].mxu0
  %v5729 = vadd.f32 %v5689, %v5728
  %v5730 = vpop.f32.mrb[0].mxu0
  %v5731 = vpop.f32.mrb[0].mxu0
  %v5732 = vpop.f32.mrb[0].mxu0
  %5733 = vdwg.mxu0
  %5734 = vmatprep.subr.bf16.mxu0 0
  %5735 = vmatpush1.bf16.msra.mxu0 %v5534
  %5736 = vmatprep.subr.bf16.mxu0 0
  %5737 = vmatpush1.bf16.msra.mxu0 %v5535
  %5738 = vmatprep.subr.bf16.mxu0 0
  %5739 = vmatpush1.bf16.msra.mxu0 %v5536
  %5740 = vmatprep.subr.bf16.mxu0 0
  %5741 = vmatpush1.bf16.msra.mxu0 %v5537
  %5742 = vmatprep.subr.bf16.mxu0 0
  %5743 = vmatpush1.bf16.msra.mxu0 %v5538
  %5744 = vmatprep.subr.bf16.mxu0 0
  %5745 = vmatpush1.bf16.msra.mxu0 %v5539
  %5746 = vmatprep.subr.bf16.mxu0 0
  %5747 = vmatpush1.bf16.msra.mxu0 %v5540
  %5748 = vmatprep.subr.bf16.mxu0 0
  %5749 = vmatpush1.bf16.msra.mxu0 %v5541
  %5750 = vmatprep.subr.bf16.mxu0 0
  %5751 = vmatpush1.bf16.msra.mxu0 %v5542
  %5752 = vmatprep.subr.bf16.mxu0 0
  %5753 = vmatpush1.bf16.msra.mxu0 %v5543
  %5754 = vmatprep.subr.bf16.mxu0 0
  %5755 = vmatpush1.bf16.msra.mxu0 %v5544
  %5756 = vmatprep.subr.bf16.mxu0 0
  %5757 = vmatpush1.bf16.msra.mxu0 %v5545
  %5758 = vmatprep.subr.bf16.mxu0 0
  %5759 = vmatpush1.bf16.msra.mxu0 %v5546
  %5760 = vmatprep.subr.bf16.mxu0 0
  %5761 = vmatpush1.bf16.msra.mxu0 %v5547
  %5762 = vmatprep.subr.bf16.mxu0 0
  %5763 = vmatpush1.bf16.msra.mxu0 %v5548
  %5764 = vmatprep.subr.bf16.mxu0 0
  %5765 = vmatpush1.bf16.msra.mxu0 %v5549
  %5766 = vmatprep.mubr.bf16.mxu0 %v5094
  %5767 = vmatmul.mubr.bf16.gmra.mrb[0].mxu0 %v5093
  %v5768 = vpop.f32.mrb[0].mxu0
  %v5769 = vadd.f32 %v5729, %v5768
  %v5770 = vpop.f32.mrb[0].mxu0
  %v5771 = vpop.f32.mrb[0].mxu0
  %v5772 = vpop.f32.mrb[0].mxu0
  %5773 = vdwg.mxu0
  %5774 = vst [vmem:[%s8] sm:$0xff] %v5769
  // Predicated region
  $region34: #{scatnet2d_forward.5} parent=0 // pred_check
    _
  $region35: #{scatnet2d_forward.5} parent=0 // pred_check_branch
    %5776 = sbr.rel (0) target = $region37
  $region36: #{scatnet2d_forward.5} parent=0 // pred_region
    _
  $region37: #{scatnet2d_forward.5} parent=0 // pred_fallthru
    _
  // Predicated region
  $region38: #{scatnet2d_forward.5} parent=0 // pred_check
    _
  $region39: #{scatnet2d_forward.5} parent=0 // pred_check_branch
    %5778 = sbr.rel (0) target = $region41
  $region40: #{scatnet2d_forward.5} parent=0 // pred_region
    _
  $region41: #{scatnet2d_forward.5} parent=0 // pred_fallthru
    _

</llo_original>
